<compile_context>
chip_gen: v7x
topology: tpu7x:2x2x1
jax: 0.10.0
libtpu: 0.0.40
codegen_flags: <defaults>
</compile_context>

<pallas_src>
import jax
import jax.numpy as jnp
from jax.experimental import pallas as pl
from jax.experimental.pallas import tpu as pltpu


# ----------------------------------------------------------------------------
# PyTorch-exact bilinear resize matrix (align_corners=False, clamped edges).
# ----------------------------------------------------------------------------
def _interp_matrix(in_size: int, scale: float) -> jnp.ndarray:
    out_size = int(in_size * scale)
    dst = jnp.arange(out_size, dtype=jnp.float32)
    src = jnp.maximum((dst + 0.5) / scale - 0.5, 0.0)
    i0 = jnp.minimum(jnp.floor(src).astype(jnp.int32), in_size - 1)
    i1 = jnp.minimum(i0 + 1, in_size - 1)
    frac = src - i0.astype(jnp.float32)
    rows = jnp.arange(out_size)
    w = jnp.zeros((out_size, in_size), jnp.float32)
    w = w.at[rows, i0].add(1.0 - frac)
    w = w.at[rows, i1].add(frac)
    return w


def _reference(x, weight, bias):
    """interp(2x bilinear) -> 1x1 conv -> ReLU, in the PyTorch order."""
    B, C_in, H, W = x.shape
    C_out = weight.shape[0]
    wh = _interp_matrix(H, 2.0)
    ww = _interp_matrix(W, 2.0)
    up = jnp.einsum("oh,bchw,pw->bcop", wh, x.astype(jnp.float32), ww)
    wc = weight.reshape(C_out, C_in).astype(jnp.float32)
    y = jnp.einsum("kc,bcop->bkop", wc, up) + bias.reshape(1, C_out, 1, 1)
    return jnp.maximum(y, 0.0)


# ----------------------------------------------------------------------------
# Fused Pallas kernel
# ----------------------------------------------------------------------------
def _decode_bnn_kernel(x_ref, w_ref, b_ref, ahe_ref, aho_ref, awt_ref, out_ref):
    # x_ref:   (TB, C_in, H, W)   NCHW input tile (VMEM)
    # w_ref:   (C_out, C_in)      1x1 conv weight (SMEM scalars)
    # b_ref:   (C_out,)           conv bias       (SMEM scalars)
    # ahe_ref: (H, H)             row-interp matrix rows for EVEN output rows
    # aho_ref: (H, H)             row-interp matrix rows for ODD  output rows
    # awt_ref: (W, 2W)            transposed column-interp matrix
    # out_ref: (TB, C_out, H, 4W) out[b,k,h, 0:2W]  = upsampled row 2h
    #                             out[b,k,h, 2W:4W] = upsampled row 2h+1
    # -> trailing (H, 4W) reinterprets row-major as (2H, 2W) for free.
    TB, C_in, H, W = x_ref.shape
    C_out = out_ref.shape[1]

    ahe = ahe_ref[...]            # resident across the whole body
    aho = aho_ref[...]
    awt = awt_ref[...]

    for b in range(TB):
        for k in range(C_out):
            # 1x1 conv + bias at LOW resolution (commutes with the upsample
            # because the bilinear weights are row-stochastic).  Channels are
            # small -> VPU broadcast-FMAs with SMEM scalar weights.
            # TODO(synk): for large channel counts (>~32) this should become a
            # lane-dense MXU channel-mix instead of per-channel VPU FMAs.
            y = x_ref[b, 0] * w_ref[k, 0]
            for c in range(1, C_in):
                y = y + x_ref[b, c] * w_ref[k, c]
            y = y + b_ref[k]                                          # (H, W)

            # Separable 2x bilinear upsample as two small MXU matmuls
            # (edge clamping is baked into the interpolation matrices).
            u = jnp.dot(y, awt, preferred_element_type=jnp.float32)   # (H, 2W)
            ue = jnp.dot(ahe, u, preferred_element_type=jnp.float32)  # rows 2h
            uo = jnp.dot(aho, u, preferred_element_type=jnp.float32)  # rows 2h+1

            # ReLU + immediate store: keeps only per-(b,k) intermediates live
            # and lets output writeback start early under the pipeline.
            out_ref[b, k, :, 0:2 * W] = jnp.maximum(ue, 0.0)
            out_ref[b, k, :, 2 * W:4 * W] = jnp.maximum(uo, 0.0)


# ----------------------------------------------------------------------------
# Per-generation tiling / VMEM planning
# ----------------------------------------------------------------------------
def _vmem_plan():
    """Returns (compiler vmem limit, tile budget, #TensorCores per chip)."""
    vmem_total = 128 * 1024 * 1024
    try:
        info = pltpu.get_tpu_info()
        vmem_total = int(getattr(info, "vmem_capacity_bytes", vmem_total)) or vmem_total
    except Exception:
        pass
    # Heuristic: 64 MiB-per-core chips (v7x) have 2 TensorCores; 128 MiB chips
    # (v5e / v6e) have 1.
    num_tc = 2 if vmem_total <= 64 * 1024 * 1024 else 1
    vmem_limit = max(32 * 1024 * 1024,
                     min((vmem_total * 3) // 4, 100 * 1024 * 1024))  # 96M / 48M
    tile_budget = (vmem_limit * 2) // 3                              # headroom
    return vmem_limit, tile_budget, num_tc


def _pick_batch_tile(B, C_in, C_out, H, W, tile_budget_bytes, num_tc):
    """Largest divisor of B whose double-buffered blocks fit the budget.
    Only force >= num_tc grid steps on chips that actually have >1 TC."""
    per_b = 4 * (2 * C_in * H * W            # input block, double-buffered
                 + 2 * C_out * H * 4 * W     # output block, double-buffered
                 + 8 * H * 2 * W)            # live per-(b,k) intermediates
    cap = max(1, tile_budget_bytes // max(per_b, 1))
    if num_tc > 1 and B >= num_tc:
        cap = min(cap, B // num_tc)          # keep both TensorCores fed (v7x)
    # TODO(synk): non-divisor B degrades toward TB=1 (perf cliff, still correct).
    tb = 1
    for d in range(1, B + 1):
        if B % d == 0 and d <= cap:
            tb = d
    return tb


# ----------------------------------------------------------------------------
# Wrapper
# ----------------------------------------------------------------------------
def decode_bnn_forward(x, conv_weight, conv_bias):
    """x: (B, C_in, H, W) f32; conv_weight: (C_out, C_in, 1, 1); conv_bias: (C_out,).
    Returns ReLU(Conv1x1(bilinear_2x(x))) as (B, C_out, 2H, 2W), PyTorch layout."""
    B, C_in, H, W = x.shape
    C_out = conv_weight.shape[0]
    assert conv_weight.shape[1:] == (C_in, 1, 1), "Decode_BNN uses a 1x1 conv"
    # TODO(synk): hardcodes the module defaults (scale_factor=2 bilinear,
    # align_corners=False, kernel_size=1, stride=1, padding=0).

    x = x.astype(jnp.float32)
    w2 = conv_weight.reshape(C_out, C_in).astype(jnp.float32)
    b1 = conv_bias.reshape(C_out).astype(jnp.float32)

    ah = _interp_matrix(H, 2.0)                   # (2H, H)
    ahe = ah[0::2, :]                             # even output rows  (H, H)
    aho = ah[1::2, :]                             # odd  output rows  (H, H)
    awt = jnp.transpose(_interp_matrix(W, 2.0))   # (W, 2W)

    vmem_limit, tile_budget, num_tc = _vmem_plan()
    TB = _pick_batch_tile(B, C_in, C_out, H, W, tile_budget, num_tc)
    grid = (B // TB,)

    out = pl.pallas_call(
        _decode_bnn_kernel,
        out_shape=jax.ShapeDtypeStruct((B, C_out, H, 4 * W), jnp.float32),
        grid=grid,
        in_specs=[
            pl.BlockSpec((TB, C_in, H, W), lambda i: (i, 0, 0, 0)),     # x tile
            pl.BlockSpec(memory_space=pltpu.MemorySpace.SMEM),          # conv W
            pl.BlockSpec(memory_space=pltpu.MemorySpace.SMEM),          # bias
            pl.BlockSpec((H, H), lambda i: (0, 0)),                     # Ah even
            pl.BlockSpec((H, H), lambda i: (0, 0)),                     # Ah odd
            pl.BlockSpec((W, 2 * W), lambda i: (0, 0)),                 # Aw^T
        ],
        out_specs=pl.BlockSpec((TB, C_out, H, 4 * W), lambda i: (i, 0, 0, 0)),
        compiler_params=pltpu.CompilerParams(
            dimension_semantics=("parallel",),
            vmem_limit_bytes=int(vmem_limit),
        ),
    )(x, w2, b1, ahe, aho, awt)

    # Free row-major reinterpretation: (H, 4W) -> (2H, 2W) per (b, k).
    return out.reshape(B, C_out, 2 * H, 2 * W)


if __name__ == "__main__":
    key = jax.random.PRNGKey(0)
    k1, k2, k3 = jax.random.split(key, 3)

    B, C_in, C_out, H, W = 2, 4, 8, 16, 16
    x = jax.random.normal(k1, (B, C_in, H, W), dtype=jnp.float32)
    w = jax.random.normal(k2, (C_out, C_in, 1, 1), dtype=jnp.float32) * 0.1
    b = jax.random.normal(k3, (C_out,), dtype=jnp.float32) * 0.1

    out = jax.block_until_ready(decode_bnn_forward(x, w, b))
    assert out.shape == (B, C_out, 2 * H, 2 * W), out.shape

    ref = _reference(x, w, b)
    err = float(jnp.max(jnp.abs(out - ref)))
    assert jnp.allclose(out, ref, atol=1e-4, rtol=1e-4), err
    print("KERNEL_OK")
</pallas_src>

<mosaic_0001>
module attributes {stable_mosaic.version = 11 : i64} {
  func.func @_decode_bnn_kernel(%arg0: i32, %arg1: memref<2x4x16x16xf32, #tpu.memory_space<vmem>>, %arg2: memref<8x4xf32, #tpu.memory_space<smem>>, %arg3: memref<8xf32, #tpu.memory_space<smem>>, %arg4: memref<16x16xf32, #tpu.memory_space<vmem>>, %arg5: memref<16x16xf32, #tpu.memory_space<vmem>>, %arg6: memref<16x32xf32, #tpu.memory_space<vmem>>, %arg7: memref<2x8x16x64xf32, #tpu.memory_space<vmem>>) attributes {dimension_semantics = [#tpu.dimension_semantics<parallel>], iteration_bounds = array<i64: 1>, scalar_prefetch = 0 : i64, scratch_operands = 0 : i64, tpu.core_type = #tpu.core_type<tc>, window_params = [{transform_indices = @transform_0, window_bounds = array<i64: 2, 4, 16, 16>}, {transform_indices = @transform_1, window_bounds = array<i64: 8, 4>}, {transform_indices = @transform_2, window_bounds = array<i64: 8>}, {pipeline_mode = #tpu.pipeline_mode<synchronous>, transform_indices = @transform_3, window_bounds = array<i64: 16, 16>}, {pipeline_mode = #tpu.pipeline_mode<synchronous>, transform_indices = @transform_4, window_bounds = array<i64: 16, 16>}, {pipeline_mode = #tpu.pipeline_mode<synchronous>, transform_indices = @transform_5, window_bounds = array<i64: 16, 32>}, {transform_indices = @transform_6, window_bounds = array<i64: 2, 8, 16, 64>}]} {
    %c0 = arith.constant 0 : index
    %c0_0 = arith.constant 0 : index
    %0 = vector.load %arg4[%c0, %c0_0] : memref<16x16xf32, #tpu.memory_space<vmem>>, vector<16x16xf32>
    %c0_1 = arith.constant 0 : index
    %c0_2 = arith.constant 0 : index
    %1 = vector.load %arg5[%c0_1, %c0_2] : memref<16x16xf32, #tpu.memory_space<vmem>>, vector<16x16xf32>
    %c0_3 = arith.constant 0 : index
    %c0_4 = arith.constant 0 : index
    %2 = vector.load %arg6[%c0_3, %c0_4] : memref<16x32xf32, #tpu.memory_space<vmem>>, vector<16x32xf32>
    %c0_5 = arith.constant 0 : index
    %c0_6 = arith.constant 0 : index
    %c0_7 = arith.constant 0 : index
    %c0_8 = arith.constant 0 : index
    %3 = vector.load %arg1[%c0_5, %c0_6, %c0_7, %c0_8] : memref<2x4x16x16xf32, #tpu.memory_space<vmem>>, vector<1x1x16x16xf32>
    %4 = vector.shape_cast %3 : vector<1x1x16x16xf32> to vector<16x16xf32>
    %c0_9 = arith.constant 0 : index
    %c0_10 = arith.constant 0 : index
    %5 = memref.load %arg2[%c0_9, %c0_10] : memref<8x4xf32, #tpu.memory_space<smem>>
    %6 = vector.broadcast %5 : f32 to vector<16x16xf32>
    %7 = arith.mulf %4, %6 : vector<16x16xf32>
    %c0_11 = arith.constant 0 : index
    %c1 = arith.constant 1 : index
    %c0_12 = arith.constant 0 : index
    %c0_13 = arith.constant 0 : index
    %8 = vector.load %arg1[%c0_11, %c1, %c0_12, %c0_13] : memref<2x4x16x16xf32, #tpu.memory_space<vmem>>, vector<1x1x16x16xf32>
    %9 = vector.shape_cast %8 : vector<1x1x16x16xf32> to vector<16x16xf32>
    %c0_14 = arith.constant 0 : index
    %c1_15 = arith.constant 1 : index
    %10 = memref.load %arg2[%c0_14, %c1_15] : memref<8x4xf32, #tpu.memory_space<smem>>
    %11 = vector.broadcast %10 : f32 to vector<16x16xf32>
    %12 = arith.mulf %9, %11 : vector<16x16xf32>
    %13 = arith.addf %7, %12 : vector<16x16xf32>
    %c0_16 = arith.constant 0 : index
    %c2 = arith.constant 2 : index
    %c0_17 = arith.constant 0 : index
    %c0_18 = arith.constant 0 : index
    %14 = vector.load %arg1[%c0_16, %c2, %c0_17, %c0_18] : memref<2x4x16x16xf32, #tpu.memory_space<vmem>>, vector<1x1x16x16xf32>
    %15 = vector.shape_cast %14 : vector<1x1x16x16xf32> to vector<16x16xf32>
    %c0_19 = arith.constant 0 : index
    %c2_20 = arith.constant 2 : index
    %16 = memref.load %arg2[%c0_19, %c2_20] : memref<8x4xf32, #tpu.memory_space<smem>>
    %17 = vector.broadcast %16 : f32 to vector<16x16xf32>
    %18 = arith.mulf %15, %17 : vector<16x16xf32>
    %19 = arith.addf %13, %18 : vector<16x16xf32>
    %c0_21 = arith.constant 0 : index
    %c3 = arith.constant 3 : index
    %c0_22 = arith.constant 0 : index
    %c0_23 = arith.constant 0 : index
    %20 = vector.load %arg1[%c0_21, %c3, %c0_22, %c0_23] : memref<2x4x16x16xf32, #tpu.memory_space<vmem>>, vector<1x1x16x16xf32>
    %21 = vector.shape_cast %20 : vector<1x1x16x16xf32> to vector<16x16xf32>
    %c0_24 = arith.constant 0 : index
    %c3_25 = arith.constant 3 : index
    %22 = memref.load %arg2[%c0_24, %c3_25] : memref<8x4xf32, #tpu.memory_space<smem>>
    %23 = vector.broadcast %22 : f32 to vector<16x16xf32>
    %24 = arith.mulf %21, %23 : vector<16x16xf32>
    %25 = arith.addf %19, %24 : vector<16x16xf32>
    %c0_26 = arith.constant 0 : index
    %26 = memref.load %arg3[%c0_26] : memref<8xf32, #tpu.memory_space<smem>>
    %27 = vector.broadcast %26 : f32 to vector<16x16xf32>
    %28 = arith.addf %25, %27 : vector<16x16xf32>
    %cst = arith.constant dense<0.000000e+00> : vector<16x32xf32>
    %29 = tpu.matmul %28, %2, %cst {dimension_numbers = #tpu.dot_dimension_numbers<[1], [0], [0], [1], [0, 0, 1, 1], [], []>} : vector<16x16xf32>, vector<16x32xf32>, vector<16x32xf32> -> vector<16x32xf32>
    %cst_27 = arith.constant dense<0.000000e+00> : vector<16x32xf32>
    %30 = tpu.matmul %0, %29, %cst_27 {dimension_numbers = #tpu.dot_dimension_numbers<[1], [0], [0], [1], [0, 0, 1, 1], [], []>} : vector<16x16xf32>, vector<16x32xf32>, vector<16x32xf32> -> vector<16x32xf32>
    %cst_28 = arith.constant dense<0.000000e+00> : vector<16x32xf32>
    %31 = tpu.matmul %1, %29, %cst_28 {dimension_numbers = #tpu.dot_dimension_numbers<[1], [0], [0], [1], [0, 0, 1, 1], [], []>} : vector<16x16xf32>, vector<16x32xf32>, vector<16x32xf32> -> vector<16x32xf32>
    %cst_29 = arith.constant 0.000000e+00 : f32
    %32 = vector.broadcast %cst_29 : f32 to vector<16x32xf32>
    %33 = arith.maximumf %30, %32 : vector<16x32xf32>
    %c0_30 = arith.constant 0 : index
    %c0_31 = arith.constant 0 : index
    %c0_32 = arith.constant 0 : index
    %c0_33 = arith.constant 0 : index
    %34 = vector.load %arg7[%c0_30, %c0_31, %c0_32, %c0_33] : memref<2x8x16x64xf32, #tpu.memory_space<vmem>>, vector<1x1x16x32xf32>
    %35 = vector.shape_cast %34 : vector<1x1x16x32xf32> to vector<16x32xf32>
    %36 = vector.shape_cast %33 : vector<16x32xf32> to vector<1x1x16x32xf32>
    tpu.vector_store %arg7[%c0_30, %c0_31, %c0_32, %c0_33], %36 {strides = array<i32>} : memref<2x8x16x64xf32, #tpu.memory_space<vmem>>, vector<1x1x16x32xf32>,
    %cst_34 = arith.constant 0.000000e+00 : f32
    %37 = vector.broadcast %cst_34 : f32 to vector<16x32xf32>
    %38 = arith.maximumf %31, %37 : vector<16x32xf32>
    %c0_35 = arith.constant 0 : index
    %c0_36 = arith.constant 0 : index
    %c0_37 = arith.constant 0 : index
    %c32 = arith.constant 32 : index
    %39 = vector.load %arg7[%c0_35, %c0_36, %c0_37, %c32] : memref<2x8x16x64xf32, #tpu.memory_space<vmem>>, vector<1x1x16x32xf32>
    %40 = vector.shape_cast %39 : vector<1x1x16x32xf32> to vector<16x32xf32>
    %41 = vector.shape_cast %38 : vector<16x32xf32> to vector<1x1x16x32xf32>
    tpu.vector_store %arg7[%c0_35, %c0_36, %c0_37, %c32], %41 {strides = array<i32>} : memref<2x8x16x64xf32, #tpu.memory_space<vmem>>, vector<1x1x16x32xf32>,
    %c0_38 = arith.constant 0 : index
    %c0_39 = arith.constant 0 : index
    %c0_40 = arith.constant 0 : index
    %c0_41 = arith.constant 0 : index
    %42 = vector.load %arg1[%c0_38, %c0_39, %c0_40, %c0_41] : memref<2x4x16x16xf32, #tpu.memory_space<vmem>>, vector<1x1x16x16xf32>
    %43 = vector.shape_cast %42 : vector<1x1x16x16xf32> to vector<16x16xf32>
    %c1_42 = arith.constant 1 : index
    %c0_43 = arith.constant 0 : index
    %44 = memref.load %arg2[%c1_42, %c0_43] : memref<8x4xf32, #tpu.memory_space<smem>>
    %45 = vector.broadcast %44 : f32 to vector<16x16xf32>
    %46 = arith.mulf %43, %45 : vector<16x16xf32>
    %c0_44 = arith.constant 0 : index
    %c1_45 = arith.constant 1 : index
    %c0_46 = arith.constant 0 : index
    %c0_47 = arith.constant 0 : index
    %47 = vector.load %arg1[%c0_44, %c1_45, %c0_46, %c0_47] : memref<2x4x16x16xf32, #tpu.memory_space<vmem>>, vector<1x1x16x16xf32>
    %48 = vector.shape_cast %47 : vector<1x1x16x16xf32> to vector<16x16xf32>
    %c1_48 = arith.constant 1 : index
    %c1_49 = arith.constant 1 : index
    %49 = memref.load %arg2[%c1_48, %c1_49] : memref<8x4xf32, #tpu.memory_space<smem>>
    %50 = vector.broadcast %49 : f32 to vector<16x16xf32>
    %51 = arith.mulf %48, %50 : vector<16x16xf32>
    %52 = arith.addf %46, %51 : vector<16x16xf32>
    %c0_50 = arith.constant 0 : index
    %c2_51 = arith.constant 2 : index
    %c0_52 = arith.constant 0 : index
    %c0_53 = arith.constant 0 : index
    %53 = vector.load %arg1[%c0_50, %c2_51, %c0_52, %c0_53] : memref<2x4x16x16xf32, #tpu.memory_space<vmem>>, vector<1x1x16x16xf32>
    %54 = vector.shape_cast %53 : vector<1x1x16x16xf32> to vector<16x16xf32>
    %c1_54 = arith.constant 1 : index
    %c2_55 = arith.constant 2 : index
    %55 = memref.load %arg2[%c1_54, %c2_55] : memref<8x4xf32, #tpu.memory_space<smem>>
    %56 = vector.broadcast %55 : f32 to vector<16x16xf32>
    %57 = arith.mulf %54, %56 : vector<16x16xf32>
    %58 = arith.addf %52, %57 : vector<16x16xf32>
    %c0_56 = arith.constant 0 : index
    %c3_57 = arith.constant 3 : index
    %c0_58 = arith.constant 0 : index
    %c0_59 = arith.constant 0 : index
    %59 = vector.load %arg1[%c0_56, %c3_57, %c0_58, %c0_59] : memref<2x4x16x16xf32, #tpu.memory_space<vmem>>, vector<1x1x16x16xf32>
    %60 = vector.shape_cast %59 : vector<1x1x16x16xf32> to vector<16x16xf32>
    %c1_60 = arith.constant 1 : index
    %c3_61 = arith.constant 3 : index
    %61 = memref.load %arg2[%c1_60, %c3_61] : memref<8x4xf32, #tpu.memory_space<smem>>
    %62 = vector.broadcast %61 : f32 to vector<16x16xf32>
    %63 = arith.mulf %60, %62 : vector<16x16xf32>
    %64 = arith.addf %58, %63 : vector<16x16xf32>
    %c1_62 = arith.constant 1 : index
    %65 = memref.load %arg3[%c1_62] : memref<8xf32, #tpu.memory_space<smem>>
    %66 = vector.broadcast %65 : f32 to vector<16x16xf32>
    %67 = arith.addf %64, %66 : vector<16x16xf32>
    %cst_63 = arith.constant dense<0.000000e+00> : vector<16x32xf32>
    %68 = tpu.matmul %67, %2, %cst_63 {dimension_numbers = #tpu.dot_dimension_numbers<[1], [0], [0], [1], [0, 0, 1, 1], [], []>} : vector<16x16xf32>, vector<16x32xf32>, vector<16x32xf32> -> vector<16x32xf32>
    %cst_64 = arith.constant dense<0.000000e+00> : vector<16x32xf32>
    %69 = tpu.matmul %0, %68, %cst_64 {dimension_numbers = #tpu.dot_dimension_numbers<[1], [0], [0], [1], [0, 0, 1, 1], [], []>} : vector<16x16xf32>, vector<16x32xf32>, vector<16x32xf32> -> vector<16x32xf32>
    %cst_65 = arith.constant dense<0.000000e+00> : vector<16x32xf32>
    %70 = tpu.matmul %1, %68, %cst_65 {dimension_numbers = #tpu.dot_dimension_numbers<[1], [0], [0], [1], [0, 0, 1, 1], [], []>} : vector<16x16xf32>, vector<16x32xf32>, vector<16x32xf32> -> vector<16x32xf32>
    %cst_66 = arith.constant 0.000000e+00 : f32
    %71 = vector.broadcast %cst_66 : f32 to vector<16x32xf32>
    %72 = arith.maximumf %69, %71 : vector<16x32xf32>
    %c0_67 = arith.constant 0 : index
    %c1_68 = arith.constant 1 : index
    %c0_69 = arith.constant 0 : index
    %c0_70 = arith.constant 0 : index
    %73 = vector.load %arg7[%c0_67, %c1_68, %c0_69, %c0_70] : memref<2x8x16x64xf32, #tpu.memory_space<vmem>>, vector<1x1x16x32xf32>
    %74 = vector.shape_cast %73 : vector<1x1x16x32xf32> to vector<16x32xf32>
    %75 = vector.shape_cast %72 : vector<16x32xf32> to vector<1x1x16x32xf32>
    tpu.vector_store %arg7[%c0_67, %c1_68, %c0_69, %c0_70], %75 {strides = array<i32>} : memref<2x8x16x64xf32, #tpu.memory_space<vmem>>, vector<1x1x16x32xf32>,
    %cst_71 = arith.constant 0.000000e+00 : f32
    %76 = vector.broadcast %cst_71 : f32 to vector<16x32xf32>
    %77 = arith.maximumf %70, %76 : vector<16x32xf32>
    %c0_72 = arith.constant 0 : index
    %c1_73 = arith.constant 1 : index
    %c0_74 = arith.constant 0 : index
    %c32_75 = arith.constant 32 : index
    %78 = vector.load %arg7[%c0_72, %c1_73, %c0_74, %c32_75] : memref<2x8x16x64xf32, #tpu.memory_space<vmem>>, vector<1x1x16x32xf32>
    %79 = vector.shape_cast %78 : vector<1x1x16x32xf32> to vector<16x32xf32>
    %80 = vector.shape_cast %77 : vector<16x32xf32> to vector<1x1x16x32xf32>
    tpu.vector_store %arg7[%c0_72, %c1_73, %c0_74, %c32_75], %80 {strides = array<i32>} : memref<2x8x16x64xf32, #tpu.memory_space<vmem>>, vector<1x1x16x32xf32>,
    %c0_76 = arith.constant 0 : index
    %c0_77 = arith.constant 0 : index
    %c0_78 = arith.constant 0 : index
    %c0_79 = arith.constant 0 : index
    %81 = vector.load %arg1[%c0_76, %c0_77, %c0_78, %c0_79] : memref<2x4x16x16xf32, #tpu.memory_space<vmem>>, vector<1x1x16x16xf32>
    %82 = vector.shape_cast %81 : vector<1x1x16x16xf32> to vector<16x16xf32>
    %c2_80 = arith.constant 2 : index
    %c0_81 = arith.constant 0 : index
    %83 = memref.load %arg2[%c2_80, %c0_81] : memref<8x4xf32, #tpu.memory_space<smem>>
    %84 = vector.broadcast %83 : f32 to vector<16x16xf32>
    %85 = arith.mulf %82, %84 : vector<16x16xf32>
    %c0_82 = arith.constant 0 : index
    %c1_83 = arith.constant 1 : index
    %c0_84 = arith.constant 0 : index
    %c0_85 = arith.constant 0 : index
    %86 = vector.load %arg1[%c0_82, %c1_83, %c0_84, %c0_85] : memref<2x4x16x16xf32, #tpu.memory_space<vmem>>, vector<1x1x16x16xf32>
    %87 = vector.shape_cast %86 : vector<1x1x16x16xf32> to vector<16x16xf32>
    %c2_86 = arith.constant 2 : index
    %c1_87 = arith.constant 1 : index
    %88 = memref.load %arg2[%c2_86, %c1_87] : memref<8x4xf32, #tpu.memory_space<smem>>
    %89 = vector.broadcast %88 : f32 to vector<16x16xf32>
    %90 = arith.mulf %87, %89 : vector<16x16xf32>
    %91 = arith.addf %85, %90 : vector<16x16xf32>
    %c0_88 = arith.constant 0 : index
    %c2_89 = arith.constant 2 : index
    %c0_90 = arith.constant 0 : index
    %c0_91 = arith.constant 0 : index
    %92 = vector.load %arg1[%c0_88, %c2_89, %c0_90, %c0_91] : memref<2x4x16x16xf32, #tpu.memory_space<vmem>>, vector<1x1x16x16xf32>
    %93 = vector.shape_cast %92 : vector<1x1x16x16xf32> to vector<16x16xf32>
    %c2_92 = arith.constant 2 : index
    %c2_93 = arith.constant 2 : index
    %94 = memref.load %arg2[%c2_92, %c2_93] : memref<8x4xf32, #tpu.memory_space<smem>>
    %95 = vector.broadcast %94 : f32 to vector<16x16xf32>
    %96 = arith.mulf %93, %95 : vector<16x16xf32>
    %97 = arith.addf %91, %96 : vector<16x16xf32>
    %c0_94 = arith.constant 0 : index
    %c3_95 = arith.constant 3 : index
    %c0_96 = arith.constant 0 : index
    %c0_97 = arith.constant 0 : index
    %98 = vector.load %arg1[%c0_94, %c3_95, %c0_96, %c0_97] : memref<2x4x16x16xf32, #tpu.memory_space<vmem>>, vector<1x1x16x16xf32>
    %99 = vector.shape_cast %98 : vector<1x1x16x16xf32> to vector<16x16xf32>
    %c2_98 = arith.constant 2 : index
    %c3_99 = arith.constant 3 : index
    %100 = memref.load %arg2[%c2_98, %c3_99] : memref<8x4xf32, #tpu.memory_space<smem>>
    %101 = vector.broadcast %100 : f32 to vector<16x16xf32>
    %102 = arith.mulf %99, %101 : vector<16x16xf32>
    %103 = arith.addf %97, %102 : vector<16x16xf32>
    %c2_100 = arith.constant 2 : index
    %104 = memref.load %arg3[%c2_100] : memref<8xf32, #tpu.memory_space<smem>>
    %105 = vector.broadcast %104 : f32 to vector<16x16xf32>
    %106 = arith.addf %103, %105 : vector<16x16xf32>
    %cst_101 = arith.constant dense<0.000000e+00> : vector<16x32xf32>
    %107 = tpu.matmul %106, %2, %cst_101 {dimension_numbers = #tpu.dot_dimension_numbers<[1], [0], [0], [1], [0, 0, 1, 1], [], []>} : vector<16x16xf32>, vector<16x32xf32>, vector<16x32xf32> -> vector<16x32xf32>
    %cst_102 = arith.constant dense<0.000000e+00> : vector<16x32xf32>
    %108 = tpu.matmul %0, %107, %cst_102 {dimension_numbers = #tpu.dot_dimension_numbers<[1], [0], [0], [1], [0, 0, 1, 1], [], []>} : vector<16x16xf32>, vector<16x32xf32>, vector<16x32xf32> -> vector<16x32xf32>
    %cst_103 = arith.constant dense<0.000000e+00> : vector<16x32xf32>
    %109 = tpu.matmul %1, %107, %cst_103 {dimension_numbers = #tpu.dot_dimension_numbers<[1], [0], [0], [1], [0, 0, 1, 1], [], []>} : vector<16x16xf32>, vector<16x32xf32>, vector<16x32xf32> -> vector<16x32xf32>
    %cst_104 = arith.constant 0.000000e+00 : f32
    %110 = vector.broadcast %cst_104 : f32 to vector<16x32xf32>
    %111 = arith.maximumf %108, %110 : vector<16x32xf32>
    %c0_105 = arith.constant 0 : index
    %c2_106 = arith.constant 2 : index
    %c0_107 = arith.constant 0 : index
    %c0_108 = arith.constant 0 : index
    %112 = vector.load %arg7[%c0_105, %c2_106, %c0_107, %c0_108] : memref<2x8x16x64xf32, #tpu.memory_space<vmem>>, vector<1x1x16x32xf32>
    %113 = vector.shape_cast %112 : vector<1x1x16x32xf32> to vector<16x32xf32>
    %114 = vector.shape_cast %111 : vector<16x32xf32> to vector<1x1x16x32xf32>
    tpu.vector_store %arg7[%c0_105, %c2_106, %c0_107, %c0_108], %114 {strides = array<i32>} : memref<2x8x16x64xf32, #tpu.memory_space<vmem>>, vector<1x1x16x32xf32>,
    %cst_109 = arith.constant 0.000000e+00 : f32
    %115 = vector.broadcast %cst_109 : f32 to vector<16x32xf32>
    %116 = arith.maximumf %109, %115 : vector<16x32xf32>
    %c0_110 = arith.constant 0 : index
    %c2_111 = arith.constant 2 : index
    %c0_112 = arith.constant 0 : index
    %c32_113 = arith.constant 32 : index
    %117 = vector.load %arg7[%c0_110, %c2_111, %c0_112, %c32_113] : memref<2x8x16x64xf32, #tpu.memory_space<vmem>>, vector<1x1x16x32xf32>
    %118 = vector.shape_cast %117 : vector<1x1x16x32xf32> to vector<16x32xf32>
    %119 = vector.shape_cast %116 : vector<16x32xf32> to vector<1x1x16x32xf32>
    tpu.vector_store %arg7[%c0_110, %c2_111, %c0_112, %c32_113], %119 {strides = array<i32>} : memref<2x8x16x64xf32, #tpu.memory_space<vmem>>, vector<1x1x16x32xf32>,
    %c0_114 = arith.constant 0 : index
    %c0_115 = arith.constant 0 : index
    %c0_116 = arith.constant 0 : index
    %c0_117 = arith.constant 0 : index
    %120 = vector.load %arg1[%c0_114, %c0_115, %c0_116, %c0_117] : memref<2x4x16x16xf32, #tpu.memory_space<vmem>>, vector<1x1x16x16xf32>
    %121 = vector.shape_cast %120 : vector<1x1x16x16xf32> to vector<16x16xf32>
    %c3_118 = arith.constant 3 : index
    %c0_119 = arith.constant 0 : index
    %122 = memref.load %arg2[%c3_118, %c0_119] : memref<8x4xf32, #tpu.memory_space<smem>>
    %123 = vector.broadcast %122 : f32 to vector<16x16xf32>
    %124 = arith.mulf %121, %123 : vector<16x16xf32>
    %c0_120 = arith.constant 0 : index
    %c1_121 = arith.constant 1 : index
    %c0_122 = arith.constant 0 : index
    %c0_123 = arith.constant 0 : index
    %125 = vector.load %arg1[%c0_120, %c1_121, %c0_122, %c0_123] : memref<2x4x16x16xf32, #tpu.memory_space<vmem>>, vector<1x1x16x16xf32>
    %126 = vector.shape_cast %125 : vector<1x1x16x16xf32> to vector<16x16xf32>
    %c3_124 = arith.constant 3 : index
    %c1_125 = arith.constant 1 : index
    %127 = memref.load %arg2[%c3_124, %c1_125] : memref<8x4xf32, #tpu.memory_space<smem>>
    %128 = vector.broadcast %127 : f32 to vector<16x16xf32>
    %129 = arith.mulf %126, %128 : vector<16x16xf32>
    %130 = arith.addf %124, %129 : vector<16x16xf32>
    %c0_126 = arith.constant 0 : index
    %c2_127 = arith.constant 2 : index
    %c0_128 = arith.constant 0 : index
    %c0_129 = arith.constant 0 : index
    %131 = vector.load %arg1[%c0_126, %c2_127, %c0_128, %c0_129] : memref<2x4x16x16xf32, #tpu.memory_space<vmem>>, vector<1x1x16x16xf32>
    %132 = vector.shape_cast %131 : vector<1x1x16x16xf32> to vector<16x16xf32>
    %c3_130 = arith.constant 3 : index
    %c2_131 = arith.constant 2 : index
    %133 = memref.load %arg2[%c3_130, %c2_131] : memref<8x4xf32, #tpu.memory_space<smem>>
    %134 = vector.broadcast %133 : f32 to vector<16x16xf32>
    %135 = arith.mulf %132, %134 : vector<16x16xf32>
    %136 = arith.addf %130, %135 : vector<16x16xf32>
    %c0_132 = arith.constant 0 : index
    %c3_133 = arith.constant 3 : index
    %c0_134 = arith.constant 0 : index
    %c0_135 = arith.constant 0 : index
    %137 = vector.load %arg1[%c0_132, %c3_133, %c0_134, %c0_135] : memref<2x4x16x16xf32, #tpu.memory_space<vmem>>, vector<1x1x16x16xf32>
    %138 = vector.shape_cast %137 : vector<1x1x16x16xf32> to vector<16x16xf32>
    %c3_136 = arith.constant 3 : index
    %c3_137 = arith.constant 3 : index
    %139 = memref.load %arg2[%c3_136, %c3_137] : memref<8x4xf32, #tpu.memory_space<smem>>
    %140 = vector.broadcast %139 : f32 to vector<16x16xf32>
    %141 = arith.mulf %138, %140 : vector<16x16xf32>
    %142 = arith.addf %136, %141 : vector<16x16xf32>
    %c3_138 = arith.constant 3 : index
    %143 = memref.load %arg3[%c3_138] : memref<8xf32, #tpu.memory_space<smem>>
    %144 = vector.broadcast %143 : f32 to vector<16x16xf32>
    %145 = arith.addf %142, %144 : vector<16x16xf32>
    %cst_139 = arith.constant dense<0.000000e+00> : vector<16x32xf32>
    %146 = tpu.matmul %145, %2, %cst_139 {dimension_numbers = #tpu.dot_dimension_numbers<[1], [0], [0], [1], [0, 0, 1, 1], [], []>} : vector<16x16xf32>, vector<16x32xf32>, vector<16x32xf32> -> vector<16x32xf32>
    %cst_140 = arith.constant dense<0.000000e+00> : vector<16x32xf32>
    %147 = tpu.matmul %0, %146, %cst_140 {dimension_numbers = #tpu.dot_dimension_numbers<[1], [0], [0], [1], [0, 0, 1, 1], [], []>} : vector<16x16xf32>, vector<16x32xf32>, vector<16x32xf32> -> vector<16x32xf32>
    %cst_141 = arith.constant dense<0.000000e+00> : vector<16x32xf32>
    %148 = tpu.matmul %1, %146, %cst_141 {dimension_numbers = #tpu.dot_dimension_numbers<[1], [0], [0], [1], [0, 0, 1, 1], [], []>} : vector<16x16xf32>, vector<16x32xf32>, vector<16x32xf32> -> vector<16x32xf32>
    %cst_142 = arith.constant 0.000000e+00 : f32
    %149 = vector.broadcast %cst_142 : f32 to vector<16x32xf32>
    %150 = arith.maximumf %147, %149 : vector<16x32xf32>
    %c0_143 = arith.constant 0 : index
    %c3_144 = arith.constant 3 : index
    %c0_145 = arith.constant 0 : index
    %c0_146 = arith.constant 0 : index
    %151 = vector.load %arg7[%c0_143, %c3_144, %c0_145, %c0_146] : memref<2x8x16x64xf32, #tpu.memory_space<vmem>>, vector<1x1x16x32xf32>
    %152 = vector.shape_cast %151 : vector<1x1x16x32xf32> to vector<16x32xf32>
    %153 = vector.shape_cast %150 : vector<16x32xf32> to vector<1x1x16x32xf32>
    tpu.vector_store %arg7[%c0_143, %c3_144, %c0_145, %c0_146], %153 {strides = array<i32>} : memref<2x8x16x64xf32, #tpu.memory_space<vmem>>, vector<1x1x16x32xf32>,
    %cst_147 = arith.constant 0.000000e+00 : f32
    %154 = vector.broadcast %cst_147 : f32 to vector<16x32xf32>
    %155 = arith.maximumf %148, %154 : vector<16x32xf32>
    %c0_148 = arith.constant 0 : index
    %c3_149 = arith.constant 3 : index
    %c0_150 = arith.constant 0 : index
    %c32_151 = arith.constant 32 : index
    %156 = vector.load %arg7[%c0_148, %c3_149, %c0_150, %c32_151] : memref<2x8x16x64xf32, #tpu.memory_space<vmem>>, vector<1x1x16x32xf32>
    %157 = vector.shape_cast %156 : vector<1x1x16x32xf32> to vector<16x32xf32>
    %158 = vector.shape_cast %155 : vector<16x32xf32> to vector<1x1x16x32xf32>
    tpu.vector_store %arg7[%c0_148, %c3_149, %c0_150, %c32_151], %158 {strides = array<i32>} : memref<2x8x16x64xf32, #tpu.memory_space<vmem>>, vector<1x1x16x32xf32>,
    %c0_152 = arith.constant 0 : index
    %c0_153 = arith.constant 0 : index
    %c0_154 = arith.constant 0 : index
    %c0_155 = arith.constant 0 : index
    %159 = vector.load %arg1[%c0_152, %c0_153, %c0_154, %c0_155] : memref<2x4x16x16xf32, #tpu.memory_space<vmem>>, vector<1x1x16x16xf32>
    %160 = vector.shape_cast %159 : vector<1x1x16x16xf32> to vector<16x16xf32>
    %c4 = arith.constant 4 : index
    %c0_156 = arith.constant 0 : index
    %161 = memref.load %arg2[%c4, %c0_156] : memref<8x4xf32, #tpu.memory_space<smem>>
    %162 = vector.broadcast %161 : f32 to vector<16x16xf32>
    %163 = arith.mulf %160, %162 : vector<16x16xf32>
    %c0_157 = arith.constant 0 : index
    %c1_158 = arith.constant 1 : index
    %c0_159 = arith.constant 0 : index
    %c0_160 = arith.constant 0 : index
    %164 = vector.load %arg1[%c0_157, %c1_158, %c0_159, %c0_160] : memref<2x4x16x16xf32, #tpu.memory_space<vmem>>, vector<1x1x16x16xf32>
    %165 = vector.shape_cast %164 : vector<1x1x16x16xf32> to vector<16x16xf32>
    %c4_161 = arith.constant 4 : index
    %c1_162 = arith.constant 1 : index
    %166 = memref.load %arg2[%c4_161, %c1_162] : memref<8x4xf32, #tpu.memory_space<smem>>
    %167 = vector.broadcast %166 : f32 to vector<16x16xf32>
    %168 = arith.mulf %165, %167 : vector<16x16xf32>
    %169 = arith.addf %163, %168 : vector<16x16xf32>
    %c0_163 = arith.constant 0 : index
    %c2_164 = arith.constant 2 : index
    %c0_165 = arith.constant 0 : index
    %c0_166 = arith.constant 0 : index
    %170 = vector.load %arg1[%c0_163, %c2_164, %c0_165, %c0_166] : memref<2x4x16x16xf32, #tpu.memory_space<vmem>>, vector<1x1x16x16xf32>
    %171 = vector.shape_cast %170 : vector<1x1x16x16xf32> to vector<16x16xf32>
    %c4_167 = arith.constant 4 : index
    %c2_168 = arith.constant 2 : index
    %172 = memref.load %arg2[%c4_167, %c2_168] : memref<8x4xf32, #tpu.memory_space<smem>>
    %173 = vector.broadcast %172 : f32 to vector<16x16xf32>
    %174 = arith.mulf %171, %173 : vector<16x16xf32>
    %175 = arith.addf %169, %174 : vector<16x16xf32>
    %c0_169 = arith.constant 0 : index
    %c3_170 = arith.constant 3 : index
    %c0_171 = arith.constant 0 : index
    %c0_172 = arith.constant 0 : index
    %176 = vector.load %arg1[%c0_169, %c3_170, %c0_171, %c0_172] : memref<2x4x16x16xf32, #tpu.memory_space<vmem>>, vector<1x1x16x16xf32>
    %177 = vector.shape_cast %176 : vector<1x1x16x16xf32> to vector<16x16xf32>
    %c4_173 = arith.constant 4 : index
    %c3_174 = arith.constant 3 : index
    %178 = memref.load %arg2[%c4_173, %c3_174] : memref<8x4xf32, #tpu.memory_space<smem>>
    %179 = vector.broadcast %178 : f32 to vector<16x16xf32>
    %180 = arith.mulf %177, %179 : vector<16x16xf32>
    %181 = arith.addf %175, %180 : vector<16x16xf32>
    %c4_175 = arith.constant 4 : index
    %182 = memref.load %arg3[%c4_175] : memref<8xf32, #tpu.memory_space<smem>>
    %183 = vector.broadcast %182 : f32 to vector<16x16xf32>
    %184 = arith.addf %181, %183 : vector<16x16xf32>
    %cst_176 = arith.constant dense<0.000000e+00> : vector<16x32xf32>
    %185 = tpu.matmul %184, %2, %cst_176 {dimension_numbers = #tpu.dot_dimension_numbers<[1], [0], [0], [1], [0, 0, 1, 1], [], []>} : vector<16x16xf32>, vector<16x32xf32>, vector<16x32xf32> -> vector<16x32xf32>
    %cst_177 = arith.constant dense<0.000000e+00> : vector<16x32xf32>
    %186 = tpu.matmul %0, %185, %cst_177 {dimension_numbers = #tpu.dot_dimension_numbers<[1], [0], [0], [1], [0, 0, 1, 1], [], []>} : vector<16x16xf32>, vector<16x32xf32>, vector<16x32xf32> -> vector<16x32xf32>
    %cst_178 = arith.constant dense<0.000000e+00> : vector<16x32xf32>
    %187 = tpu.matmul %1, %185, %cst_178 {dimension_numbers = #tpu.dot_dimension_numbers<[1], [0], [0], [1], [0, 0, 1, 1], [], []>} : vector<16x16xf32>, vector<16x32xf32>, vector<16x32xf32> -> vector<16x32xf32>
    %cst_179 = arith.constant 0.000000e+00 : f32
    %188 = vector.broadcast %cst_179 : f32 to vector<16x32xf32>
    %189 = arith.maximumf %186, %188 : vector<16x32xf32>
    %c0_180 = arith.constant 0 : index
    %c4_181 = arith.constant 4 : index
    %c0_182 = arith.constant 0 : index
    %c0_183 = arith.constant 0 : index
    %190 = vector.load %arg7[%c0_180, %c4_181, %c0_182, %c0_183] : memref<2x8x16x64xf32, #tpu.memory_space<vmem>>, vector<1x1x16x32xf32>
    %191 = vector.shape_cast %190 : vector<1x1x16x32xf32> to vector<16x32xf32>
    %192 = vector.shape_cast %189 : vector<16x32xf32> to vector<1x1x16x32xf32>
    tpu.vector_store %arg7[%c0_180, %c4_181, %c0_182, %c0_183], %192 {strides = array<i32>} : memref<2x8x16x64xf32, #tpu.memory_space<vmem>>, vector<1x1x16x32xf32>,
    %cst_184 = arith.constant 0.000000e+00 : f32
    %193 = vector.broadcast %cst_184 : f32 to vector<16x32xf32>
    %194 = arith.maximumf %187, %193 : vector<16x32xf32>
    %c0_185 = arith.constant 0 : index
    %c4_186 = arith.constant 4 : index
    %c0_187 = arith.constant 0 : index
    %c32_188 = arith.constant 32 : index
    %195 = vector.load %arg7[%c0_185, %c4_186, %c0_187, %c32_188] : memref<2x8x16x64xf32, #tpu.memory_space<vmem>>, vector<1x1x16x32xf32>
    %196 = vector.shape_cast %195 : vector<1x1x16x32xf32> to vector<16x32xf32>
    %197 = vector.shape_cast %194 : vector<16x32xf32> to vector<1x1x16x32xf32>
    tpu.vector_store %arg7[%c0_185, %c4_186, %c0_187, %c32_188], %197 {strides = array<i32>} : memref<2x8x16x64xf32, #tpu.memory_space<vmem>>, vector<1x1x16x32xf32>,
    %c0_189 = arith.constant 0 : index
    %c0_190 = arith.constant 0 : index
    %c0_191 = arith.constant 0 : index
    %c0_192 = arith.constant 0 : index
    %198 = vector.load %arg1[%c0_189, %c0_190, %c0_191, %c0_192] : memref<2x4x16x16xf32, #tpu.memory_space<vmem>>, vector<1x1x16x16xf32>
    %199 = vector.shape_cast %198 : vector<1x1x16x16xf32> to vector<16x16xf32>
    %c5 = arith.constant 5 : index
    %c0_193 = arith.constant 0 : index
    %200 = memref.load %arg2[%c5, %c0_193] : memref<8x4xf32, #tpu.memory_space<smem>>
    %201 = vector.broadcast %200 : f32 to vector<16x16xf32>
    %202 = arith.mulf %199, %201 : vector<16x16xf32>
    %c0_194 = arith.constant 0 : index
    %c1_195 = arith.constant 1 : index
    %c0_196 = arith.constant 0 : index
    %c0_197 = arith.constant 0 : index
    %203 = vector.load %arg1[%c0_194, %c1_195, %c0_196, %c0_197] : memref<2x4x16x16xf32, #tpu.memory_space<vmem>>, vector<1x1x16x16xf32>
    %204 = vector.shape_cast %203 : vector<1x1x16x16xf32> to vector<16x16xf32>
    %c5_198 = arith.constant 5 : index
    %c1_199 = arith.constant 1 : index
    %205 = memref.load %arg2[%c5_198, %c1_199] : memref<8x4xf32, #tpu.memory_space<smem>>
    %206 = vector.broadcast %205 : f32 to vector<16x16xf32>
    %207 = arith.mulf %204, %206 : vector<16x16xf32>
    %208 = arith.addf %202, %207 : vector<16x16xf32>
    %c0_200 = arith.constant 0 : index
    %c2_201 = arith.constant 2 : index
    %c0_202 = arith.constant 0 : index
    %c0_203 = arith.constant 0 : index
    %209 = vector.load %arg1[%c0_200, %c2_201, %c0_202, %c0_203] : memref<2x4x16x16xf32, #tpu.memory_space<vmem>>, vector<1x1x16x16xf32>
    %210 = vector.shape_cast %209 : vector<1x1x16x16xf32> to vector<16x16xf32>
    %c5_204 = arith.constant 5 : index
    %c2_205 = arith.constant 2 : index
    %211 = memref.load %arg2[%c5_204, %c2_205] : memref<8x4xf32, #tpu.memory_space<smem>>
    %212 = vector.broadcast %211 : f32 to vector<16x16xf32>
    %213 = arith.mulf %210, %212 : vector<16x16xf32>
    %214 = arith.addf %208, %213 : vector<16x16xf32>
    %c0_206 = arith.constant 0 : index
    %c3_207 = arith.constant 3 : index
    %c0_208 = arith.constant 0 : index
    %c0_209 = arith.constant 0 : index
    %215 = vector.load %arg1[%c0_206, %c3_207, %c0_208, %c0_209] : memref<2x4x16x16xf32, #tpu.memory_space<vmem>>, vector<1x1x16x16xf32>
    %216 = vector.shape_cast %215 : vector<1x1x16x16xf32> to vector<16x16xf32>
    %c5_210 = arith.constant 5 : index
    %c3_211 = arith.constant 3 : index
    %217 = memref.load %arg2[%c5_210, %c3_211] : memref<8x4xf32, #tpu.memory_space<smem>>
    %218 = vector.broadcast %217 : f32 to vector<16x16xf32>
    %219 = arith.mulf %216, %218 : vector<16x16xf32>
    %220 = arith.addf %214, %219 : vector<16x16xf32>
    %c5_212 = arith.constant 5 : index
    %221 = memref.load %arg3[%c5_212] : memref<8xf32, #tpu.memory_space<smem>>
    %222 = vector.broadcast %221 : f32 to vector<16x16xf32>
    %223 = arith.addf %220, %222 : vector<16x16xf32>
    %cst_213 = arith.constant dense<0.000000e+00> : vector<16x32xf32>
    %224 = tpu.matmul %223, %2, %cst_213 {dimension_numbers = #tpu.dot_dimension_numbers<[1], [0], [0], [1], [0, 0, 1, 1], [], []>} : vector<16x16xf32>, vector<16x32xf32>, vector<16x32xf32> -> vector<16x32xf32>
    %cst_214 = arith.constant dense<0.000000e+00> : vector<16x32xf32>
    %225 = tpu.matmul %0, %224, %cst_214 {dimension_numbers = #tpu.dot_dimension_numbers<[1], [0], [0], [1], [0, 0, 1, 1], [], []>} : vector<16x16xf32>, vector<16x32xf32>, vector<16x32xf32> -> vector<16x32xf32>
    %cst_215 = arith.constant dense<0.000000e+00> : vector<16x32xf32>
    %226 = tpu.matmul %1, %224, %cst_215 {dimension_numbers = #tpu.dot_dimension_numbers<[1], [0], [0], [1], [0, 0, 1, 1], [], []>} : vector<16x16xf32>, vector<16x32xf32>, vector<16x32xf32> -> vector<16x32xf32>
    %cst_216 = arith.constant 0.000000e+00 : f32
    %227 = vector.broadcast %cst_216 : f32 to vector<16x32xf32>
    %228 = arith.maximumf %225, %227 : vector<16x32xf32>
    %c0_217 = arith.constant 0 : index
    %c5_218 = arith.constant 5 : index
    %c0_219 = arith.constant 0 : index
    %c0_220 = arith.constant 0 : index
    %229 = vector.load %arg7[%c0_217, %c5_218, %c0_219, %c0_220] : memref<2x8x16x64xf32, #tpu.memory_space<vmem>>, vector<1x1x16x32xf32>
    %230 = vector.shape_cast %229 : vector<1x1x16x32xf32> to vector<16x32xf32>
    %231 = vector.shape_cast %228 : vector<16x32xf32> to vector<1x1x16x32xf32>
    tpu.vector_store %arg7[%c0_217, %c5_218, %c0_219, %c0_220], %231 {strides = array<i32>} : memref<2x8x16x64xf32, #tpu.memory_space<vmem>>, vector<1x1x16x32xf32>,
    %cst_221 = arith.constant 0.000000e+00 : f32
    %232 = vector.broadcast %cst_221 : f32 to vector<16x32xf32>
    %233 = arith.maximumf %226, %232 : vector<16x32xf32>
    %c0_222 = arith.constant 0 : index
    %c5_223 = arith.constant 5 : index
    %c0_224 = arith.constant 0 : index
    %c32_225 = arith.constant 32 : index
    %234 = vector.load %arg7[%c0_222, %c5_223, %c0_224, %c32_225] : memref<2x8x16x64xf32, #tpu.memory_space<vmem>>, vector<1x1x16x32xf32>
    %235 = vector.shape_cast %234 : vector<1x1x16x32xf32> to vector<16x32xf32>
    %236 = vector.shape_cast %233 : vector<16x32xf32> to vector<1x1x16x32xf32>
    tpu.vector_store %arg7[%c0_222, %c5_223, %c0_224, %c32_225], %236 {strides = array<i32>} : memref<2x8x16x64xf32, #tpu.memory_space<vmem>>, vector<1x1x16x32xf32>,
    %c0_226 = arith.constant 0 : index
    %c0_227 = arith.constant 0 : index
    %c0_228 = arith.constant 0 : index
    %c0_229 = arith.constant 0 : index
    %237 = vector.load %arg1[%c0_226, %c0_227, %c0_228, %c0_229] : memref<2x4x16x16xf32, #tpu.memory_space<vmem>>, vector<1x1x16x16xf32>
    %238 = vector.shape_cast %237 : vector<1x1x16x16xf32> to vector<16x16xf32>
    %c6 = arith.constant 6 : index
    %c0_230 = arith.constant 0 : index
    %239 = memref.load %arg2[%c6, %c0_230] : memref<8x4xf32, #tpu.memory_space<smem>>
    %240 = vector.broadcast %239 : f32 to vector<16x16xf32>
    %241 = arith.mulf %238, %240 : vector<16x16xf32>
    %c0_231 = arith.constant 0 : index
    %c1_232 = arith.constant 1 : index
    %c0_233 = arith.constant 0 : index
    %c0_234 = arith.constant 0 : index
    %242 = vector.load %arg1[%c0_231, %c1_232, %c0_233, %c0_234] : memref<2x4x16x16xf32, #tpu.memory_space<vmem>>, vector<1x1x16x16xf32>
    %243 = vector.shape_cast %242 : vector<1x1x16x16xf32> to vector<16x16xf32>
    %c6_235 = arith.constant 6 : index
    %c1_236 = arith.constant 1 : index
    %244 = memref.load %arg2[%c6_235, %c1_236] : memref<8x4xf32, #tpu.memory_space<smem>>
    %245 = vector.broadcast %244 : f32 to vector<16x16xf32>
    %246 = arith.mulf %243, %245 : vector<16x16xf32>
    %247 = arith.addf %241, %246 : vector<16x16xf32>
    %c0_237 = arith.constant 0 : index
    %c2_238 = arith.constant 2 : index
    %c0_239 = arith.constant 0 : index
    %c0_240 = arith.constant 0 : index
    %248 = vector.load %arg1[%c0_237, %c2_238, %c0_239, %c0_240] : memref<2x4x16x16xf32, #tpu.memory_space<vmem>>, vector<1x1x16x16xf32>
    %249 = vector.shape_cast %248 : vector<1x1x16x16xf32> to vector<16x16xf32>
    %c6_241 = arith.constant 6 : index
    %c2_242 = arith.constant 2 : index
    %250 = memref.load %arg2[%c6_241, %c2_242] : memref<8x4xf32, #tpu.memory_space<smem>>
    %251 = vector.broadcast %250 : f32 to vector<16x16xf32>
    %252 = arith.mulf %249, %251 : vector<16x16xf32>
    %253 = arith.addf %247, %252 : vector<16x16xf32>
    %c0_243 = arith.constant 0 : index
    %c3_244 = arith.constant 3 : index
    %c0_245 = arith.constant 0 : index
    %c0_246 = arith.constant 0 : index
    %254 = vector.load %arg1[%c0_243, %c3_244, %c0_245, %c0_246] : memref<2x4x16x16xf32, #tpu.memory_space<vmem>>, vector<1x1x16x16xf32>
    %255 = vector.shape_cast %254 : vector<1x1x16x16xf32> to vector<16x16xf32>
    %c6_247 = arith.constant 6 : index
    %c3_248 = arith.constant 3 : index
    %256 = memref.load %arg2[%c6_247, %c3_248] : memref<8x4xf32, #tpu.memory_space<smem>>
    %257 = vector.broadcast %256 : f32 to vector<16x16xf32>
    %258 = arith.mulf %255, %257 : vector<16x16xf32>
    %259 = arith.addf %253, %258 : vector<16x16xf32>
    %c6_249 = arith.constant 6 : index
    %260 = memref.load %arg3[%c6_249] : memref<8xf32, #tpu.memory_space<smem>>
    %261 = vector.broadcast %260 : f32 to vector<16x16xf32>
    %262 = arith.addf %259, %261 : vector<16x16xf32>
    %cst_250 = arith.constant dense<0.000000e+00> : vector<16x32xf32>
    %263 = tpu.matmul %262, %2, %cst_250 {dimension_numbers = #tpu.dot_dimension_numbers<[1], [0], [0], [1], [0, 0, 1, 1], [], []>} : vector<16x16xf32>, vector<16x32xf32>, vector<16x32xf32> -> vector<16x32xf32>
    %cst_251 = arith.constant dense<0.000000e+00> : vector<16x32xf32>
    %264 = tpu.matmul %0, %263, %cst_251 {dimension_numbers = #tpu.dot_dimension_numbers<[1], [0], [0], [1], [0, 0, 1, 1], [], []>} : vector<16x16xf32>, vector<16x32xf32>, vector<16x32xf32> -> vector<16x32xf32>
    %cst_252 = arith.constant dense<0.000000e+00> : vector<16x32xf32>
    %265 = tpu.matmul %1, %263, %cst_252 {dimension_numbers = #tpu.dot_dimension_numbers<[1], [0], [0], [1], [0, 0, 1, 1], [], []>} : vector<16x16xf32>, vector<16x32xf32>, vector<16x32xf32> -> vector<16x32xf32>
    %cst_253 = arith.constant 0.000000e+00 : f32
    %266 = vector.broadcast %cst_253 : f32 to vector<16x32xf32>
    %267 = arith.maximumf %264, %266 : vector<16x32xf32>
    %c0_254 = arith.constant 0 : index
    %c6_255 = arith.constant 6 : index
    %c0_256 = arith.constant 0 : index
    %c0_257 = arith.constant 0 : index
    %268 = vector.load %arg7[%c0_254, %c6_255, %c0_256, %c0_257] : memref<2x8x16x64xf32, #tpu.memory_space<vmem>>, vector<1x1x16x32xf32>
    %269 = vector.shape_cast %268 : vector<1x1x16x32xf32> to vector<16x32xf32>
    %270 = vector.shape_cast %267 : vector<16x32xf32> to vector<1x1x16x32xf32>
    tpu.vector_store %arg7[%c0_254, %c6_255, %c0_256, %c0_257], %270 {strides = array<i32>} : memref<2x8x16x64xf32, #tpu.memory_space<vmem>>, vector<1x1x16x32xf32>,
    %cst_258 = arith.constant 0.000000e+00 : f32
    %271 = vector.broadcast %cst_258 : f32 to vector<16x32xf32>
    %272 = arith.maximumf %265, %271 : vector<16x32xf32>
    %c0_259 = arith.constant 0 : index
    %c6_260 = arith.constant 6 : index
    %c0_261 = arith.constant 0 : index
    %c32_262 = arith.constant 32 : index
    %273 = vector.load %arg7[%c0_259, %c6_260, %c0_261, %c32_262] : memref<2x8x16x64xf32, #tpu.memory_space<vmem>>, vector<1x1x16x32xf32>
    %274 = vector.shape_cast %273 : vector<1x1x16x32xf32> to vector<16x32xf32>
    %275 = vector.shape_cast %272 : vector<16x32xf32> to vector<1x1x16x32xf32>
    tpu.vector_store %arg7[%c0_259, %c6_260, %c0_261, %c32_262], %275 {strides = array<i32>} : memref<2x8x16x64xf32, #tpu.memory_space<vmem>>, vector<1x1x16x32xf32>,
    %c0_263 = arith.constant 0 : index
    %c0_264 = arith.constant 0 : index
    %c0_265 = arith.constant 0 : index
    %c0_266 = arith.constant 0 : index
    %276 = vector.load %arg1[%c0_263, %c0_264, %c0_265, %c0_266] : memref<2x4x16x16xf32, #tpu.memory_space<vmem>>, vector<1x1x16x16xf32>
    %277 = vector.shape_cast %276 : vector<1x1x16x16xf32> to vector<16x16xf32>
    %c7 = arith.constant 7 : index
    %c0_267 = arith.constant 0 : index
    %278 = memref.load %arg2[%c7, %c0_267] : memref<8x4xf32, #tpu.memory_space<smem>>
    %279 = vector.broadcast %278 : f32 to vector<16x16xf32>
    %280 = arith.mulf %277, %279 : vector<16x16xf32>
    %c0_268 = arith.constant 0 : index
    %c1_269 = arith.constant 1 : index
    %c0_270 = arith.constant 0 : index
    %c0_271 = arith.constant 0 : index
    %281 = vector.load %arg1[%c0_268, %c1_269, %c0_270, %c0_271] : memref<2x4x16x16xf32, #tpu.memory_space<vmem>>, vector<1x1x16x16xf32>
    %282 = vector.shape_cast %281 : vector<1x1x16x16xf32> to vector<16x16xf32>
    %c7_272 = arith.constant 7 : index
    %c1_273 = arith.constant 1 : index
    %283 = memref.load %arg2[%c7_272, %c1_273] : memref<8x4xf32, #tpu.memory_space<smem>>
    %284 = vector.broadcast %283 : f32 to vector<16x16xf32>
    %285 = arith.mulf %282, %284 : vector<16x16xf32>
    %286 = arith.addf %280, %285 : vector<16x16xf32>
    %c0_274 = arith.constant 0 : index
    %c2_275 = arith.constant 2 : index
    %c0_276 = arith.constant 0 : index
    %c0_277 = arith.constant 0 : index
    %287 = vector.load %arg1[%c0_274, %c2_275, %c0_276, %c0_277] : memref<2x4x16x16xf32, #tpu.memory_space<vmem>>, vector<1x1x16x16xf32>
    %288 = vector.shape_cast %287 : vector<1x1x16x16xf32> to vector<16x16xf32>
    %c7_278 = arith.constant 7 : index
    %c2_279 = arith.constant 2 : index
    %289 = memref.load %arg2[%c7_278, %c2_279] : memref<8x4xf32, #tpu.memory_space<smem>>
    %290 = vector.broadcast %289 : f32 to vector<16x16xf32>
    %291 = arith.mulf %288, %290 : vector<16x16xf32>
    %292 = arith.addf %286, %291 : vector<16x16xf32>
    %c0_280 = arith.constant 0 : index
    %c3_281 = arith.constant 3 : index
    %c0_282 = arith.constant 0 : index
    %c0_283 = arith.constant 0 : index
    %293 = vector.load %arg1[%c0_280, %c3_281, %c0_282, %c0_283] : memref<2x4x16x16xf32, #tpu.memory_space<vmem>>, vector<1x1x16x16xf32>
    %294 = vector.shape_cast %293 : vector<1x1x16x16xf32> to vector<16x16xf32>
    %c7_284 = arith.constant 7 : index
    %c3_285 = arith.constant 3 : index
    %295 = memref.load %arg2[%c7_284, %c3_285] : memref<8x4xf32, #tpu.memory_space<smem>>
    %296 = vector.broadcast %295 : f32 to vector<16x16xf32>
    %297 = arith.mulf %294, %296 : vector<16x16xf32>
    %298 = arith.addf %292, %297 : vector<16x16xf32>
    %c7_286 = arith.constant 7 : index
    %299 = memref.load %arg3[%c7_286] : memref<8xf32, #tpu.memory_space<smem>>
    %300 = vector.broadcast %299 : f32 to vector<16x16xf32>
    %301 = arith.addf %298, %300 : vector<16x16xf32>
    %cst_287 = arith.constant dense<0.000000e+00> : vector<16x32xf32>
    %302 = tpu.matmul %301, %2, %cst_287 {dimension_numbers = #tpu.dot_dimension_numbers<[1], [0], [0], [1], [0, 0, 1, 1], [], []>} : vector<16x16xf32>, vector<16x32xf32>, vector<16x32xf32> -> vector<16x32xf32>
    %cst_288 = arith.constant dense<0.000000e+00> : vector<16x32xf32>
    %303 = tpu.matmul %0, %302, %cst_288 {dimension_numbers = #tpu.dot_dimension_numbers<[1], [0], [0], [1], [0, 0, 1, 1], [], []>} : vector<16x16xf32>, vector<16x32xf32>, vector<16x32xf32> -> vector<16x32xf32>
    %cst_289 = arith.constant dense<0.000000e+00> : vector<16x32xf32>
    %304 = tpu.matmul %1, %302, %cst_289 {dimension_numbers = #tpu.dot_dimension_numbers<[1], [0], [0], [1], [0, 0, 1, 1], [], []>} : vector<16x16xf32>, vector<16x32xf32>, vector<16x32xf32> -> vector<16x32xf32>
    %cst_290 = arith.constant 0.000000e+00 : f32
    %305 = vector.broadcast %cst_290 : f32 to vector<16x32xf32>
    %306 = arith.maximumf %303, %305 : vector<16x32xf32>
    %c0_291 = arith.constant 0 : index
    %c7_292 = arith.constant 7 : index
    %c0_293 = arith.constant 0 : index
    %c0_294 = arith.constant 0 : index
    %307 = vector.load %arg7[%c0_291, %c7_292, %c0_293, %c0_294] : memref<2x8x16x64xf32, #tpu.memory_space<vmem>>, vector<1x1x16x32xf32>
    %308 = vector.shape_cast %307 : vector<1x1x16x32xf32> to vector<16x32xf32>
    %309 = vector.shape_cast %306 : vector<16x32xf32> to vector<1x1x16x32xf32>
    tpu.vector_store %arg7[%c0_291, %c7_292, %c0_293, %c0_294], %309 {strides = array<i32>} : memref<2x8x16x64xf32, #tpu.memory_space<vmem>>, vector<1x1x16x32xf32>,
    %cst_295 = arith.constant 0.000000e+00 : f32
    %310 = vector.broadcast %cst_295 : f32 to vector<16x32xf32>
    %311 = arith.maximumf %304, %310 : vector<16x32xf32>
    %c0_296 = arith.constant 0 : index
    %c7_297 = arith.constant 7 : index
    %c0_298 = arith.constant 0 : index
    %c32_299 = arith.constant 32 : index
    %312 = vector.load %arg7[%c0_296, %c7_297, %c0_298, %c32_299] : memref<2x8x16x64xf32, #tpu.memory_space<vmem>>, vector<1x1x16x32xf32>
    %313 = vector.shape_cast %312 : vector<1x1x16x32xf32> to vector<16x32xf32>
    %314 = vector.shape_cast %311 : vector<16x32xf32> to vector<1x1x16x32xf32>
    tpu.vector_store %arg7[%c0_296, %c7_297, %c0_298, %c32_299], %314 {strides = array<i32>} : memref<2x8x16x64xf32, #tpu.memory_space<vmem>>, vector<1x1x16x32xf32>,
    %c1_300 = arith.constant 1 : index
    %c0_301 = arith.constant 0 : index
    %c0_302 = arith.constant 0 : index
    %c0_303 = arith.constant 0 : index
    %315 = vector.load %arg1[%c1_300, %c0_301, %c0_302, %c0_303] : memref<2x4x16x16xf32, #tpu.memory_space<vmem>>, vector<1x1x16x16xf32>
    %316 = vector.shape_cast %315 : vector<1x1x16x16xf32> to vector<16x16xf32>
    %c0_304 = arith.constant 0 : index
    %c0_305 = arith.constant 0 : index
    %317 = memref.load %arg2[%c0_304, %c0_305] : memref<8x4xf32, #tpu.memory_space<smem>>
    %318 = vector.broadcast %317 : f32 to vector<16x16xf32>
    %319 = arith.mulf %316, %318 : vector<16x16xf32>
    %c1_306 = arith.constant 1 : index
    %c1_307 = arith.constant 1 : index
    %c0_308 = arith.constant 0 : index
    %c0_309 = arith.constant 0 : index
    %320 = vector.load %arg1[%c1_306, %c1_307, %c0_308, %c0_309] : memref<2x4x16x16xf32, #tpu.memory_space<vmem>>, vector<1x1x16x16xf32>
    %321 = vector.shape_cast %320 : vector<1x1x16x16xf32> to vector<16x16xf32>
    %c0_310 = arith.constant 0 : index
    %c1_311 = arith.constant 1 : index
    %322 = memref.load %arg2[%c0_310, %c1_311] : memref<8x4xf32, #tpu.memory_space<smem>>
    %323 = vector.broadcast %322 : f32 to vector<16x16xf32>
    %324 = arith.mulf %321, %323 : vector<16x16xf32>
    %325 = arith.addf %319, %324 : vector<16x16xf32>
    %c1_312 = arith.constant 1 : index
    %c2_313 = arith.constant 2 : index
    %c0_314 = arith.constant 0 : index
    %c0_315 = arith.constant 0 : index
    %326 = vector.load %arg1[%c1_312, %c2_313, %c0_314, %c0_315] : memref<2x4x16x16xf32, #tpu.memory_space<vmem>>, vector<1x1x16x16xf32>
    %327 = vector.shape_cast %326 : vector<1x1x16x16xf32> to vector<16x16xf32>
    %c0_316 = arith.constant 0 : index
    %c2_317 = arith.constant 2 : index
    %328 = memref.load %arg2[%c0_316, %c2_317] : memref<8x4xf32, #tpu.memory_space<smem>>
    %329 = vector.broadcast %328 : f32 to vector<16x16xf32>
    %330 = arith.mulf %327, %329 : vector<16x16xf32>
    %331 = arith.addf %325, %330 : vector<16x16xf32>
    %c1_318 = arith.constant 1 : index
    %c3_319 = arith.constant 3 : index
    %c0_320 = arith.constant 0 : index
    %c0_321 = arith.constant 0 : index
    %332 = vector.load %arg1[%c1_318, %c3_319, %c0_320, %c0_321] : memref<2x4x16x16xf32, #tpu.memory_space<vmem>>, vector<1x1x16x16xf32>
    %333 = vector.shape_cast %332 : vector<1x1x16x16xf32> to vector<16x16xf32>
    %c0_322 = arith.constant 0 : index
    %c3_323 = arith.constant 3 : index
    %334 = memref.load %arg2[%c0_322, %c3_323] : memref<8x4xf32, #tpu.memory_space<smem>>
    %335 = vector.broadcast %334 : f32 to vector<16x16xf32>
    %336 = arith.mulf %333, %335 : vector<16x16xf32>
    %337 = arith.addf %331, %336 : vector<16x16xf32>
    %c0_324 = arith.constant 0 : index
    %338 = memref.load %arg3[%c0_324] : memref<8xf32, #tpu.memory_space<smem>>
    %339 = vector.broadcast %338 : f32 to vector<16x16xf32>
    %340 = arith.addf %337, %339 : vector<16x16xf32>
    %cst_325 = arith.constant dense<0.000000e+00> : vector<16x32xf32>
    %341 = tpu.matmul %340, %2, %cst_325 {dimension_numbers = #tpu.dot_dimension_numbers<[1], [0], [0], [1], [0, 0, 1, 1], [], []>} : vector<16x16xf32>, vector<16x32xf32>, vector<16x32xf32> -> vector<16x32xf32>
    %cst_326 = arith.constant dense<0.000000e+00> : vector<16x32xf32>
    %342 = tpu.matmul %0, %341, %cst_326 {dimension_numbers = #tpu.dot_dimension_numbers<[1], [0], [0], [1], [0, 0, 1, 1], [], []>} : vector<16x16xf32>, vector<16x32xf32>, vector<16x32xf32> -> vector<16x32xf32>
    %cst_327 = arith.constant dense<0.000000e+00> : vector<16x32xf32>
    %343 = tpu.matmul %1, %341, %cst_327 {dimension_numbers = #tpu.dot_dimension_numbers<[1], [0], [0], [1], [0, 0, 1, 1], [], []>} : vector<16x16xf32>, vector<16x32xf32>, vector<16x32xf32> -> vector<16x32xf32>
    %cst_328 = arith.constant 0.000000e+00 : f32
    %344 = vector.broadcast %cst_328 : f32 to vector<16x32xf32>
    %345 = arith.maximumf %342, %344 : vector<16x32xf32>
    %c1_329 = arith.constant 1 : index
    %c0_330 = arith.constant 0 : index
    %c0_331 = arith.constant 0 : index
    %c0_332 = arith.constant 0 : index
    %346 = vector.load %arg7[%c1_329, %c0_330, %c0_331, %c0_332] : memref<2x8x16x64xf32, #tpu.memory_space<vmem>>, vector<1x1x16x32xf32>
    %347 = vector.shape_cast %346 : vector<1x1x16x32xf32> to vector<16x32xf32>
    %348 = vector.shape_cast %345 : vector<16x32xf32> to vector<1x1x16x32xf32>
    tpu.vector_store %arg7[%c1_329, %c0_330, %c0_331, %c0_332], %348 {strides = array<i32>} : memref<2x8x16x64xf32, #tpu.memory_space<vmem>>, vector<1x1x16x32xf32>,
    %cst_333 = arith.constant 0.000000e+00 : f32
    %349 = vector.broadcast %cst_333 : f32 to vector<16x32xf32>
    %350 = arith.maximumf %343, %349 : vector<16x32xf32>
    %c1_334 = arith.constant 1 : index
    %c0_335 = arith.constant 0 : index
    %c0_336 = arith.constant 0 : index
    %c32_337 = arith.constant 32 : index
    %351 = vector.load %arg7[%c1_334, %c0_335, %c0_336, %c32_337] : memref<2x8x16x64xf32, #tpu.memory_space<vmem>>, vector<1x1x16x32xf32>
    %352 = vector.shape_cast %351 : vector<1x1x16x32xf32> to vector<16x32xf32>
    %353 = vector.shape_cast %350 : vector<16x32xf32> to vector<1x1x16x32xf32>
    tpu.vector_store %arg7[%c1_334, %c0_335, %c0_336, %c32_337], %353 {strides = array<i32>} : memref<2x8x16x64xf32, #tpu.memory_space<vmem>>, vector<1x1x16x32xf32>,
    %c1_338 = arith.constant 1 : index
    %c0_339 = arith.constant 0 : index
    %c0_340 = arith.constant 0 : index
    %c0_341 = arith.constant 0 : index
    %354 = vector.load %arg1[%c1_338, %c0_339, %c0_340, %c0_341] : memref<2x4x16x16xf32, #tpu.memory_space<vmem>>, vector<1x1x16x16xf32>
    %355 = vector.shape_cast %354 : vector<1x1x16x16xf32> to vector<16x16xf32>
    %c1_342 = arith.constant 1 : index
    %c0_343 = arith.constant 0 : index
    %356 = memref.load %arg2[%c1_342, %c0_343] : memref<8x4xf32, #tpu.memory_space<smem>>
    %357 = vector.broadcast %356 : f32 to vector<16x16xf32>
    %358 = arith.mulf %355, %357 : vector<16x16xf32>
    %c1_344 = arith.constant 1 : index
    %c1_345 = arith.constant 1 : index
    %c0_346 = arith.constant 0 : index
    %c0_347 = arith.constant 0 : index
    %359 = vector.load %arg1[%c1_344, %c1_345, %c0_346, %c0_347] : memref<2x4x16x16xf32, #tpu.memory_space<vmem>>, vector<1x1x16x16xf32>
    %360 = vector.shape_cast %359 : vector<1x1x16x16xf32> to vector<16x16xf32>
    %c1_348 = arith.constant 1 : index
    %c1_349 = arith.constant 1 : index
    %361 = memref.load %arg2[%c1_348, %c1_349] : memref<8x4xf32, #tpu.memory_space<smem>>
    %362 = vector.broadcast %361 : f32 to vector<16x16xf32>
    %363 = arith.mulf %360, %362 : vector<16x16xf32>
    %364 = arith.addf %358, %363 : vector<16x16xf32>
    %c1_350 = arith.constant 1 : index
    %c2_351 = arith.constant 2 : index
    %c0_352 = arith.constant 0 : index
    %c0_353 = arith.constant 0 : index
    %365 = vector.load %arg1[%c1_350, %c2_351, %c0_352, %c0_353] : memref<2x4x16x16xf32, #tpu.memory_space<vmem>>, vector<1x1x16x16xf32>
    %366 = vector.shape_cast %365 : vector<1x1x16x16xf32> to vector<16x16xf32>
    %c1_354 = arith.constant 1 : index
    %c2_355 = arith.constant 2 : index
    %367 = memref.load %arg2[%c1_354, %c2_355] : memref<8x4xf32, #tpu.memory_space<smem>>
    %368 = vector.broadcast %367 : f32 to vector<16x16xf32>
    %369 = arith.mulf %366, %368 : vector<16x16xf32>
    %370 = arith.addf %364, %369 : vector<16x16xf32>
    %c1_356 = arith.constant 1 : index
    %c3_357 = arith.constant 3 : index
    %c0_358 = arith.constant 0 : index
    %c0_359 = arith.constant 0 : index
    %371 = vector.load %arg1[%c1_356, %c3_357, %c0_358, %c0_359] : memref<2x4x16x16xf32, #tpu.memory_space<vmem>>, vector<1x1x16x16xf32>
    %372 = vector.shape_cast %371 : vector<1x1x16x16xf32> to vector<16x16xf32>
    %c1_360 = arith.constant 1 : index
    %c3_361 = arith.constant 3 : index
    %373 = memref.load %arg2[%c1_360, %c3_361] : memref<8x4xf32, #tpu.memory_space<smem>>
    %374 = vector.broadcast %373 : f32 to vector<16x16xf32>
    %375 = arith.mulf %372, %374 : vector<16x16xf32>
    %376 = arith.addf %370, %375 : vector<16x16xf32>
    %c1_362 = arith.constant 1 : index
    %377 = memref.load %arg3[%c1_362] : memref<8xf32, #tpu.memory_space<smem>>
    %378 = vector.broadcast %377 : f32 to vector<16x16xf32>
    %379 = arith.addf %376, %378 : vector<16x16xf32>
    %cst_363 = arith.constant dense<0.000000e+00> : vector<16x32xf32>
    %380 = tpu.matmul %379, %2, %cst_363 {dimension_numbers = #tpu.dot_dimension_numbers<[1], [0], [0], [1], [0, 0, 1, 1], [], []>} : vector<16x16xf32>, vector<16x32xf32>, vector<16x32xf32> -> vector<16x32xf32>
    %cst_364 = arith.constant dense<0.000000e+00> : vector<16x32xf32>
    %381 = tpu.matmul %0, %380, %cst_364 {dimension_numbers = #tpu.dot_dimension_numbers<[1], [0], [0], [1], [0, 0, 1, 1], [], []>} : vector<16x16xf32>, vector<16x32xf32>, vector<16x32xf32> -> vector<16x32xf32>
    %cst_365 = arith.constant dense<0.000000e+00> : vector<16x32xf32>
    %382 = tpu.matmul %1, %380, %cst_365 {dimension_numbers = #tpu.dot_dimension_numbers<[1], [0], [0], [1], [0, 0, 1, 1], [], []>} : vector<16x16xf32>, vector<16x32xf32>, vector<16x32xf32> -> vector<16x32xf32>
    %cst_366 = arith.constant 0.000000e+00 : f32
    %383 = vector.broadcast %cst_366 : f32 to vector<16x32xf32>
    %384 = arith.maximumf %381, %383 : vector<16x32xf32>
    %c1_367 = arith.constant 1 : index
    %c1_368 = arith.constant 1 : index
    %c0_369 = arith.constant 0 : index
    %c0_370 = arith.constant 0 : index
    %385 = vector.load %arg7[%c1_367, %c1_368, %c0_369, %c0_370] : memref<2x8x16x64xf32, #tpu.memory_space<vmem>>, vector<1x1x16x32xf32>
    %386 = vector.shape_cast %385 : vector<1x1x16x32xf32> to vector<16x32xf32>
    %387 = vector.shape_cast %384 : vector<16x32xf32> to vector<1x1x16x32xf32>
    tpu.vector_store %arg7[%c1_367, %c1_368, %c0_369, %c0_370], %387 {strides = array<i32>} : memref<2x8x16x64xf32, #tpu.memory_space<vmem>>, vector<1x1x16x32xf32>,
    %cst_371 = arith.constant 0.000000e+00 : f32
    %388 = vector.broadcast %cst_371 : f32 to vector<16x32xf32>
    %389 = arith.maximumf %382, %388 : vector<16x32xf32>
    %c1_372 = arith.constant 1 : index
    %c1_373 = arith.constant 1 : index
    %c0_374 = arith.constant 0 : index
    %c32_375 = arith.constant 32 : index
    %390 = vector.load %arg7[%c1_372, %c1_373, %c0_374, %c32_375] : memref<2x8x16x64xf32, #tpu.memory_space<vmem>>, vector<1x1x16x32xf32>
    %391 = vector.shape_cast %390 : vector<1x1x16x32xf32> to vector<16x32xf32>
    %392 = vector.shape_cast %389 : vector<16x32xf32> to vector<1x1x16x32xf32>
    tpu.vector_store %arg7[%c1_372, %c1_373, %c0_374, %c32_375], %392 {strides = array<i32>} : memref<2x8x16x64xf32, #tpu.memory_space<vmem>>, vector<1x1x16x32xf32>,
    %c1_376 = arith.constant 1 : index
    %c0_377 = arith.constant 0 : index
    %c0_378 = arith.constant 0 : index
    %c0_379 = arith.constant 0 : index
    %393 = vector.load %arg1[%c1_376, %c0_377, %c0_378, %c0_379] : memref<2x4x16x16xf32, #tpu.memory_space<vmem>>, vector<1x1x16x16xf32>
    %394 = vector.shape_cast %393 : vector<1x1x16x16xf32> to vector<16x16xf32>
    %c2_380 = arith.constant 2 : index
    %c0_381 = arith.constant 0 : index
    %395 = memref.load %arg2[%c2_380, %c0_381] : memref<8x4xf32, #tpu.memory_space<smem>>
    %396 = vector.broadcast %395 : f32 to vector<16x16xf32>
    %397 = arith.mulf %394, %396 : vector<16x16xf32>
    %c1_382 = arith.constant 1 : index
    %c1_383 = arith.constant 1 : index
    %c0_384 = arith.constant 0 : index
    %c0_385 = arith.constant 0 : index
    %398 = vector.load %arg1[%c1_382, %c1_383, %c0_384, %c0_385] : memref<2x4x16x16xf32, #tpu.memory_space<vmem>>, vector<1x1x16x16xf32>
    %399 = vector.shape_cast %398 : vector<1x1x16x16xf32> to vector<16x16xf32>
    %c2_386 = arith.constant 2 : index
    %c1_387 = arith.constant 1 : index
    %400 = memref.load %arg2[%c2_386, %c1_387] : memref<8x4xf32, #tpu.memory_space<smem>>
    %401 = vector.broadcast %400 : f32 to vector<16x16xf32>
    %402 = arith.mulf %399, %401 : vector<16x16xf32>
    %403 = arith.addf %397, %402 : vector<16x16xf32>
    %c1_388 = arith.constant 1 : index
    %c2_389 = arith.constant 2 : index
    %c0_390 = arith.constant 0 : index
    %c0_391 = arith.constant 0 : index
    %404 = vector.load %arg1[%c1_388, %c2_389, %c0_390, %c0_391] : memref<2x4x16x16xf32, #tpu.memory_space<vmem>>, vector<1x1x16x16xf32>
    %405 = vector.shape_cast %404 : vector<1x1x16x16xf32> to vector<16x16xf32>
    %c2_392 = arith.constant 2 : index
    %c2_393 = arith.constant 2 : index
    %406 = memref.load %arg2[%c2_392, %c2_393] : memref<8x4xf32, #tpu.memory_space<smem>>
    %407 = vector.broadcast %406 : f32 to vector<16x16xf32>
    %408 = arith.mulf %405, %407 : vector<16x16xf32>
    %409 = arith.addf %403, %408 : vector<16x16xf32>
    %c1_394 = arith.constant 1 : index
    %c3_395 = arith.constant 3 : index
    %c0_396 = arith.constant 0 : index
    %c0_397 = arith.constant 0 : index
    %410 = vector.load %arg1[%c1_394, %c3_395, %c0_396, %c0_397] : memref<2x4x16x16xf32, #tpu.memory_space<vmem>>, vector<1x1x16x16xf32>
    %411 = vector.shape_cast %410 : vector<1x1x16x16xf32> to vector<16x16xf32>
    %c2_398 = arith.constant 2 : index
    %c3_399 = arith.constant 3 : index
    %412 = memref.load %arg2[%c2_398, %c3_399] : memref<8x4xf32, #tpu.memory_space<smem>>
    %413 = vector.broadcast %412 : f32 to vector<16x16xf32>
    %414 = arith.mulf %411, %413 : vector<16x16xf32>
    %415 = arith.addf %409, %414 : vector<16x16xf32>
    %c2_400 = arith.constant 2 : index
    %416 = memref.load %arg3[%c2_400] : memref<8xf32, #tpu.memory_space<smem>>
    %417 = vector.broadcast %416 : f32 to vector<16x16xf32>
    %418 = arith.addf %415, %417 : vector<16x16xf32>
    %cst_401 = arith.constant dense<0.000000e+00> : vector<16x32xf32>
    %419 = tpu.matmul %418, %2, %cst_401 {dimension_numbers = #tpu.dot_dimension_numbers<[1], [0], [0], [1], [0, 0, 1, 1], [], []>} : vector<16x16xf32>, vector<16x32xf32>, vector<16x32xf32> -> vector<16x32xf32>
    %cst_402 = arith.constant dense<0.000000e+00> : vector<16x32xf32>
    %420 = tpu.matmul %0, %419, %cst_402 {dimension_numbers = #tpu.dot_dimension_numbers<[1], [0], [0], [1], [0, 0, 1, 1], [], []>} : vector<16x16xf32>, vector<16x32xf32>, vector<16x32xf32> -> vector<16x32xf32>
    %cst_403 = arith.constant dense<0.000000e+00> : vector<16x32xf32>
    %421 = tpu.matmul %1, %419, %cst_403 {dimension_numbers = #tpu.dot_dimension_numbers<[1], [0], [0], [1], [0, 0, 1, 1], [], []>} : vector<16x16xf32>, vector<16x32xf32>, vector<16x32xf32> -> vector<16x32xf32>
    %cst_404 = arith.constant 0.000000e+00 : f32
    %422 = vector.broadcast %cst_404 : f32 to vector<16x32xf32>
    %423 = arith.maximumf %420, %422 : vector<16x32xf32>
    %c1_405 = arith.constant 1 : index
    %c2_406 = arith.constant 2 : index
    %c0_407 = arith.constant 0 : index
    %c0_408 = arith.constant 0 : index
    %424 = vector.load %arg7[%c1_405, %c2_406, %c0_407, %c0_408] : memref<2x8x16x64xf32, #tpu.memory_space<vmem>>, vector<1x1x16x32xf32>
    %425 = vector.shape_cast %424 : vector<1x1x16x32xf32> to vector<16x32xf32>
    %426 = vector.shape_cast %423 : vector<16x32xf32> to vector<1x1x16x32xf32>
    tpu.vector_store %arg7[%c1_405, %c2_406, %c0_407, %c0_408], %426 {strides = array<i32>} : memref<2x8x16x64xf32, #tpu.memory_space<vmem>>, vector<1x1x16x32xf32>,
    %cst_409 = arith.constant 0.000000e+00 : f32
    %427 = vector.broadcast %cst_409 : f32 to vector<16x32xf32>
    %428 = arith.maximumf %421, %427 : vector<16x32xf32>
    %c1_410 = arith.constant 1 : index
    %c2_411 = arith.constant 2 : index
    %c0_412 = arith.constant 0 : index
    %c32_413 = arith.constant 32 : index
    %429 = vector.load %arg7[%c1_410, %c2_411, %c0_412, %c32_413] : memref<2x8x16x64xf32, #tpu.memory_space<vmem>>, vector<1x1x16x32xf32>
    %430 = vector.shape_cast %429 : vector<1x1x16x32xf32> to vector<16x32xf32>
    %431 = vector.shape_cast %428 : vector<16x32xf32> to vector<1x1x16x32xf32>
    tpu.vector_store %arg7[%c1_410, %c2_411, %c0_412, %c32_413], %431 {strides = array<i32>} : memref<2x8x16x64xf32, #tpu.memory_space<vmem>>, vector<1x1x16x32xf32>,
    %c1_414 = arith.constant 1 : index
    %c0_415 = arith.constant 0 : index
    %c0_416 = arith.constant 0 : index
    %c0_417 = arith.constant 0 : index
    %432 = vector.load %arg1[%c1_414, %c0_415, %c0_416, %c0_417] : memref<2x4x16x16xf32, #tpu.memory_space<vmem>>, vector<1x1x16x16xf32>
    %433 = vector.shape_cast %432 : vector<1x1x16x16xf32> to vector<16x16xf32>
    %c3_418 = arith.constant 3 : index
    %c0_419 = arith.constant 0 : index
    %434 = memref.load %arg2[%c3_418, %c0_419] : memref<8x4xf32, #tpu.memory_space<smem>>
    %435 = vector.broadcast %434 : f32 to vector<16x16xf32>
    %436 = arith.mulf %433, %435 : vector<16x16xf32>
    %c1_420 = arith.constant 1 : index
    %c1_421 = arith.constant 1 : index
    %c0_422 = arith.constant 0 : index
    %c0_423 = arith.constant 0 : index
    %437 = vector.load %arg1[%c1_420, %c1_421, %c0_422, %c0_423] : memref<2x4x16x16xf32, #tpu.memory_space<vmem>>, vector<1x1x16x16xf32>
    %438 = vector.shape_cast %437 : vector<1x1x16x16xf32> to vector<16x16xf32>
    %c3_424 = arith.constant 3 : index
    %c1_425 = arith.constant 1 : index
    %439 = memref.load %arg2[%c3_424, %c1_425] : memref<8x4xf32, #tpu.memory_space<smem>>
    %440 = vector.broadcast %439 : f32 to vector<16x16xf32>
    %441 = arith.mulf %438, %440 : vector<16x16xf32>
    %442 = arith.addf %436, %441 : vector<16x16xf32>
    %c1_426 = arith.constant 1 : index
    %c2_427 = arith.constant 2 : index
    %c0_428 = arith.constant 0 : index
    %c0_429 = arith.constant 0 : index
    %443 = vector.load %arg1[%c1_426, %c2_427, %c0_428, %c0_429] : memref<2x4x16x16xf32, #tpu.memory_space<vmem>>, vector<1x1x16x16xf32>
    %444 = vector.shape_cast %443 : vector<1x1x16x16xf32> to vector<16x16xf32>
    %c3_430 = arith.constant 3 : index
    %c2_431 = arith.constant 2 : index
    %445 = memref.load %arg2[%c3_430, %c2_431] : memref<8x4xf32, #tpu.memory_space<smem>>
    %446 = vector.broadcast %445 : f32 to vector<16x16xf32>
    %447 = arith.mulf %444, %446 : vector<16x16xf32>
    %448 = arith.addf %442, %447 : vector<16x16xf32>
    %c1_432 = arith.constant 1 : index
    %c3_433 = arith.constant 3 : index
    %c0_434 = arith.constant 0 : index
    %c0_435 = arith.constant 0 : index
    %449 = vector.load %arg1[%c1_432, %c3_433, %c0_434, %c0_435] : memref<2x4x16x16xf32, #tpu.memory_space<vmem>>, vector<1x1x16x16xf32>
    %450 = vector.shape_cast %449 : vector<1x1x16x16xf32> to vector<16x16xf32>
    %c3_436 = arith.constant 3 : index
    %c3_437 = arith.constant 3 : index
    %451 = memref.load %arg2[%c3_436, %c3_437] : memref<8x4xf32, #tpu.memory_space<smem>>
    %452 = vector.broadcast %451 : f32 to vector<16x16xf32>
    %453 = arith.mulf %450, %452 : vector<16x16xf32>
    %454 = arith.addf %448, %453 : vector<16x16xf32>
    %c3_438 = arith.constant 3 : index
    %455 = memref.load %arg3[%c3_438] : memref<8xf32, #tpu.memory_space<smem>>
    %456 = vector.broadcast %455 : f32 to vector<16x16xf32>
    %457 = arith.addf %454, %456 : vector<16x16xf32>
    %cst_439 = arith.constant dense<0.000000e+00> : vector<16x32xf32>
    %458 = tpu.matmul %457, %2, %cst_439 {dimension_numbers = #tpu.dot_dimension_numbers<[1], [0], [0], [1], [0, 0, 1, 1], [], []>} : vector<16x16xf32>, vector<16x32xf32>, vector<16x32xf32> -> vector<16x32xf32>
    %cst_440 = arith.constant dense<0.000000e+00> : vector<16x32xf32>
    %459 = tpu.matmul %0, %458, %cst_440 {dimension_numbers = #tpu.dot_dimension_numbers<[1], [0], [0], [1], [0, 0, 1, 1], [], []>} : vector<16x16xf32>, vector<16x32xf32>, vector<16x32xf32> -> vector<16x32xf32>
    %cst_441 = arith.constant dense<0.000000e+00> : vector<16x32xf32>
    %460 = tpu.matmul %1, %458, %cst_441 {dimension_numbers = #tpu.dot_dimension_numbers<[1], [0], [0], [1], [0, 0, 1, 1], [], []>} : vector<16x16xf32>, vector<16x32xf32>, vector<16x32xf32> -> vector<16x32xf32>
    %cst_442 = arith.constant 0.000000e+00 : f32
    %461 = vector.broadcast %cst_442 : f32 to vector<16x32xf32>
    %462 = arith.maximumf %459, %461 : vector<16x32xf32>
    %c1_443 = arith.constant 1 : index
    %c3_444 = arith.constant 3 : index
    %c0_445 = arith.constant 0 : index
    %c0_446 = arith.constant 0 : index
    %463 = vector.load %arg7[%c1_443, %c3_444, %c0_445, %c0_446] : memref<2x8x16x64xf32, #tpu.memory_space<vmem>>, vector<1x1x16x32xf32>
    %464 = vector.shape_cast %463 : vector<1x1x16x32xf32> to vector<16x32xf32>
    %465 = vector.shape_cast %462 : vector<16x32xf32> to vector<1x1x16x32xf32>
    tpu.vector_store %arg7[%c1_443, %c3_444, %c0_445, %c0_446], %465 {strides = array<i32>} : memref<2x8x16x64xf32, #tpu.memory_space<vmem>>, vector<1x1x16x32xf32>,
    %cst_447 = arith.constant 0.000000e+00 : f32
    %466 = vector.broadcast %cst_447 : f32 to vector<16x32xf32>
    %467 = arith.maximumf %460, %466 : vector<16x32xf32>
    %c1_448 = arith.constant 1 : index
    %c3_449 = arith.constant 3 : index
    %c0_450 = arith.constant 0 : index
    %c32_451 = arith.constant 32 : index
    %468 = vector.load %arg7[%c1_448, %c3_449, %c0_450, %c32_451] : memref<2x8x16x64xf32, #tpu.memory_space<vmem>>, vector<1x1x16x32xf32>
    %469 = vector.shape_cast %468 : vector<1x1x16x32xf32> to vector<16x32xf32>
    %470 = vector.shape_cast %467 : vector<16x32xf32> to vector<1x1x16x32xf32>
    tpu.vector_store %arg7[%c1_448, %c3_449, %c0_450, %c32_451], %470 {strides = array<i32>} : memref<2x8x16x64xf32, #tpu.memory_space<vmem>>, vector<1x1x16x32xf32>,
    %c1_452 = arith.constant 1 : index
    %c0_453 = arith.constant 0 : index
    %c0_454 = arith.constant 0 : index
    %c0_455 = arith.constant 0 : index
    %471 = vector.load %arg1[%c1_452, %c0_453, %c0_454, %c0_455] : memref<2x4x16x16xf32, #tpu.memory_space<vmem>>, vector<1x1x16x16xf32>
    %472 = vector.shape_cast %471 : vector<1x1x16x16xf32> to vector<16x16xf32>
    %c4_456 = arith.constant 4 : index
    %c0_457 = arith.constant 0 : index
    %473 = memref.load %arg2[%c4_456, %c0_457] : memref<8x4xf32, #tpu.memory_space<smem>>
    %474 = vector.broadcast %473 : f32 to vector<16x16xf32>
    %475 = arith.mulf %472, %474 : vector<16x16xf32>
    %c1_458 = arith.constant 1 : index
    %c1_459 = arith.constant 1 : index
    %c0_460 = arith.constant 0 : index
    %c0_461 = arith.constant 0 : index
    %476 = vector.load %arg1[%c1_458, %c1_459, %c0_460, %c0_461] : memref<2x4x16x16xf32, #tpu.memory_space<vmem>>, vector<1x1x16x16xf32>
    %477 = vector.shape_cast %476 : vector<1x1x16x16xf32> to vector<16x16xf32>
    %c4_462 = arith.constant 4 : index
    %c1_463 = arith.constant 1 : index
    %478 = memref.load %arg2[%c4_462, %c1_463] : memref<8x4xf32, #tpu.memory_space<smem>>
    %479 = vector.broadcast %478 : f32 to vector<16x16xf32>
    %480 = arith.mulf %477, %479 : vector<16x16xf32>
    %481 = arith.addf %475, %480 : vector<16x16xf32>
    %c1_464 = arith.constant 1 : index
    %c2_465 = arith.constant 2 : index
    %c0_466 = arith.constant 0 : index
    %c0_467 = arith.constant 0 : index
    %482 = vector.load %arg1[%c1_464, %c2_465, %c0_466, %c0_467] : memref<2x4x16x16xf32, #tpu.memory_space<vmem>>, vector<1x1x16x16xf32>
    %483 = vector.shape_cast %482 : vector<1x1x16x16xf32> to vector<16x16xf32>
    %c4_468 = arith.constant 4 : index
    %c2_469 = arith.constant 2 : index
    %484 = memref.load %arg2[%c4_468, %c2_469] : memref<8x4xf32, #tpu.memory_space<smem>>
    %485 = vector.broadcast %484 : f32 to vector<16x16xf32>
    %486 = arith.mulf %483, %485 : vector<16x16xf32>
    %487 = arith.addf %481, %486 : vector<16x16xf32>
    %c1_470 = arith.constant 1 : index
    %c3_471 = arith.constant 3 : index
    %c0_472 = arith.constant 0 : index
    %c0_473 = arith.constant 0 : index
    %488 = vector.load %arg1[%c1_470, %c3_471, %c0_472, %c0_473] : memref<2x4x16x16xf32, #tpu.memory_space<vmem>>, vector<1x1x16x16xf32>
    %489 = vector.shape_cast %488 : vector<1x1x16x16xf32> to vector<16x16xf32>
    %c4_474 = arith.constant 4 : index
    %c3_475 = arith.constant 3 : index
    %490 = memref.load %arg2[%c4_474, %c3_475] : memref<8x4xf32, #tpu.memory_space<smem>>
    %491 = vector.broadcast %490 : f32 to vector<16x16xf32>
    %492 = arith.mulf %489, %491 : vector<16x16xf32>
    %493 = arith.addf %487, %492 : vector<16x16xf32>
    %c4_476 = arith.constant 4 : index
    %494 = memref.load %arg3[%c4_476] : memref<8xf32, #tpu.memory_space<smem>>
    %495 = vector.broadcast %494 : f32 to vector<16x16xf32>
    %496 = arith.addf %493, %495 : vector<16x16xf32>
    %cst_477 = arith.constant dense<0.000000e+00> : vector<16x32xf32>
    %497 = tpu.matmul %496, %2, %cst_477 {dimension_numbers = #tpu.dot_dimension_numbers<[1], [0], [0], [1], [0, 0, 1, 1], [], []>} : vector<16x16xf32>, vector<16x32xf32>, vector<16x32xf32> -> vector<16x32xf32>
    %cst_478 = arith.constant dense<0.000000e+00> : vector<16x32xf32>
    %498 = tpu.matmul %0, %497, %cst_478 {dimension_numbers = #tpu.dot_dimension_numbers<[1], [0], [0], [1], [0, 0, 1, 1], [], []>} : vector<16x16xf32>, vector<16x32xf32>, vector<16x32xf32> -> vector<16x32xf32>
    %cst_479 = arith.constant dense<0.000000e+00> : vector<16x32xf32>
    %499 = tpu.matmul %1, %497, %cst_479 {dimension_numbers = #tpu.dot_dimension_numbers<[1], [0], [0], [1], [0, 0, 1, 1], [], []>} : vector<16x16xf32>, vector<16x32xf32>, vector<16x32xf32> -> vector<16x32xf32>
    %cst_480 = arith.constant 0.000000e+00 : f32
    %500 = vector.broadcast %cst_480 : f32 to vector<16x32xf32>
    %501 = arith.maximumf %498, %500 : vector<16x32xf32>
    %c1_481 = arith.constant 1 : index
    %c4_482 = arith.constant 4 : index
    %c0_483 = arith.constant 0 : index
    %c0_484 = arith.constant 0 : index
    %502 = vector.load %arg7[%c1_481, %c4_482, %c0_483, %c0_484] : memref<2x8x16x64xf32, #tpu.memory_space<vmem>>, vector<1x1x16x32xf32>
    %503 = vector.shape_cast %502 : vector<1x1x16x32xf32> to vector<16x32xf32>
    %504 = vector.shape_cast %501 : vector<16x32xf32> to vector<1x1x16x32xf32>
    tpu.vector_store %arg7[%c1_481, %c4_482, %c0_483, %c0_484], %504 {strides = array<i32>} : memref<2x8x16x64xf32, #tpu.memory_space<vmem>>, vector<1x1x16x32xf32>,
    %cst_485 = arith.constant 0.000000e+00 : f32
    %505 = vector.broadcast %cst_485 : f32 to vector<16x32xf32>
    %506 = arith.maximumf %499, %505 : vector<16x32xf32>
    %c1_486 = arith.constant 1 : index
    %c4_487 = arith.constant 4 : index
    %c0_488 = arith.constant 0 : index
    %c32_489 = arith.constant 32 : index
    %507 = vector.load %arg7[%c1_486, %c4_487, %c0_488, %c32_489] : memref<2x8x16x64xf32, #tpu.memory_space<vmem>>, vector<1x1x16x32xf32>
    %508 = vector.shape_cast %507 : vector<1x1x16x32xf32> to vector<16x32xf32>
    %509 = vector.shape_cast %506 : vector<16x32xf32> to vector<1x1x16x32xf32>
    tpu.vector_store %arg7[%c1_486, %c4_487, %c0_488, %c32_489], %509 {strides = array<i32>} : memref<2x8x16x64xf32, #tpu.memory_space<vmem>>, vector<1x1x16x32xf32>,
    %c1_490 = arith.constant 1 : index
    %c0_491 = arith.constant 0 : index
    %c0_492 = arith.constant 0 : index
    %c0_493 = arith.constant 0 : index
    %510 = vector.load %arg1[%c1_490, %c0_491, %c0_492, %c0_493] : memref<2x4x16x16xf32, #tpu.memory_space<vmem>>, vector<1x1x16x16xf32>
    %511 = vector.shape_cast %510 : vector<1x1x16x16xf32> to vector<16x16xf32>
    %c5_494 = arith.constant 5 : index
    %c0_495 = arith.constant 0 : index
    %512 = memref.load %arg2[%c5_494, %c0_495] : memref<8x4xf32, #tpu.memory_space<smem>>
    %513 = vector.broadcast %512 : f32 to vector<16x16xf32>
    %514 = arith.mulf %511, %513 : vector<16x16xf32>
    %c1_496 = arith.constant 1 : index
    %c1_497 = arith.constant 1 : index
    %c0_498 = arith.constant 0 : index
    %c0_499 = arith.constant 0 : index
    %515 = vector.load %arg1[%c1_496, %c1_497, %c0_498, %c0_499] : memref<2x4x16x16xf32, #tpu.memory_space<vmem>>, vector<1x1x16x16xf32>
    %516 = vector.shape_cast %515 : vector<1x1x16x16xf32> to vector<16x16xf32>
    %c5_500 = arith.constant 5 : index
    %c1_501 = arith.constant 1 : index
    %517 = memref.load %arg2[%c5_500, %c1_501] : memref<8x4xf32, #tpu.memory_space<smem>>
    %518 = vector.broadcast %517 : f32 to vector<16x16xf32>
    %519 = arith.mulf %516, %518 : vector<16x16xf32>
    %520 = arith.addf %514, %519 : vector<16x16xf32>
    %c1_502 = arith.constant 1 : index
    %c2_503 = arith.constant 2 : index
    %c0_504 = arith.constant 0 : index
    %c0_505 = arith.constant 0 : index
    %521 = vector.load %arg1[%c1_502, %c2_503, %c0_504, %c0_505] : memref<2x4x16x16xf32, #tpu.memory_space<vmem>>, vector<1x1x16x16xf32>
    %522 = vector.shape_cast %521 : vector<1x1x16x16xf32> to vector<16x16xf32>
    %c5_506 = arith.constant 5 : index
    %c2_507 = arith.constant 2 : index
    %523 = memref.load %arg2[%c5_506, %c2_507] : memref<8x4xf32, #tpu.memory_space<smem>>
    %524 = vector.broadcast %523 : f32 to vector<16x16xf32>
    %525 = arith.mulf %522, %524 : vector<16x16xf32>
    %526 = arith.addf %520, %525 : vector<16x16xf32>
    %c1_508 = arith.constant 1 : index
    %c3_509 = arith.constant 3 : index
    %c0_510 = arith.constant 0 : index
    %c0_511 = arith.constant 0 : index
    %527 = vector.load %arg1[%c1_508, %c3_509, %c0_510, %c0_511] : memref<2x4x16x16xf32, #tpu.memory_space<vmem>>, vector<1x1x16x16xf32>
    %528 = vector.shape_cast %527 : vector<1x1x16x16xf32> to vector<16x16xf32>
    %c5_512 = arith.constant 5 : index
    %c3_513 = arith.constant 3 : index
    %529 = memref.load %arg2[%c5_512, %c3_513] : memref<8x4xf32, #tpu.memory_space<smem>>
    %530 = vector.broadcast %529 : f32 to vector<16x16xf32>
    %531 = arith.mulf %528, %530 : vector<16x16xf32>
    %532 = arith.addf %526, %531 : vector<16x16xf32>
    %c5_514 = arith.constant 5 : index
    %533 = memref.load %arg3[%c5_514] : memref<8xf32, #tpu.memory_space<smem>>
    %534 = vector.broadcast %533 : f32 to vector<16x16xf32>
    %535 = arith.addf %532, %534 : vector<16x16xf32>
    %cst_515 = arith.constant dense<0.000000e+00> : vector<16x32xf32>
    %536 = tpu.matmul %535, %2, %cst_515 {dimension_numbers = #tpu.dot_dimension_numbers<[1], [0], [0], [1], [0, 0, 1, 1], [], []>} : vector<16x16xf32>, vector<16x32xf32>, vector<16x32xf32> -> vector<16x32xf32>
    %cst_516 = arith.constant dense<0.000000e+00> : vector<16x32xf32>
    %537 = tpu.matmul %0, %536, %cst_516 {dimension_numbers = #tpu.dot_dimension_numbers<[1], [0], [0], [1], [0, 0, 1, 1], [], []>} : vector<16x16xf32>, vector<16x32xf32>, vector<16x32xf32> -> vector<16x32xf32>
    %cst_517 = arith.constant dense<0.000000e+00> : vector<16x32xf32>
    %538 = tpu.matmul %1, %536, %cst_517 {dimension_numbers = #tpu.dot_dimension_numbers<[1], [0], [0], [1], [0, 0, 1, 1], [], []>} : vector<16x16xf32>, vector<16x32xf32>, vector<16x32xf32> -> vector<16x32xf32>
    %cst_518 = arith.constant 0.000000e+00 : f32
    %539 = vector.broadcast %cst_518 : f32 to vector<16x32xf32>
    %540 = arith.maximumf %537, %539 : vector<16x32xf32>
    %c1_519 = arith.constant 1 : index
    %c5_520 = arith.constant 5 : index
    %c0_521 = arith.constant 0 : index
    %c0_522 = arith.constant 0 : index
    %541 = vector.load %arg7[%c1_519, %c5_520, %c0_521, %c0_522] : memref<2x8x16x64xf32, #tpu.memory_space<vmem>>, vector<1x1x16x32xf32>
    %542 = vector.shape_cast %541 : vector<1x1x16x32xf32> to vector<16x32xf32>
    %543 = vector.shape_cast %540 : vector<16x32xf32> to vector<1x1x16x32xf32>
    tpu.vector_store %arg7[%c1_519, %c5_520, %c0_521, %c0_522], %543 {strides = array<i32>} : memref<2x8x16x64xf32, #tpu.memory_space<vmem>>, vector<1x1x16x32xf32>,
    %cst_523 = arith.constant 0.000000e+00 : f32
    %544 = vector.broadcast %cst_523 : f32 to vector<16x32xf32>
    %545 = arith.maximumf %538, %544 : vector<16x32xf32>
    %c1_524 = arith.constant 1 : index
    %c5_525 = arith.constant 5 : index
    %c0_526 = arith.constant 0 : index
    %c32_527 = arith.constant 32 : index
    %546 = vector.load %arg7[%c1_524, %c5_525, %c0_526, %c32_527] : memref<2x8x16x64xf32, #tpu.memory_space<vmem>>, vector<1x1x16x32xf32>
    %547 = vector.shape_cast %546 : vector<1x1x16x32xf32> to vector<16x32xf32>
    %548 = vector.shape_cast %545 : vector<16x32xf32> to vector<1x1x16x32xf32>
    tpu.vector_store %arg7[%c1_524, %c5_525, %c0_526, %c32_527], %548 {strides = array<i32>} : memref<2x8x16x64xf32, #tpu.memory_space<vmem>>, vector<1x1x16x32xf32>,
    %c1_528 = arith.constant 1 : index
    %c0_529 = arith.constant 0 : index
    %c0_530 = arith.constant 0 : index
    %c0_531 = arith.constant 0 : index
    %549 = vector.load %arg1[%c1_528, %c0_529, %c0_530, %c0_531] : memref<2x4x16x16xf32, #tpu.memory_space<vmem>>, vector<1x1x16x16xf32>
    %550 = vector.shape_cast %549 : vector<1x1x16x16xf32> to vector<16x16xf32>
    %c6_532 = arith.constant 6 : index
    %c0_533 = arith.constant 0 : index
    %551 = memref.load %arg2[%c6_532, %c0_533] : memref<8x4xf32, #tpu.memory_space<smem>>
    %552 = vector.broadcast %551 : f32 to vector<16x16xf32>
    %553 = arith.mulf %550, %552 : vector<16x16xf32>
    %c1_534 = arith.constant 1 : index
    %c1_535 = arith.constant 1 : index
    %c0_536 = arith.constant 0 : index
    %c0_537 = arith.constant 0 : index
    %554 = vector.load %arg1[%c1_534, %c1_535, %c0_536, %c0_537] : memref<2x4x16x16xf32, #tpu.memory_space<vmem>>, vector<1x1x16x16xf32>
    %555 = vector.shape_cast %554 : vector<1x1x16x16xf32> to vector<16x16xf32>
    %c6_538 = arith.constant 6 : index
    %c1_539 = arith.constant 1 : index
    %556 = memref.load %arg2[%c6_538, %c1_539] : memref<8x4xf32, #tpu.memory_space<smem>>
    %557 = vector.broadcast %556 : f32 to vector<16x16xf32>
    %558 = arith.mulf %555, %557 : vector<16x16xf32>
    %559 = arith.addf %553, %558 : vector<16x16xf32>
    %c1_540 = arith.constant 1 : index
    %c2_541 = arith.constant 2 : index
    %c0_542 = arith.constant 0 : index
    %c0_543 = arith.constant 0 : index
    %560 = vector.load %arg1[%c1_540, %c2_541, %c0_542, %c0_543] : memref<2x4x16x16xf32, #tpu.memory_space<vmem>>, vector<1x1x16x16xf32>
    %561 = vector.shape_cast %560 : vector<1x1x16x16xf32> to vector<16x16xf32>
    %c6_544 = arith.constant 6 : index
    %c2_545 = arith.constant 2 : index
    %562 = memref.load %arg2[%c6_544, %c2_545] : memref<8x4xf32, #tpu.memory_space<smem>>
    %563 = vector.broadcast %562 : f32 to vector<16x16xf32>
    %564 = arith.mulf %561, %563 : vector<16x16xf32>
    %565 = arith.addf %559, %564 : vector<16x16xf32>
    %c1_546 = arith.constant 1 : index
    %c3_547 = arith.constant 3 : index
    %c0_548 = arith.constant 0 : index
    %c0_549 = arith.constant 0 : index
    %566 = vector.load %arg1[%c1_546, %c3_547, %c0_548, %c0_549] : memref<2x4x16x16xf32, #tpu.memory_space<vmem>>, vector<1x1x16x16xf32>
    %567 = vector.shape_cast %566 : vector<1x1x16x16xf32> to vector<16x16xf32>
    %c6_550 = arith.constant 6 : index
    %c3_551 = arith.constant 3 : index
    %568 = memref.load %arg2[%c6_550, %c3_551] : memref<8x4xf32, #tpu.memory_space<smem>>
    %569 = vector.broadcast %568 : f32 to vector<16x16xf32>
    %570 = arith.mulf %567, %569 : vector<16x16xf32>
    %571 = arith.addf %565, %570 : vector<16x16xf32>
    %c6_552 = arith.constant 6 : index
    %572 = memref.load %arg3[%c6_552] : memref<8xf32, #tpu.memory_space<smem>>
    %573 = vector.broadcast %572 : f32 to vector<16x16xf32>
    %574 = arith.addf %571, %573 : vector<16x16xf32>
    %cst_553 = arith.constant dense<0.000000e+00> : vector<16x32xf32>
    %575 = tpu.matmul %574, %2, %cst_553 {dimension_numbers = #tpu.dot_dimension_numbers<[1], [0], [0], [1], [0, 0, 1, 1], [], []>} : vector<16x16xf32>, vector<16x32xf32>, vector<16x32xf32> -> vector<16x32xf32>
    %cst_554 = arith.constant dense<0.000000e+00> : vector<16x32xf32>
    %576 = tpu.matmul %0, %575, %cst_554 {dimension_numbers = #tpu.dot_dimension_numbers<[1], [0], [0], [1], [0, 0, 1, 1], [], []>} : vector<16x16xf32>, vector<16x32xf32>, vector<16x32xf32> -> vector<16x32xf32>
    %cst_555 = arith.constant dense<0.000000e+00> : vector<16x32xf32>
    %577 = tpu.matmul %1, %575, %cst_555 {dimension_numbers = #tpu.dot_dimension_numbers<[1], [0], [0], [1], [0, 0, 1, 1], [], []>} : vector<16x16xf32>, vector<16x32xf32>, vector<16x32xf32> -> vector<16x32xf32>
    %cst_556 = arith.constant 0.000000e+00 : f32
    %578 = vector.broadcast %cst_556 : f32 to vector<16x32xf32>
    %579 = arith.maximumf %576, %578 : vector<16x32xf32>
    %c1_557 = arith.constant 1 : index
    %c6_558 = arith.constant 6 : index
    %c0_559 = arith.constant 0 : index
    %c0_560 = arith.constant 0 : index
    %580 = vector.load %arg7[%c1_557, %c6_558, %c0_559, %c0_560] : memref<2x8x16x64xf32, #tpu.memory_space<vmem>>, vector<1x1x16x32xf32>
    %581 = vector.shape_cast %580 : vector<1x1x16x32xf32> to vector<16x32xf32>
    %582 = vector.shape_cast %579 : vector<16x32xf32> to vector<1x1x16x32xf32>
    tpu.vector_store %arg7[%c1_557, %c6_558, %c0_559, %c0_560], %582 {strides = array<i32>} : memref<2x8x16x64xf32, #tpu.memory_space<vmem>>, vector<1x1x16x32xf32>,
    %cst_561 = arith.constant 0.000000e+00 : f32
    %583 = vector.broadcast %cst_561 : f32 to vector<16x32xf32>
    %584 = arith.maximumf %577, %583 : vector<16x32xf32>
    %c1_562 = arith.constant 1 : index
    %c6_563 = arith.constant 6 : index
    %c0_564 = arith.constant 0 : index
    %c32_565 = arith.constant 32 : index
    %585 = vector.load %arg7[%c1_562, %c6_563, %c0_564, %c32_565] : memref<2x8x16x64xf32, #tpu.memory_space<vmem>>, vector<1x1x16x32xf32>
    %586 = vector.shape_cast %585 : vector<1x1x16x32xf32> to vector<16x32xf32>
    %587 = vector.shape_cast %584 : vector<16x32xf32> to vector<1x1x16x32xf32>
    tpu.vector_store %arg7[%c1_562, %c6_563, %c0_564, %c32_565], %587 {strides = array<i32>} : memref<2x8x16x64xf32, #tpu.memory_space<vmem>>, vector<1x1x16x32xf32>,
    %c1_566 = arith.constant 1 : index
    %c0_567 = arith.constant 0 : index
    %c0_568 = arith.constant 0 : index
    %c0_569 = arith.constant 0 : index
    %588 = vector.load %arg1[%c1_566, %c0_567, %c0_568, %c0_569] : memref<2x4x16x16xf32, #tpu.memory_space<vmem>>, vector<1x1x16x16xf32>
    %589 = vector.shape_cast %588 : vector<1x1x16x16xf32> to vector<16x16xf32>
    %c7_570 = arith.constant 7 : index
    %c0_571 = arith.constant 0 : index
    %590 = memref.load %arg2[%c7_570, %c0_571] : memref<8x4xf32, #tpu.memory_space<smem>>
    %591 = vector.broadcast %590 : f32 to vector<16x16xf32>
    %592 = arith.mulf %589, %591 : vector<16x16xf32>
    %c1_572 = arith.constant 1 : index
    %c1_573 = arith.constant 1 : index
    %c0_574 = arith.constant 0 : index
    %c0_575 = arith.constant 0 : index
    %593 = vector.load %arg1[%c1_572, %c1_573, %c0_574, %c0_575] : memref<2x4x16x16xf32, #tpu.memory_space<vmem>>, vector<1x1x16x16xf32>
    %594 = vector.shape_cast %593 : vector<1x1x16x16xf32> to vector<16x16xf32>
    %c7_576 = arith.constant 7 : index
    %c1_577 = arith.constant 1 : index
    %595 = memref.load %arg2[%c7_576, %c1_577] : memref<8x4xf32, #tpu.memory_space<smem>>
    %596 = vector.broadcast %595 : f32 to vector<16x16xf32>
    %597 = arith.mulf %594, %596 : vector<16x16xf32>
    %598 = arith.addf %592, %597 : vector<16x16xf32>
    %c1_578 = arith.constant 1 : index
    %c2_579 = arith.constant 2 : index
    %c0_580 = arith.constant 0 : index
    %c0_581 = arith.constant 0 : index
    %599 = vector.load %arg1[%c1_578, %c2_579, %c0_580, %c0_581] : memref<2x4x16x16xf32, #tpu.memory_space<vmem>>, vector<1x1x16x16xf32>
    %600 = vector.shape_cast %599 : vector<1x1x16x16xf32> to vector<16x16xf32>
    %c7_582 = arith.constant 7 : index
    %c2_583 = arith.constant 2 : index
    %601 = memref.load %arg2[%c7_582, %c2_583] : memref<8x4xf32, #tpu.memory_space<smem>>
    %602 = vector.broadcast %601 : f32 to vector<16x16xf32>
    %603 = arith.mulf %600, %602 : vector<16x16xf32>
    %604 = arith.addf %598, %603 : vector<16x16xf32>
    %c1_584 = arith.constant 1 : index
    %c3_585 = arith.constant 3 : index
    %c0_586 = arith.constant 0 : index
    %c0_587 = arith.constant 0 : index
    %605 = vector.load %arg1[%c1_584, %c3_585, %c0_586, %c0_587] : memref<2x4x16x16xf32, #tpu.memory_space<vmem>>, vector<1x1x16x16xf32>
    %606 = vector.shape_cast %605 : vector<1x1x16x16xf32> to vector<16x16xf32>
    %c7_588 = arith.constant 7 : index
    %c3_589 = arith.constant 3 : index
    %607 = memref.load %arg2[%c7_588, %c3_589] : memref<8x4xf32, #tpu.memory_space<smem>>
    %608 = vector.broadcast %607 : f32 to vector<16x16xf32>
    %609 = arith.mulf %606, %608 : vector<16x16xf32>
    %610 = arith.addf %604, %609 : vector<16x16xf32>
    %c7_590 = arith.constant 7 : index
    %611 = memref.load %arg3[%c7_590] : memref<8xf32, #tpu.memory_space<smem>>
    %612 = vector.broadcast %611 : f32 to vector<16x16xf32>
    %613 = arith.addf %610, %612 : vector<16x16xf32>
    %cst_591 = arith.constant dense<0.000000e+00> : vector<16x32xf32>
    %614 = tpu.matmul %613, %2, %cst_591 {dimension_numbers = #tpu.dot_dimension_numbers<[1], [0], [0], [1], [0, 0, 1, 1], [], []>} : vector<16x16xf32>, vector<16x32xf32>, vector<16x32xf32> -> vector<16x32xf32>
    %cst_592 = arith.constant dense<0.000000e+00> : vector<16x32xf32>
    %615 = tpu.matmul %0, %614, %cst_592 {dimension_numbers = #tpu.dot_dimension_numbers<[1], [0], [0], [1], [0, 0, 1, 1], [], []>} : vector<16x16xf32>, vector<16x32xf32>, vector<16x32xf32> -> vector<16x32xf32>
    %cst_593 = arith.constant dense<0.000000e+00> : vector<16x32xf32>
    %616 = tpu.matmul %1, %614, %cst_593 {dimension_numbers = #tpu.dot_dimension_numbers<[1], [0], [0], [1], [0, 0, 1, 1], [], []>} : vector<16x16xf32>, vector<16x32xf32>, vector<16x32xf32> -> vector<16x32xf32>
    %cst_594 = arith.constant 0.000000e+00 : f32
    %617 = vector.broadcast %cst_594 : f32 to vector<16x32xf32>
    %618 = arith.maximumf %615, %617 : vector<16x32xf32>
    %c1_595 = arith.constant 1 : index
    %c7_596 = arith.constant 7 : index
    %c0_597 = arith.constant 0 : index
    %c0_598 = arith.constant 0 : index
    %619 = vector.load %arg7[%c1_595, %c7_596, %c0_597, %c0_598] : memref<2x8x16x64xf32, #tpu.memory_space<vmem>>, vector<1x1x16x32xf32>
    %620 = vector.shape_cast %619 : vector<1x1x16x32xf32> to vector<16x32xf32>
    %621 = vector.shape_cast %618 : vector<16x32xf32> to vector<1x1x16x32xf32>
    tpu.vector_store %arg7[%c1_595, %c7_596, %c0_597, %c0_598], %621 {strides = array<i32>} : memref<2x8x16x64xf32, #tpu.memory_space<vmem>>, vector<1x1x16x32xf32>,
    %cst_599 = arith.constant 0.000000e+00 : f32
    %622 = vector.broadcast %cst_599 : f32 to vector<16x32xf32>
    %623 = arith.maximumf %616, %622 : vector<16x32xf32>
    %c1_600 = arith.constant 1 : index
    %c7_601 = arith.constant 7 : index
    %c0_602 = arith.constant 0 : index
    %c32_603 = arith.constant 32 : index
    %624 = vector.load %arg7[%c1_600, %c7_601, %c0_602, %c32_603] : memref<2x8x16x64xf32, #tpu.memory_space<vmem>>, vector<1x1x16x32xf32>
    %625 = vector.shape_cast %624 : vector<1x1x16x32xf32> to vector<16x32xf32>
    %626 = vector.shape_cast %623 : vector<16x32xf32> to vector<1x1x16x32xf32>
    tpu.vector_store %arg7[%c1_600, %c7_601, %c0_602, %c32_603], %626 {strides = array<i32>} : memref<2x8x16x64xf32, #tpu.memory_space<vmem>>, vector<1x1x16x32xf32>,
    return
  }
  func.func @transform_0(%arg0: i32) -> (i32, i32, i32, i32) {
    %c0_i32 = arith.constant 0 : i32
    %c0_i32_0 = arith.constant 0 : i32
    %c0_i32_1 = arith.constant 0 : i32
    %c0_i32_2 = arith.constant 0 : i32
    return %arg0, %c0_i32, %c0_i32_0, %c0_i32_1 : i32, i32, i32, i32
  }
  func.func @transform_1(%arg0: i32) -> (i32, i32) {
    %c0_i32 = arith.constant 0 : i32
    %c0_i32_0 = arith.constant 0 : i32
    %c0_i32_1 = arith.constant 0 : i32
    return %c0_i32, %c0_i32_0 : i32, i32
  }
  func.func @transform_2(%arg0: i32) -> i32 {
    %c0_i32 = arith.constant 0 : i32
    %c0_i32_0 = arith.constant 0 : i32
    return %c0_i32 : i32
  }
  func.func @transform_3(%arg0: i32) -> (i32, i32) {
    %c0_i32 = arith.constant 0 : i32
    %c0_i32_0 = arith.constant 0 : i32
    %c0_i32_1 = arith.constant 0 : i32
    return %c0_i32, %c0_i32_0 : i32, i32
  }
  func.func @transform_4(%arg0: i32) -> (i32, i32) {
    %c0_i32 = arith.constant 0 : i32
    %c0_i32_0 = arith.constant 0 : i32
    %c0_i32_1 = arith.constant 0 : i32
    return %c0_i32, %c0_i32_0 : i32, i32
  }
  func.func @transform_5(%arg0: i32) -> (i32, i32) {
    %c0_i32 = arith.constant 0 : i32
    %c0_i32_0 = arith.constant 0 : i32
    %c0_i32_1 = arith.constant 0 : i32
    return %c0_i32, %c0_i32_0 : i32, i32
  }
  func.func @transform_6(%arg0: i32) -> (i32, i32, i32, i32) {
    %c0_i32 = arith.constant 0 : i32
    %c0_i32_0 = arith.constant 0 : i32
    %c0_i32_1 = arith.constant 0 : i32
    %c0_i32_2 = arith.constant 0 : i32
    return %arg0, %c0_i32, %c0_i32_0, %c0_i32_1 : i32, i32, i32, i32
  }
}

</mosaic_0001>

<llo_original>
// kernel: tpu_custom_call.1
$region0: #{tpu_custom_call.1}
  #allocation0 [shape = 'u32[]', space=smem, size = 0x4, offset = 0x4, fixed_abs, tag = 'smem constant byte address 0x4 - core index']
  #allocation1 [shape = 'u32[144,128]{1,0:T(1,128)}', space=vmem, size = 0x12000, scoped, tag = 'internal scratch']
  %s0 = inlined_call_operand.hbm [shape: f32[2,4,16,16], index: 0, kind: input, shape index: {}]
  %s1 = inlined_call_operand.hbm [shape: f32[8,4], index: 1, kind: input, shape index: {}]
  %s2 = inlined_call_operand.hbm [shape: f32[8], index: 2, kind: input, shape index: {}]
  %s3 = inlined_call_operand.hbm [shape: f32[16,16], index: 3, kind: input, shape index: {}]
  %s4 = inlined_call_operand.hbm [shape: f32[16,16], index: 4, kind: input, shape index: {}]
  %s5 = inlined_call_operand.hbm [shape: f32[16,32], index: 5, kind: input, shape index: {}]
  %s6 = inlined_call_operand.hbm [shape: f32[2,8,16,64], index: 6, kind: output, shape index: {}]
  %s7 = sld [smem:[#allocation0]]
  $region58: #{tpu_custom_call.1} parent=0
    _
  %s9 = ssub.s32 1, %s7
  %s10 = scalar_select 0, %s9, %s7
  $region1: #{tpu_custom_call.1} parent=0
    #allocation2 [shape = 'u8[65536]{0}', space=vmem, size = 0x10000, scoped, tag = 'input window, operand 0, single buffered']
    #allocation3 [shape = 's32[1]{0}', space=sflag, size = 0x4, scoped, tag = 'scoped memory for tpu_custom_call.1']
    #allocation4 [shape = 's32[1]{0}', space=sflag, size = 0x4, scoped, tag = 'scoped memory for tpu_custom_call.1']
    #allocation5 [shape = 's32[1]{0}', space=sflag, size = 0x4, scoped, tag = 'scoped memory for tpu_custom_call.1']
    #allocation6 [shape = 'u8[4096]{0}', space=smem, size = 0x1000, scoped, tag = 'input window, operand 1, single buffered']
    #allocation7 [shape = 'u8[512]{0}', space=smem, size = 0x200, scoped, tag = 'input window, operand 2, single buffered']
    #allocation8 [shape = 's32[1]{0}', space=sflag, size = 0x4, scoped, tag = 'scoped memory for tpu_custom_call.1']
    #allocation9 [shape = 'u8[8192]{0}', space=vmem, size = 0x2000, scoped, tag = 'input window, operand 3, single buffered']
    #allocation10 [shape = 's32[1]{0}', space=sflag, size = 0x4, scoped, tag = 'scoped memory for tpu_custom_call.1']
    #allocation11 [shape = 'u8[8192]{0}', space=vmem, size = 0x2000, scoped, tag = 'input window, operand 4, single buffered']
    #allocation12 [shape = 'u8[8192]{0}', space=vmem, size = 0x2000, scoped, tag = 'input window, operand 5, single buffered']
    #allocation13 [shape = 's32[1]{0}', space=sflag, size = 0x4, scoped, tag = 'scoped memory for tpu_custom_call.1']
    #allocation14 [shape = 'u8[131072]{0}', space=vmem, size = 0x20000, scoped, tag = 'output window, operand 0, single buffered']
    %11 = vsyncpa [#allocation3], 0
    %12 = vsyncpa [#allocation5], 0
    %13 = vsyncpa [#allocation8], 0
    %14 = vsyncpa [#allocation10], 0
    %15 = vsyncpa [#allocation13], 0
    %16 = vsyncpa [#allocation4], 0
    // Predicated region
    $region2: #{tpu_custom_call.1} parent=1 // pred_check
      _
    $region3: #{tpu_custom_call.1} parent=1 // pred_check_branch
      %18 = sbr.rel (0) target = $region5
    $region4: #{tpu_custom_call.1} parent=1 // pred_region
      %s20 = ssub.s32 2048, 2048
      %21 = vsyncadd [#allocation3], %s20
      %s22 = sshll.u32 [#allocation2], 4
      %s23 = int_to_ptr.vmem [resolvable:$true] %s22
      %28 = dma.hbm_to_vmem [thread:$0]  %s0, 2048, %s23, [#allocation3], 128, 128, 8
    $region5: #{tpu_custom_call.1} parent=1 // pred_fallthru
      _
    // Predicated region
    $region6: #{tpu_custom_call.1} parent=1 // pred_check
      _
    $region7: #{tpu_custom_call.1} parent=1 // pred_check_branch
      %30 = sbr.rel (0) target = $region9
    $region8: #{tpu_custom_call.1} parent=1 // pred_region
      %s32 = ssub.s32 128, 128
      %33 = vsyncadd [#allocation5], %s32
      %36 = dma.hbm_to_smem %s1, 128, [#allocation6], [#allocation5]
    $region9: #{tpu_custom_call.1} parent=1 // pred_fallthru
      _
    // Predicated region
    $region10: #{tpu_custom_call.1} parent=1 // pred_check
      _
    $region11: #{tpu_custom_call.1} parent=1 // pred_check_branch
      %38 = sbr.rel (0) target = $region13
    $region12: #{tpu_custom_call.1} parent=1 // pred_region
      %s40 = ssub.s32 16, 16
      %41 = vsyncadd [#allocation8], %s40
      %44 = dma.hbm_to_smem %s2, 16, [#allocation7], [#allocation8]
    $region13: #{tpu_custom_call.1} parent=1 // pred_fallthru
      _
    // Predicated region
    $region14: #{tpu_custom_call.1} parent=1 // pred_check
      _
    $region15: #{tpu_custom_call.1} parent=1 // pred_check_branch
      %46 = sbr.rel (0) target = $region17
    $region16: #{tpu_custom_call.1} parent=1 // pred_region
      %s48 = ssub.s32 256, 256
      %49 = vsyncadd [#allocation10], %s48
      %s50 = sshll.u32 [#allocation9], 4
      %s51 = int_to_ptr.vmem [resolvable:$true] %s50
      %56 = dma.hbm_to_vmem [thread:$0]  %s3, 256, %s51, [#allocation10], 128, 128, 8
    $region17: #{tpu_custom_call.1} parent=1 // pred_fallthru
      _
    // Predicated region
    $region18: #{tpu_custom_call.1} parent=1 // pred_check
      _
    $region19: #{tpu_custom_call.1} parent=1 // pred_check_branch
      %58 = sbr.rel (0) target = $region21
    $region20: #{tpu_custom_call.1} parent=1 // pred_region
      %s60 = ssub.s32 256, 256
      %61 = vsyncadd [#allocation10], %s60
      %s62 = sshll.u32 [#allocation11], 4
      %s63 = int_to_ptr.vmem [resolvable:$true] %s62
      %68 = dma.hbm_to_vmem [thread:$0]  %s4, 256, %s63, [#allocation10], 128, 128, 8
    $region21: #{tpu_custom_call.1} parent=1 // pred_fallthru
      _
    // Predicated region
    $region22: #{tpu_custom_call.1} parent=1 // pred_check
      _
    $region23: #{tpu_custom_call.1} parent=1 // pred_check_branch
      %70 = sbr.rel (0) target = $region25
    $region24: #{tpu_custom_call.1} parent=1 // pred_region
      %s72 = ssub.s32 256, 256
      %73 = vsyncadd [#allocation13], %s72
      %s74 = sshll.u32 [#allocation12], 4
      %s75 = int_to_ptr.vmem [resolvable:$true] %s74
      %80 = dma.hbm_to_vmem [thread:$0]  %s5, 256, %s75, [#allocation13], 128, 128, 8
    $region25: #{tpu_custom_call.1} parent=1 // pred_fallthru
      _
    // Predicated region
    $region26: #{tpu_custom_call.1} parent=1 // pred_check
      _
    $region27: #{tpu_custom_call.1} parent=1 // pred_check_branch
      %82 = sbr.rel (0) target = $region29
    $region28: #{tpu_custom_call.1} parent=1 // pred_region
      %83 = dma.done [#allocation3], 2048
    $region29: #{tpu_custom_call.1} parent=1 // pred_fallthru
      _
    // Predicated region
    $region30: #{tpu_custom_call.1} parent=1 // pred_check
      _
    $region31: #{tpu_custom_call.1} parent=1 // pred_check_branch
      %85 = sbr.rel (0) target = $region33
    $region32: #{tpu_custom_call.1} parent=1 // pred_region
      %86 = dma.done [#allocation5], 128
    $region33: #{tpu_custom_call.1} parent=1 // pred_fallthru
      _
    // Predicated region
    $region34: #{tpu_custom_call.1} parent=1 // pred_check
      _
    $region35: #{tpu_custom_call.1} parent=1 // pred_check_branch
      %88 = sbr.rel (0) target = $region37
    $region36: #{tpu_custom_call.1} parent=1 // pred_region
      %89 = dma.done [#allocation8], 16
    $region37: #{tpu_custom_call.1} parent=1 // pred_fallthru
      _
    // Predicated region
    $region38: #{tpu_custom_call.1} parent=1 // pred_check
      _
    $region39: #{tpu_custom_call.1} parent=1 // pred_check_branch
      %91 = sbr.rel (0) target = $region41
    $region40: #{tpu_custom_call.1} parent=1 // pred_region
      %92 = dma.done [#allocation10], 256
    $region41: #{tpu_custom_call.1} parent=1 // pred_fallthru
      _
    // Predicated region
    $region42: #{tpu_custom_call.1} parent=1 // pred_check
      _
    $region43: #{tpu_custom_call.1} parent=1 // pred_check_branch
      %94 = sbr.rel (0) target = $region45
    $region44: #{tpu_custom_call.1} parent=1 // pred_region
      %95 = dma.done [#allocation10], 256
    $region45: #{tpu_custom_call.1} parent=1 // pred_fallthru
      _
    // Predicated region
    $region46: #{tpu_custom_call.1} parent=1 // pred_check
      _
    $region47: #{tpu_custom_call.1} parent=1 // pred_check_branch
      %97 = sbr.rel (0) target = $region49
    $region48: #{tpu_custom_call.1} parent=1 // pred_region
      %98 = dma.done [#allocation13], 256
    $region49: #{tpu_custom_call.1} parent=1 // pred_fallthru
      _
    %99 = sfence
    %v100 = vld [vmem:[#allocation9] sm:$0xff]
    %v101 = vld [vmem:[#allocation9 + $0x8] sm:$0xff]
    %v102 = vld [vmem:[#allocation11] sm:$0xff]
    %v103 = vld [vmem:[#allocation11 + $0x8] sm:$0xff]
    %v104 = vld [vmem:[#allocation12] sm:$0xff]
    %v105 = vld [vmem:[#allocation12 + $0x8] sm:$0xff]
    %v106 = vld [vmem:[#allocation2] sm:$0xff]
    %v107 = vld [vmem:[#allocation2 + $0x8] sm:$0xff]
    %s108 = sld [smem:[#allocation6]]
    %v109 = vstv %s108
    %v110 = vmul.f32 %v106, %v109
    %v111 = vmul.f32 %v107, %v109
    %s112 = scalar_lea.vmem [#allocation2], 16
    %v113 = vld [vmem:[%s112] sm:$0xff]
    %v114 = vld [vmem:[%s112 + $0x8] sm:$0xff]
    %s115 = sld [smem:[#allocation6 + $0x1]]
    %v116 = vstv %s115
    %v117 = vmul.f32 %v113, %v116
    %v118 = vmul.f32 %v114, %v116
    %v119 = vadd.f32 %v110, %v117
    %v120 = vadd.f32 %v111, %v118
    %s121 = scalar_lea.vmem [#allocation2], 32
    %v122 = vld [vmem:[%s121] sm:$0xff]
    %v123 = vld [vmem:[%s121 + $0x8] sm:$0xff]
    %s124 = sld [smem:[#allocation6 + $0x2]]
    %v125 = vstv %s124
    %v126 = vmul.f32 %v122, %v125
    %v127 = vmul.f32 %v123, %v125
    %v128 = vadd.f32 %v119, %v126
    %v129 = vadd.f32 %v120, %v127
    %s130 = scalar_lea.vmem [#allocation2], 48
    %v131 = vld [vmem:[%s130] sm:$0xff]
    %v132 = vld [vmem:[%s130 + $0x8] sm:$0xff]
    %s133 = sld [smem:[#allocation6 + $0x3]]
    %v134 = vstv %s133
    %v135 = vmul.f32 %v131, %v134
    %v136 = vmul.f32 %v132, %v134
    %v137 = vadd.f32 %v128, %v135
    %v138 = vadd.f32 %v129, %v136
    %s139 = sld [smem:[#allocation7]]
    %v140 = vstv %s139
    %v141 = vadd.f32 %v137, %v140
    %v142 = vadd.f32 %v138, %v140
    %vm143 = vcmask 130048
    %v145 = vsel %vm143, %v141, 0
    %v148 = vsel %vm143, %v142, 0
    %150 = vmatprep.subr.mxu0 0.0
    %151 = vmatpush1.msra.mxu0 %v104
    %152 = vmatprep.subr.mxu0 0.0
    %153 = vmatpush1.msra.mxu0 %v105
    %154 = vmatprep.subr.mxu0 0.0
    %155 = vmatpush1.msra.mxu0 0.0
    %156 = vmatprep.subr.mxu0 0.0
    %157 = vmatpush1.msra.mxu0 0.0
    %158 = vmatprep.subr.mxu0 0.0
    %159 = vmatpush1.msra.mxu0 0.0
    %160 = vmatprep.subr.mxu0 0.0
    %161 = vmatpush1.msra.mxu0 0.0
    %162 = vmatprep.subr.mxu0 0.0
    %163 = vmatpush1.msra.mxu0 0.0
    %164 = vmatprep.subr.mxu0 0.0
    %165 = vmatpush1.msra.mxu0 0.0
    %166 = vmatprep.subr.mxu0 0.0
    %167 = vmatpush1.msra.mxu0 0.0
    %168 = vmatprep.subr.mxu0 0.0
    %169 = vmatpush1.msra.mxu0 0.0
    %170 = vmatprep.subr.mxu0 0.0
    %171 = vmatpush1.msra.mxu0 0.0
    %172 = vmatprep.subr.mxu0 0.0
    %173 = vmatpush1.msra.mxu0 0.0
    %174 = vmatprep.subr.mxu0 0.0
    %175 = vmatpush1.msra.mxu0 0.0
    %176 = vmatprep.subr.mxu0 0.0
    %177 = vmatpush1.msra.mxu0 0.0
    %178 = vmatprep.subr.mxu0 0.0
    %179 = vmatpush1.msra.mxu0 0.0
    %180 = vmatprep.subr.mxu0 0.0
    %181 = vmatpush1.msra.mxu0 0.0
    %182 = vmatprep.subr.mxu0 0.0
    %183 = vmatpush1.msra.mxu0 0.0
    %184 = vmatprep.subr.mxu0 0.0
    %185 = vmatpush1.msra.mxu0 0.0
    %186 = vmatprep.subr.mxu0 0.0
    %187 = vmatpush1.msra.mxu0 0.0
    %188 = vmatprep.subr.mxu0 0.0
    %189 = vmatpush1.msra.mxu0 0.0
    %190 = vmatprep.subr.mxu0 0.0
    %191 = vmatpush1.msra.mxu0 0.0
    %192 = vmatprep.subr.mxu0 0.0
    %193 = vmatpush1.msra.mxu0 0.0
    %194 = vmatprep.subr.mxu0 0.0
    %195 = vmatpush1.msra.mxu0 0.0
    %196 = vmatprep.subr.mxu0 0.0
    %197 = vmatpush1.msra.mxu0 0.0
    %198 = vmatprep.subr.mxu0 0.0
    %199 = vmatpush1.msra.mxu0 0.0
    %200 = vmatprep.subr.mxu0 0.0
    %201 = vmatpush1.msra.mxu0 0.0
    %202 = vmatprep.subr.mxu0 0.0
    %203 = vmatpush1.msra.mxu0 0.0
    %204 = vmatprep.subr.mxu0 0.0
    %205 = vmatpush1.msra.mxu0 0.0
    %206 = vmatprep.subr.mxu0 0.0
    %207 = vmatpush1.msra.mxu0 0.0
    %208 = vmatprep.subr.mxu0 0.0
    %209 = vmatpush1.msra.mxu0 0.0
    %210 = vmatprep.subr.mxu0 0.0
    %211 = vmatpush1.msra.mxu0 0.0
    %212 = vmatprep.subr.mxu0 0.0
    %213 = vmatpush1.msra.mxu0 0.0
    %214 = vmatprep.mubr.f32.mxu0 0.0
    %215 = vmatmul.mubr.f32.gmra.mrb[0].mxu0 %v145
    %v216 = vpop.f32.mrb[0].mxu0
    %v217 = vadd.f32 0.0, %v216
    %v218 = vpop.f32.mrb[0].mxu0
    %219 = vmatprep.mubr.f32.mxu0 0.0
    %220 = vmatmul.mubr.f32.gmra.mrb[0].mxu0 %v148
    %v221 = vpop.f32.mrb[0].mxu0
    %v222 = vadd.f32 0.0, %v221
    %v223 = vpop.f32.mrb[0].mxu0
    %224 = vdwg.mxu0
    %v226 = vsel %vm143, %v100, 0
    %v229 = vsel %vm143, %v101, 0
    %231 = vmatprep.subr.mxu0 0.0
    %232 = vmatpush1.msra.mxu0 %v217
    %233 = vmatprep.subr.mxu0 0.0
    %234 = vmatpush1.msra.mxu0 %v222
    %235 = vmatprep.subr.mxu0 0.0
    %236 = vmatpush1.msra.mxu0 0.0
    %237 = vmatprep.subr.mxu0 0.0
    %238 = vmatpush1.msra.mxu0 0.0
    %239 = vmatprep.subr.mxu0 0.0
    %240 = vmatpush1.msra.mxu0 0.0
    %241 = vmatprep.subr.mxu0 0.0
    %242 = vmatpush1.msra.mxu0 0.0
    %243 = vmatprep.subr.mxu0 0.0
    %244 = vmatpush1.msra.mxu0 0.0
    %245 = vmatprep.subr.mxu0 0.0
    %246 = vmatpush1.msra.mxu0 0.0
    %247 = vmatprep.subr.mxu0 0.0
    %248 = vmatpush1.msra.mxu0 0.0
    %249 = vmatprep.subr.mxu0 0.0
    %250 = vmatpush1.msra.mxu0 0.0
    %251 = vmatprep.subr.mxu0 0.0
    %252 = vmatpush1.msra.mxu0 0.0
    %253 = vmatprep.subr.mxu0 0.0
    %254 = vmatpush1.msra.mxu0 0.0
    %255 = vmatprep.subr.mxu0 0.0
    %256 = vmatpush1.msra.mxu0 0.0
    %257 = vmatprep.subr.mxu0 0.0
    %258 = vmatpush1.msra.mxu0 0.0
    %259 = vmatprep.subr.mxu0 0.0
    %260 = vmatpush1.msra.mxu0 0.0
    %261 = vmatprep.subr.mxu0 0.0
    %262 = vmatpush1.msra.mxu0 0.0
    %263 = vmatprep.subr.mxu0 0.0
    %264 = vmatpush1.msra.mxu0 0.0
    %265 = vmatprep.subr.mxu0 0.0
    %266 = vmatpush1.msra.mxu0 0.0
    %267 = vmatprep.subr.mxu0 0.0
    %268 = vmatpush1.msra.mxu0 0.0
    %269 = vmatprep.subr.mxu0 0.0
    %270 = vmatpush1.msra.mxu0 0.0
    %271 = vmatprep.subr.mxu0 0.0
    %272 = vmatpush1.msra.mxu0 0.0
    %273 = vmatprep.subr.mxu0 0.0
    %274 = vmatpush1.msra.mxu0 0.0
    %275 = vmatprep.subr.mxu0 0.0
    %276 = vmatpush1.msra.mxu0 0.0
    %277 = vmatprep.subr.mxu0 0.0
    %278 = vmatpush1.msra.mxu0 0.0
    %279 = vmatprep.subr.mxu0 0.0
    %280 = vmatpush1.msra.mxu0 0.0
    %281 = vmatprep.subr.mxu0 0.0
    %282 = vmatpush1.msra.mxu0 0.0
    %283 = vmatprep.subr.mxu0 0.0
    %284 = vmatpush1.msra.mxu0 0.0
    %285 = vmatprep.subr.mxu0 0.0
    %286 = vmatpush1.msra.mxu0 0.0
    %287 = vmatprep.subr.mxu0 0.0
    %288 = vmatpush1.msra.mxu0 0.0
    %289 = vmatprep.subr.mxu0 0.0
    %290 = vmatpush1.msra.mxu0 0.0
    %291 = vmatprep.subr.mxu0 0.0
    %292 = vmatpush1.msra.mxu0 0.0
    %293 = vmatprep.subr.mxu0 0.0
    %294 = vmatpush1.msra.mxu0 0.0
    %295 = vmatprep.mubr.f32.mxu0 0.0
    %296 = vmatmul.mubr.f32.gmra.mrb[0].mxu0 %v226
    %v297 = vpop.f32.mrb[0].mxu0
    %v298 = vadd.f32 0.0, %v297
    %v299 = vpop.f32.mrb[0].mxu0
    %300 = vmatprep.mubr.f32.mxu0 0.0
    %301 = vmatmul.mubr.f32.gmra.mrb[0].mxu0 %v229
    %v302 = vpop.f32.mrb[0].mxu0
    %v303 = vadd.f32 0.0, %v302
    %v304 = vpop.f32.mrb[0].mxu0
    %305 = vdwg.mxu0
    %v307 = vsel %vm143, %v102, 0
    %v310 = vsel %vm143, %v103, 0
    %312 = vmatprep.subr.mxu0 0.0
    %313 = vmatpush1.msra.mxu0 %v217
    %314 = vmatprep.subr.mxu0 0.0
    %315 = vmatpush1.msra.mxu0 %v222
    %316 = vmatprep.subr.mxu0 0.0
    %317 = vmatpush1.msra.mxu0 0.0
    %318 = vmatprep.subr.mxu0 0.0
    %319 = vmatpush1.msra.mxu0 0.0
    %320 = vmatprep.subr.mxu0 0.0
    %321 = vmatpush1.msra.mxu0 0.0
    %322 = vmatprep.subr.mxu0 0.0
    %323 = vmatpush1.msra.mxu0 0.0
    %324 = vmatprep.subr.mxu0 0.0
    %325 = vmatpush1.msra.mxu0 0.0
    %326 = vmatprep.subr.mxu0 0.0
    %327 = vmatpush1.msra.mxu0 0.0
    %328 = vmatprep.subr.mxu0 0.0
    %329 = vmatpush1.msra.mxu0 0.0
    %330 = vmatprep.subr.mxu0 0.0
    %331 = vmatpush1.msra.mxu0 0.0
    %332 = vmatprep.subr.mxu0 0.0
    %333 = vmatpush1.msra.mxu0 0.0
    %334 = vmatprep.subr.mxu0 0.0
    %335 = vmatpush1.msra.mxu0 0.0
    %336 = vmatprep.subr.mxu0 0.0
    %337 = vmatpush1.msra.mxu0 0.0
    %338 = vmatprep.subr.mxu0 0.0
    %339 = vmatpush1.msra.mxu0 0.0
    %340 = vmatprep.subr.mxu0 0.0
    %341 = vmatpush1.msra.mxu0 0.0
    %342 = vmatprep.subr.mxu0 0.0
    %343 = vmatpush1.msra.mxu0 0.0
    %344 = vmatprep.subr.mxu0 0.0
    %345 = vmatpush1.msra.mxu0 0.0
    %346 = vmatprep.subr.mxu0 0.0
    %347 = vmatpush1.msra.mxu0 0.0
    %348 = vmatprep.subr.mxu0 0.0
    %349 = vmatpush1.msra.mxu0 0.0
    %350 = vmatprep.subr.mxu0 0.0
    %351 = vmatpush1.msra.mxu0 0.0
    %352 = vmatprep.subr.mxu0 0.0
    %353 = vmatpush1.msra.mxu0 0.0
    %354 = vmatprep.subr.mxu0 0.0
    %355 = vmatpush1.msra.mxu0 0.0
    %356 = vmatprep.subr.mxu0 0.0
    %357 = vmatpush1.msra.mxu0 0.0
    %358 = vmatprep.subr.mxu0 0.0
    %359 = vmatpush1.msra.mxu0 0.0
    %360 = vmatprep.subr.mxu0 0.0
    %361 = vmatpush1.msra.mxu0 0.0
    %362 = vmatprep.subr.mxu0 0.0
    %363 = vmatpush1.msra.mxu0 0.0
    %364 = vmatprep.subr.mxu0 0.0
    %365 = vmatpush1.msra.mxu0 0.0
    %366 = vmatprep.subr.mxu0 0.0
    %367 = vmatpush1.msra.mxu0 0.0
    %368 = vmatprep.subr.mxu0 0.0
    %369 = vmatpush1.msra.mxu0 0.0
    %370 = vmatprep.subr.mxu0 0.0
    %371 = vmatpush1.msra.mxu0 0.0
    %372 = vmatprep.subr.mxu0 0.0
    %373 = vmatpush1.msra.mxu0 0.0
    %374 = vmatprep.subr.mxu0 0.0
    %375 = vmatpush1.msra.mxu0 0.0
    %376 = vmatprep.mubr.f32.mxu0 0.0
    %377 = vmatmul.mubr.f32.gmra.mrb[0].mxu0 %v307
    %v378 = vpop.f32.mrb[0].mxu0
    %v379 = vadd.f32 0.0, %v378
    %v380 = vpop.f32.mrb[0].mxu0
    %381 = vmatprep.mubr.f32.mxu0 0.0
    %382 = vmatmul.mubr.f32.gmra.mrb[0].mxu0 %v310
    %v383 = vpop.f32.mrb[0].mxu0
    %v384 = vadd.f32 0.0, %v383
    %v385 = vpop.f32.mrb[0].mxu0
    %386 = vdwg.mxu0
    %v387 = vmax.f32 %v298, 0.0
    %v388 = vmax.f32 %v303, 0.0
    %vm389 = vcmask 261120
    %390 = vst.msk [vmem:[#allocation14] sm:$0xff] %vm389, %v387
    %391 = vst.msk [vmem:[#allocation14 + $0x8] sm:$0xff] %vm389, %v388
    %v392 = vmax.f32 %v379, 0.0
    %v393 = vmax.f32 %v384, 0.0
    %396 = vrot.lane.b32.xlu0 %v392, 32
    %v397 = vpop.permute.xlu0 %396
    %398 = vrot.lane.b32.xlu0 %v393, 32
    %v399 = vpop.permute.xlu0 %398
    %vm402 = vcmask 523520
    %403 = vst.msk [vmem:[#allocation14] sm:$0xff] %vm402, %v397
    %404 = vst.msk [vmem:[#allocation14 + $0x8] sm:$0xff] %vm402, %v399
    %v405 = vld [vmem:[#allocation2] sm:$0xff]
    %v406 = vld [vmem:[#allocation2 + $0x8] sm:$0xff]
    %s407 = sld [smem:[#allocation6 + $0x80]]
    %v408 = vstv %s407
    %v409 = vmul.f32 %v405, %v408
    %v410 = vmul.f32 %v406, %v408
    %v411 = vld [vmem:[%s112] sm:$0xff]
    %v412 = vld [vmem:[%s112 + $0x8] sm:$0xff]
    %s413 = sld [smem:[#allocation6 + $0x81]]
    %v414 = vstv %s413
    %v415 = vmul.f32 %v411, %v414
    %v416 = vmul.f32 %v412, %v414
    %v417 = vadd.f32 %v409, %v415
    %v418 = vadd.f32 %v410, %v416
    %v419 = vld [vmem:[%s121] sm:$0xff]
    %v420 = vld [vmem:[%s121 + $0x8] sm:$0xff]
    %s421 = sld [smem:[#allocation6 + $0x82]]
    %v422 = vstv %s421
    %v423 = vmul.f32 %v419, %v422
    %v424 = vmul.f32 %v420, %v422
    %v425 = vadd.f32 %v417, %v423
    %v426 = vadd.f32 %v418, %v424
    %v427 = vld [vmem:[%s130] sm:$0xff]
    %v428 = vld [vmem:[%s130 + $0x8] sm:$0xff]
    %s429 = sld [smem:[#allocation6 + $0x83]]
    %v430 = vstv %s429
    %v431 = vmul.f32 %v427, %v430
    %v432 = vmul.f32 %v428, %v430
    %v433 = vadd.f32 %v425, %v431
    %v434 = vadd.f32 %v426, %v432
    %s435 = sld [smem:[#allocation7 + $0x1]]
    %v436 = vstv %s435
    %v437 = vadd.f32 %v433, %v436
    %v438 = vadd.f32 %v434, %v436
    %v440 = vsel %vm143, %v437, 0
    %v443 = vsel %vm143, %v438, 0
    %445 = vmatprep.subr.mxu0 0.0
    %446 = vmatpush1.msra.mxu0 %v104
    %447 = vmatprep.subr.mxu0 0.0
    %448 = vmatpush1.msra.mxu0 %v105
    %449 = vmatprep.subr.mxu0 0.0
    %450 = vmatpush1.msra.mxu0 0.0
    %451 = vmatprep.subr.mxu0 0.0
    %452 = vmatpush1.msra.mxu0 0.0
    %453 = vmatprep.subr.mxu0 0.0
    %454 = vmatpush1.msra.mxu0 0.0
    %455 = vmatprep.subr.mxu0 0.0
    %456 = vmatpush1.msra.mxu0 0.0
    %457 = vmatprep.subr.mxu0 0.0
    %458 = vmatpush1.msra.mxu0 0.0
    %459 = vmatprep.subr.mxu0 0.0
    %460 = vmatpush1.msra.mxu0 0.0
    %461 = vmatprep.subr.mxu0 0.0
    %462 = vmatpush1.msra.mxu0 0.0
    %463 = vmatprep.subr.mxu0 0.0
    %464 = vmatpush1.msra.mxu0 0.0
    %465 = vmatprep.subr.mxu0 0.0
    %466 = vmatpush1.msra.mxu0 0.0
    %467 = vmatprep.subr.mxu0 0.0
    %468 = vmatpush1.msra.mxu0 0.0
    %469 = vmatprep.subr.mxu0 0.0
    %470 = vmatpush1.msra.mxu0 0.0
    %471 = vmatprep.subr.mxu0 0.0
    %472 = vmatpush1.msra.mxu0 0.0
    %473 = vmatprep.subr.mxu0 0.0
    %474 = vmatpush1.msra.mxu0 0.0
    %475 = vmatprep.subr.mxu0 0.0
    %476 = vmatpush1.msra.mxu0 0.0
    %477 = vmatprep.subr.mxu0 0.0
    %478 = vmatpush1.msra.mxu0 0.0
    %479 = vmatprep.subr.mxu0 0.0
    %480 = vmatpush1.msra.mxu0 0.0
    %481 = vmatprep.subr.mxu0 0.0
    %482 = vmatpush1.msra.mxu0 0.0
    %483 = vmatprep.subr.mxu0 0.0
    %484 = vmatpush1.msra.mxu0 0.0
    %485 = vmatprep.subr.mxu0 0.0
    %486 = vmatpush1.msra.mxu0 0.0
    %487 = vmatprep.subr.mxu0 0.0
    %488 = vmatpush1.msra.mxu0 0.0
    %489 = vmatprep.subr.mxu0 0.0
    %490 = vmatpush1.msra.mxu0 0.0
    %491 = vmatprep.subr.mxu0 0.0
    %492 = vmatpush1.msra.mxu0 0.0
    %493 = vmatprep.subr.mxu0 0.0
    %494 = vmatpush1.msra.mxu0 0.0
    %495 = vmatprep.subr.mxu0 0.0
    %496 = vmatpush1.msra.mxu0 0.0
    %497 = vmatprep.subr.mxu0 0.0
    %498 = vmatpush1.msra.mxu0 0.0
    %499 = vmatprep.subr.mxu0 0.0
    %500 = vmatpush1.msra.mxu0 0.0
    %501 = vmatprep.subr.mxu0 0.0
    %502 = vmatpush1.msra.mxu0 0.0
    %503 = vmatprep.subr.mxu0 0.0
    %504 = vmatpush1.msra.mxu0 0.0
    %505 = vmatprep.subr.mxu0 0.0
    %506 = vmatpush1.msra.mxu0 0.0
    %507 = vmatprep.subr.mxu0 0.0
    %508 = vmatpush1.msra.mxu0 0.0
    %509 = vmatprep.mubr.f32.mxu0 0.0
    %510 = vmatmul.mubr.f32.gmra.mrb[0].mxu0 %v440
    %v511 = vpop.f32.mrb[0].mxu0
    %v512 = vadd.f32 0.0, %v511
    %v513 = vpop.f32.mrb[0].mxu0
    %514 = vmatprep.mubr.f32.mxu0 0.0
    %515 = vmatmul.mubr.f32.gmra.mrb[0].mxu0 %v443
    %v516 = vpop.f32.mrb[0].mxu0
    %v517 = vadd.f32 0.0, %v516
    %v518 = vpop.f32.mrb[0].mxu0
    %519 = vdwg.mxu0
    %520 = vmatprep.subr.mxu0 0.0
    %521 = vmatpush1.msra.mxu0 %v512
    %522 = vmatprep.subr.mxu0 0.0
    %523 = vmatpush1.msra.mxu0 %v517
    %524 = vmatprep.subr.mxu0 0.0
    %525 = vmatpush1.msra.mxu0 0.0
    %526 = vmatprep.subr.mxu0 0.0
    %527 = vmatpush1.msra.mxu0 0.0
    %528 = vmatprep.subr.mxu0 0.0
    %529 = vmatpush1.msra.mxu0 0.0
    %530 = vmatprep.subr.mxu0 0.0
    %531 = vmatpush1.msra.mxu0 0.0
    %532 = vmatprep.subr.mxu0 0.0
    %533 = vmatpush1.msra.mxu0 0.0
    %534 = vmatprep.subr.mxu0 0.0
    %535 = vmatpush1.msra.mxu0 0.0
    %536 = vmatprep.subr.mxu0 0.0
    %537 = vmatpush1.msra.mxu0 0.0
    %538 = vmatprep.subr.mxu0 0.0
    %539 = vmatpush1.msra.mxu0 0.0
    %540 = vmatprep.subr.mxu0 0.0
    %541 = vmatpush1.msra.mxu0 0.0
    %542 = vmatprep.subr.mxu0 0.0
    %543 = vmatpush1.msra.mxu0 0.0
    %544 = vmatprep.subr.mxu0 0.0
    %545 = vmatpush1.msra.mxu0 0.0
    %546 = vmatprep.subr.mxu0 0.0
    %547 = vmatpush1.msra.mxu0 0.0
    %548 = vmatprep.subr.mxu0 0.0
    %549 = vmatpush1.msra.mxu0 0.0
    %550 = vmatprep.subr.mxu0 0.0
    %551 = vmatpush1.msra.mxu0 0.0
    %552 = vmatprep.subr.mxu0 0.0
    %553 = vmatpush1.msra.mxu0 0.0
    %554 = vmatprep.subr.mxu0 0.0
    %555 = vmatpush1.msra.mxu0 0.0
    %556 = vmatprep.subr.mxu0 0.0
    %557 = vmatpush1.msra.mxu0 0.0
    %558 = vmatprep.subr.mxu0 0.0
    %559 = vmatpush1.msra.mxu0 0.0
    %560 = vmatprep.subr.mxu0 0.0
    %561 = vmatpush1.msra.mxu0 0.0
    %562 = vmatprep.subr.mxu0 0.0
    %563 = vmatpush1.msra.mxu0 0.0
    %564 = vmatprep.subr.mxu0 0.0
    %565 = vmatpush1.msra.mxu0 0.0
    %566 = vmatprep.subr.mxu0 0.0
    %567 = vmatpush1.msra.mxu0 0.0
    %568 = vmatprep.subr.mxu0 0.0
    %569 = vmatpush1.msra.mxu0 0.0
    %570 = vmatprep.subr.mxu0 0.0
    %571 = vmatpush1.msra.mxu0 0.0
    %572 = vmatprep.subr.mxu0 0.0
    %573 = vmatpush1.msra.mxu0 0.0
    %574 = vmatprep.subr.mxu0 0.0
    %575 = vmatpush1.msra.mxu0 0.0
    %576 = vmatprep.subr.mxu0 0.0
    %577 = vmatpush1.msra.mxu0 0.0
    %578 = vmatprep.subr.mxu0 0.0
    %579 = vmatpush1.msra.mxu0 0.0
    %580 = vmatprep.subr.mxu0 0.0
    %581 = vmatpush1.msra.mxu0 0.0
    %582 = vmatprep.subr.mxu0 0.0
    %583 = vmatpush1.msra.mxu0 0.0
    %584 = vmatprep.mubr.f32.mxu0 0.0
    %585 = vmatmul.mubr.f32.gmra.mrb[0].mxu0 %v226
    %v586 = vpop.f32.mrb[0].mxu0
    %v587 = vadd.f32 0.0, %v586
    %v588 = vpop.f32.mrb[0].mxu0
    %589 = vmatprep.mubr.f32.mxu0 0.0
    %590 = vmatmul.mubr.f32.gmra.mrb[0].mxu0 %v229
    %v591 = vpop.f32.mrb[0].mxu0
    %v592 = vadd.f32 0.0, %v591
    %v593 = vpop.f32.mrb[0].mxu0
    %594 = vdwg.mxu0
    %595 = vmatprep.subr.mxu0 0.0
    %596 = vmatpush1.msra.mxu0 %v512
    %597 = vmatprep.subr.mxu0 0.0
    %598 = vmatpush1.msra.mxu0 %v517
    %599 = vmatprep.subr.mxu0 0.0
    %600 = vmatpush1.msra.mxu0 0.0
    %601 = vmatprep.subr.mxu0 0.0
    %602 = vmatpush1.msra.mxu0 0.0
    %603 = vmatprep.subr.mxu0 0.0
    %604 = vmatpush1.msra.mxu0 0.0
    %605 = vmatprep.subr.mxu0 0.0
    %606 = vmatpush1.msra.mxu0 0.0
    %607 = vmatprep.subr.mxu0 0.0
    %608 = vmatpush1.msra.mxu0 0.0
    %609 = vmatprep.subr.mxu0 0.0
    %610 = vmatpush1.msra.mxu0 0.0
    %611 = vmatprep.subr.mxu0 0.0
    %612 = vmatpush1.msra.mxu0 0.0
    %613 = vmatprep.subr.mxu0 0.0
    %614 = vmatpush1.msra.mxu0 0.0
    %615 = vmatprep.subr.mxu0 0.0
    %616 = vmatpush1.msra.mxu0 0.0
    %617 = vmatprep.subr.mxu0 0.0
    %618 = vmatpush1.msra.mxu0 0.0
    %619 = vmatprep.subr.mxu0 0.0
    %620 = vmatpush1.msra.mxu0 0.0
    %621 = vmatprep.subr.mxu0 0.0
    %622 = vmatpush1.msra.mxu0 0.0
    %623 = vmatprep.subr.mxu0 0.0
    %624 = vmatpush1.msra.mxu0 0.0
    %625 = vmatprep.subr.mxu0 0.0
    %626 = vmatpush1.msra.mxu0 0.0
    %627 = vmatprep.subr.mxu0 0.0
    %628 = vmatpush1.msra.mxu0 0.0
    %629 = vmatprep.subr.mxu0 0.0
    %630 = vmatpush1.msra.mxu0 0.0
    %631 = vmatprep.subr.mxu0 0.0
    %632 = vmatpush1.msra.mxu0 0.0
    %633 = vmatprep.subr.mxu0 0.0
    %634 = vmatpush1.msra.mxu0 0.0
    %635 = vmatprep.subr.mxu0 0.0
    %636 = vmatpush1.msra.mxu0 0.0
    %637 = vmatprep.subr.mxu0 0.0
    %638 = vmatpush1.msra.mxu0 0.0
    %639 = vmatprep.subr.mxu0 0.0
    %640 = vmatpush1.msra.mxu0 0.0
    %641 = vmatprep.subr.mxu0 0.0
    %642 = vmatpush1.msra.mxu0 0.0
    %643 = vmatprep.subr.mxu0 0.0
    %644 = vmatpush1.msra.mxu0 0.0
    %645 = vmatprep.subr.mxu0 0.0
    %646 = vmatpush1.msra.mxu0 0.0
    %647 = vmatprep.subr.mxu0 0.0
    %648 = vmatpush1.msra.mxu0 0.0
    %649 = vmatprep.subr.mxu0 0.0
    %650 = vmatpush1.msra.mxu0 0.0
    %651 = vmatprep.subr.mxu0 0.0
    %652 = vmatpush1.msra.mxu0 0.0
    %653 = vmatprep.subr.mxu0 0.0
    %654 = vmatpush1.msra.mxu0 0.0
    %655 = vmatprep.subr.mxu0 0.0
    %656 = vmatpush1.msra.mxu0 0.0
    %657 = vmatprep.subr.mxu0 0.0
    %658 = vmatpush1.msra.mxu0 0.0
    %659 = vmatprep.mubr.f32.mxu0 0.0
    %660 = vmatmul.mubr.f32.gmra.mrb[0].mxu0 %v307
    %v661 = vpop.f32.mrb[0].mxu0
    %v662 = vadd.f32 0.0, %v661
    %v663 = vpop.f32.mrb[0].mxu0
    %664 = vmatprep.mubr.f32.mxu0 0.0
    %665 = vmatmul.mubr.f32.gmra.mrb[0].mxu0 %v310
    %v666 = vpop.f32.mrb[0].mxu0
    %v667 = vadd.f32 0.0, %v666
    %v668 = vpop.f32.mrb[0].mxu0
    %669 = vdwg.mxu0
    %v670 = vmax.f32 %v587, 0.0
    %v671 = vmax.f32 %v592, 0.0
    %s672 = scalar_lea.vmem [#allocation14], 16
    %673 = vst.msk [vmem:[%s672] sm:$0xff] %vm389, %v670
    %674 = vst.msk [vmem:[%s672 + $0x8] sm:$0xff] %vm389, %v671
    %v675 = vmax.f32 %v662, 0.0
    %v676 = vmax.f32 %v667, 0.0
    %679 = vrot.lane.b32.xlu0 %v675, 32
    %v680 = vpop.permute.xlu0 %679
    %681 = vrot.lane.b32.xlu0 %v676, 32
    %v682 = vpop.permute.xlu0 %681
    %685 = vst.msk [vmem:[%s672] sm:$0xff] %vm402, %v680
    %686 = vst.msk [vmem:[%s672 + $0x8] sm:$0xff] %vm402, %v682
    %v687 = vld [vmem:[#allocation2] sm:$0xff]
    %v688 = vld [vmem:[#allocation2 + $0x8] sm:$0xff]
    %s689 = sld [smem:[#allocation6 + $0x100]]
    %v690 = vstv %s689
    %v691 = vmul.f32 %v687, %v690
    %v692 = vmul.f32 %v688, %v690
    %v693 = vld [vmem:[%s112] sm:$0xff]
    %v694 = vld [vmem:[%s112 + $0x8] sm:$0xff]
    %s695 = sld [smem:[#allocation6 + $0x101]]
    %v696 = vstv %s695
    %v697 = vmul.f32 %v693, %v696
    %v698 = vmul.f32 %v694, %v696
    %v699 = vadd.f32 %v691, %v697
    %v700 = vadd.f32 %v692, %v698
    %v701 = vld [vmem:[%s121] sm:$0xff]
    %v702 = vld [vmem:[%s121 + $0x8] sm:$0xff]
    %s703 = sld [smem:[#allocation6 + $0x102]]
    %v704 = vstv %s703
    %v705 = vmul.f32 %v701, %v704
    %v706 = vmul.f32 %v702, %v704
    %v707 = vadd.f32 %v699, %v705
    %v708 = vadd.f32 %v700, %v706
    %v709 = vld [vmem:[%s130] sm:$0xff]
    %v710 = vld [vmem:[%s130 + $0x8] sm:$0xff]
    %s711 = sld [smem:[#allocation6 + $0x103]]
    %v712 = vstv %s711
    %v713 = vmul.f32 %v709, %v712
    %v714 = vmul.f32 %v710, %v712
    %v715 = vadd.f32 %v707, %v713
    %v716 = vadd.f32 %v708, %v714
    %s717 = sld [smem:[#allocation7 + $0x2]]
    %v718 = vstv %s717
    %v719 = vadd.f32 %v715, %v718
    %v720 = vadd.f32 %v716, %v718
    %v722 = vsel %vm143, %v719, 0
    %v725 = vsel %vm143, %v720, 0
    %727 = vmatprep.subr.mxu0 0.0
    %728 = vmatpush1.msra.mxu0 %v104
    %729 = vmatprep.subr.mxu0 0.0
    %730 = vmatpush1.msra.mxu0 %v105
    %731 = vmatprep.subr.mxu0 0.0
    %732 = vmatpush1.msra.mxu0 0.0
    %733 = vmatprep.subr.mxu0 0.0
    %734 = vmatpush1.msra.mxu0 0.0
    %735 = vmatprep.subr.mxu0 0.0
    %736 = vmatpush1.msra.mxu0 0.0
    %737 = vmatprep.subr.mxu0 0.0
    %738 = vmatpush1.msra.mxu0 0.0
    %739 = vmatprep.subr.mxu0 0.0
    %740 = vmatpush1.msra.mxu0 0.0
    %741 = vmatprep.subr.mxu0 0.0
    %742 = vmatpush1.msra.mxu0 0.0
    %743 = vmatprep.subr.mxu0 0.0
    %744 = vmatpush1.msra.mxu0 0.0
    %745 = vmatprep.subr.mxu0 0.0
    %746 = vmatpush1.msra.mxu0 0.0
    %747 = vmatprep.subr.mxu0 0.0
    %748 = vmatpush1.msra.mxu0 0.0
    %749 = vmatprep.subr.mxu0 0.0
    %750 = vmatpush1.msra.mxu0 0.0
    %751 = vmatprep.subr.mxu0 0.0
    %752 = vmatpush1.msra.mxu0 0.0
    %753 = vmatprep.subr.mxu0 0.0
    %754 = vmatpush1.msra.mxu0 0.0
    %755 = vmatprep.subr.mxu0 0.0
    %756 = vmatpush1.msra.mxu0 0.0
    %757 = vmatprep.subr.mxu0 0.0
    %758 = vmatpush1.msra.mxu0 0.0
    %759 = vmatprep.subr.mxu0 0.0
    %760 = vmatpush1.msra.mxu0 0.0
    %761 = vmatprep.subr.mxu0 0.0
    %762 = vmatpush1.msra.mxu0 0.0
    %763 = vmatprep.subr.mxu0 0.0
    %764 = vmatpush1.msra.mxu0 0.0
    %765 = vmatprep.subr.mxu0 0.0
    %766 = vmatpush1.msra.mxu0 0.0
    %767 = vmatprep.subr.mxu0 0.0
    %768 = vmatpush1.msra.mxu0 0.0
    %769 = vmatprep.subr.mxu0 0.0
    %770 = vmatpush1.msra.mxu0 0.0
    %771 = vmatprep.subr.mxu0 0.0
    %772 = vmatpush1.msra.mxu0 0.0
    %773 = vmatprep.subr.mxu0 0.0
    %774 = vmatpush1.msra.mxu0 0.0
    %775 = vmatprep.subr.mxu0 0.0
    %776 = vmatpush1.msra.mxu0 0.0
    %777 = vmatprep.subr.mxu0 0.0
    %778 = vmatpush1.msra.mxu0 0.0
    %779 = vmatprep.subr.mxu0 0.0
    %780 = vmatpush1.msra.mxu0 0.0
    %781 = vmatprep.subr.mxu0 0.0
    %782 = vmatpush1.msra.mxu0 0.0
    %783 = vmatprep.subr.mxu0 0.0
    %784 = vmatpush1.msra.mxu0 0.0
    %785 = vmatprep.subr.mxu0 0.0
    %786 = vmatpush1.msra.mxu0 0.0
    %787 = vmatprep.subr.mxu0 0.0
    %788 = vmatpush1.msra.mxu0 0.0
    %789 = vmatprep.subr.mxu0 0.0
    %790 = vmatpush1.msra.mxu0 0.0
    %791 = vmatprep.mubr.f32.mxu0 0.0
    %792 = vmatmul.mubr.f32.gmra.mrb[0].mxu0 %v722
    %v793 = vpop.f32.mrb[0].mxu0
    %v794 = vadd.f32 0.0, %v793
    %v795 = vpop.f32.mrb[0].mxu0
    %796 = vmatprep.mubr.f32.mxu0 0.0
    %797 = vmatmul.mubr.f32.gmra.mrb[0].mxu0 %v725
    %v798 = vpop.f32.mrb[0].mxu0
    %v799 = vadd.f32 0.0, %v798
    %v800 = vpop.f32.mrb[0].mxu0
    %801 = vdwg.mxu0
    %802 = vmatprep.subr.mxu0 0.0
    %803 = vmatpush1.msra.mxu0 %v794
    %804 = vmatprep.subr.mxu0 0.0
    %805 = vmatpush1.msra.mxu0 %v799
    %806 = vmatprep.subr.mxu0 0.0
    %807 = vmatpush1.msra.mxu0 0.0
    %808 = vmatprep.subr.mxu0 0.0
    %809 = vmatpush1.msra.mxu0 0.0
    %810 = vmatprep.subr.mxu0 0.0
    %811 = vmatpush1.msra.mxu0 0.0
    %812 = vmatprep.subr.mxu0 0.0
    %813 = vmatpush1.msra.mxu0 0.0
    %814 = vmatprep.subr.mxu0 0.0
    %815 = vmatpush1.msra.mxu0 0.0
    %816 = vmatprep.subr.mxu0 0.0
    %817 = vmatpush1.msra.mxu0 0.0
    %818 = vmatprep.subr.mxu0 0.0
    %819 = vmatpush1.msra.mxu0 0.0
    %820 = vmatprep.subr.mxu0 0.0
    %821 = vmatpush1.msra.mxu0 0.0
    %822 = vmatprep.subr.mxu0 0.0
    %823 = vmatpush1.msra.mxu0 0.0
    %824 = vmatprep.subr.mxu0 0.0
    %825 = vmatpush1.msra.mxu0 0.0
    %826 = vmatprep.subr.mxu0 0.0
    %827 = vmatpush1.msra.mxu0 0.0
    %828 = vmatprep.subr.mxu0 0.0
    %829 = vmatpush1.msra.mxu0 0.0
    %830 = vmatprep.subr.mxu0 0.0
    %831 = vmatpush1.msra.mxu0 0.0
    %832 = vmatprep.subr.mxu0 0.0
    %833 = vmatpush1.msra.mxu0 0.0
    %834 = vmatprep.subr.mxu0 0.0
    %835 = vmatpush1.msra.mxu0 0.0
    %836 = vmatprep.subr.mxu0 0.0
    %837 = vmatpush1.msra.mxu0 0.0
    %838 = vmatprep.subr.mxu0 0.0
    %839 = vmatpush1.msra.mxu0 0.0
    %840 = vmatprep.subr.mxu0 0.0
    %841 = vmatpush1.msra.mxu0 0.0
    %842 = vmatprep.subr.mxu0 0.0
    %843 = vmatpush1.msra.mxu0 0.0
    %844 = vmatprep.subr.mxu0 0.0
    %845 = vmatpush1.msra.mxu0 0.0
    %846 = vmatprep.subr.mxu0 0.0
    %847 = vmatpush1.msra.mxu0 0.0
    %848 = vmatprep.subr.mxu0 0.0
    %849 = vmatpush1.msra.mxu0 0.0
    %850 = vmatprep.subr.mxu0 0.0
    %851 = vmatpush1.msra.mxu0 0.0
    %852 = vmatprep.subr.mxu0 0.0
    %853 = vmatpush1.msra.mxu0 0.0
    %854 = vmatprep.subr.mxu0 0.0
    %855 = vmatpush1.msra.mxu0 0.0
    %856 = vmatprep.subr.mxu0 0.0
    %857 = vmatpush1.msra.mxu0 0.0
    %858 = vmatprep.subr.mxu0 0.0
    %859 = vmatpush1.msra.mxu0 0.0
    %860 = vmatprep.subr.mxu0 0.0
    %861 = vmatpush1.msra.mxu0 0.0
    %862 = vmatprep.subr.mxu0 0.0
    %863 = vmatpush1.msra.mxu0 0.0
    %864 = vmatprep.subr.mxu0 0.0
    %865 = vmatpush1.msra.mxu0 0.0
    %866 = vmatprep.mubr.f32.mxu0 0.0
    %867 = vmatmul.mubr.f32.gmra.mrb[0].mxu0 %v226
    %v868 = vpop.f32.mrb[0].mxu0
    %v869 = vadd.f32 0.0, %v868
    %v870 = vpop.f32.mrb[0].mxu0
    %871 = vmatprep.mubr.f32.mxu0 0.0
    %872 = vmatmul.mubr.f32.gmra.mrb[0].mxu0 %v229
    %v873 = vpop.f32.mrb[0].mxu0
    %v874 = vadd.f32 0.0, %v873
    %v875 = vpop.f32.mrb[0].mxu0
    %876 = vdwg.mxu0
    %877 = vmatprep.subr.mxu0 0.0
    %878 = vmatpush1.msra.mxu0 %v794
    %879 = vmatprep.subr.mxu0 0.0
    %880 = vmatpush1.msra.mxu0 %v799
    %881 = vmatprep.subr.mxu0 0.0
    %882 = vmatpush1.msra.mxu0 0.0
    %883 = vmatprep.subr.mxu0 0.0
    %884 = vmatpush1.msra.mxu0 0.0
    %885 = vmatprep.subr.mxu0 0.0
    %886 = vmatpush1.msra.mxu0 0.0
    %887 = vmatprep.subr.mxu0 0.0
    %888 = vmatpush1.msra.mxu0 0.0
    %889 = vmatprep.subr.mxu0 0.0
    %890 = vmatpush1.msra.mxu0 0.0
    %891 = vmatprep.subr.mxu0 0.0
    %892 = vmatpush1.msra.mxu0 0.0
    %893 = vmatprep.subr.mxu0 0.0
    %894 = vmatpush1.msra.mxu0 0.0
    %895 = vmatprep.subr.mxu0 0.0
    %896 = vmatpush1.msra.mxu0 0.0
    %897 = vmatprep.subr.mxu0 0.0
    %898 = vmatpush1.msra.mxu0 0.0
    %899 = vmatprep.subr.mxu0 0.0
    %900 = vmatpush1.msra.mxu0 0.0
    %901 = vmatprep.subr.mxu0 0.0
    %902 = vmatpush1.msra.mxu0 0.0
    %903 = vmatprep.subr.mxu0 0.0
    %904 = vmatpush1.msra.mxu0 0.0
    %905 = vmatprep.subr.mxu0 0.0
    %906 = vmatpush1.msra.mxu0 0.0
    %907 = vmatprep.subr.mxu0 0.0
    %908 = vmatpush1.msra.mxu0 0.0
    %909 = vmatprep.subr.mxu0 0.0
    %910 = vmatpush1.msra.mxu0 0.0
    %911 = vmatprep.subr.mxu0 0.0
    %912 = vmatpush1.msra.mxu0 0.0
    %913 = vmatprep.subr.mxu0 0.0
    %914 = vmatpush1.msra.mxu0 0.0
    %915 = vmatprep.subr.mxu0 0.0
    %916 = vmatpush1.msra.mxu0 0.0
    %917 = vmatprep.subr.mxu0 0.0
    %918 = vmatpush1.msra.mxu0 0.0
    %919 = vmatprep.subr.mxu0 0.0
    %920 = vmatpush1.msra.mxu0 0.0
    %921 = vmatprep.subr.mxu0 0.0
    %922 = vmatpush1.msra.mxu0 0.0
    %923 = vmatprep.subr.mxu0 0.0
    %924 = vmatpush1.msra.mxu0 0.0
    %925 = vmatprep.subr.mxu0 0.0
    %926 = vmatpush1.msra.mxu0 0.0
    %927 = vmatprep.subr.mxu0 0.0
    %928 = vmatpush1.msra.mxu0 0.0
    %929 = vmatprep.subr.mxu0 0.0
    %930 = vmatpush1.msra.mxu0 0.0
    %931 = vmatprep.subr.mxu0 0.0
    %932 = vmatpush1.msra.mxu0 0.0
    %933 = vmatprep.subr.mxu0 0.0
    %934 = vmatpush1.msra.mxu0 0.0
    %935 = vmatprep.subr.mxu0 0.0
    %936 = vmatpush1.msra.mxu0 0.0
    %937 = vmatprep.subr.mxu0 0.0
    %938 = vmatpush1.msra.mxu0 0.0
    %939 = vmatprep.subr.mxu0 0.0
    %940 = vmatpush1.msra.mxu0 0.0
    %941 = vmatprep.mubr.f32.mxu0 0.0
    %942 = vmatmul.mubr.f32.gmra.mrb[0].mxu0 %v307
    %v943 = vpop.f32.mrb[0].mxu0
    %v944 = vadd.f32 0.0, %v943
    %v945 = vpop.f32.mrb[0].mxu0
    %946 = vmatprep.mubr.f32.mxu0 0.0
    %947 = vmatmul.mubr.f32.gmra.mrb[0].mxu0 %v310
    %v948 = vpop.f32.mrb[0].mxu0
    %v949 = vadd.f32 0.0, %v948
    %v950 = vpop.f32.mrb[0].mxu0
    %951 = vdwg.mxu0
    %v952 = vmax.f32 %v869, 0.0
    %v953 = vmax.f32 %v874, 0.0
    %s954 = scalar_lea.vmem [#allocation14], 32
    %955 = vst.msk [vmem:[%s954] sm:$0xff] %vm389, %v952
    %956 = vst.msk [vmem:[%s954 + $0x8] sm:$0xff] %vm389, %v953
    %v957 = vmax.f32 %v944, 0.0
    %v958 = vmax.f32 %v949, 0.0
    %961 = vrot.lane.b32.xlu0 %v957, 32
    %v962 = vpop.permute.xlu0 %961
    %963 = vrot.lane.b32.xlu0 %v958, 32
    %v964 = vpop.permute.xlu0 %963
    %967 = vst.msk [vmem:[%s954] sm:$0xff] %vm402, %v962
    %968 = vst.msk [vmem:[%s954 + $0x8] sm:$0xff] %vm402, %v964
    %v969 = vld [vmem:[#allocation2] sm:$0xff]
    %v970 = vld [vmem:[#allocation2 + $0x8] sm:$0xff]
    %s971 = sld [smem:[#allocation6 + $0x180]]
    %v972 = vstv %s971
    %v973 = vmul.f32 %v969, %v972
    %v974 = vmul.f32 %v970, %v972
    %v975 = vld [vmem:[%s112] sm:$0xff]
    %v976 = vld [vmem:[%s112 + $0x8] sm:$0xff]
    %s977 = sld [smem:[#allocation6 + $0x181]]
    %v978 = vstv %s977
    %v979 = vmul.f32 %v975, %v978
    %v980 = vmul.f32 %v976, %v978
    %v981 = vadd.f32 %v973, %v979
    %v982 = vadd.f32 %v974, %v980
    %v983 = vld [vmem:[%s121] sm:$0xff]
    %v984 = vld [vmem:[%s121 + $0x8] sm:$0xff]
    %s985 = sld [smem:[#allocation6 + $0x182]]
    %v986 = vstv %s985
    %v987 = vmul.f32 %v983, %v986
    %v988 = vmul.f32 %v984, %v986
    %v989 = vadd.f32 %v981, %v987
    %v990 = vadd.f32 %v982, %v988
    %v991 = vld [vmem:[%s130] sm:$0xff]
    %v992 = vld [vmem:[%s130 + $0x8] sm:$0xff]
    %s993 = sld [smem:[#allocation6 + $0x183]]
    %v994 = vstv %s993
    %v995 = vmul.f32 %v991, %v994
    %v996 = vmul.f32 %v992, %v994
    %v997 = vadd.f32 %v989, %v995
    %v998 = vadd.f32 %v990, %v996
    %s999 = sld [smem:[#allocation7 + $0x3]]
    %v1000 = vstv %s999
    %v1001 = vadd.f32 %v997, %v1000
    %v1002 = vadd.f32 %v998, %v1000
    %v1004 = vsel %vm143, %v1001, 0
    %v1007 = vsel %vm143, %v1002, 0
    %1009 = vmatprep.subr.mxu0 0.0
    %1010 = vmatpush1.msra.mxu0 %v104
    %1011 = vmatprep.subr.mxu0 0.0
    %1012 = vmatpush1.msra.mxu0 %v105
    %1013 = vmatprep.subr.mxu0 0.0
    %1014 = vmatpush1.msra.mxu0 0.0
    %1015 = vmatprep.subr.mxu0 0.0
    %1016 = vmatpush1.msra.mxu0 0.0
    %1017 = vmatprep.subr.mxu0 0.0
    %1018 = vmatpush1.msra.mxu0 0.0
    %1019 = vmatprep.subr.mxu0 0.0
    %1020 = vmatpush1.msra.mxu0 0.0
    %1021 = vmatprep.subr.mxu0 0.0
    %1022 = vmatpush1.msra.mxu0 0.0
    %1023 = vmatprep.subr.mxu0 0.0
    %1024 = vmatpush1.msra.mxu0 0.0
    %1025 = vmatprep.subr.mxu0 0.0
    %1026 = vmatpush1.msra.mxu0 0.0
    %1027 = vmatprep.subr.mxu0 0.0
    %1028 = vmatpush1.msra.mxu0 0.0
    %1029 = vmatprep.subr.mxu0 0.0
    %1030 = vmatpush1.msra.mxu0 0.0
    %1031 = vmatprep.subr.mxu0 0.0
    %1032 = vmatpush1.msra.mxu0 0.0
    %1033 = vmatprep.subr.mxu0 0.0
    %1034 = vmatpush1.msra.mxu0 0.0
    %1035 = vmatprep.subr.mxu0 0.0
    %1036 = vmatpush1.msra.mxu0 0.0
    %1037 = vmatprep.subr.mxu0 0.0
    %1038 = vmatpush1.msra.mxu0 0.0
    %1039 = vmatprep.subr.mxu0 0.0
    %1040 = vmatpush1.msra.mxu0 0.0
    %1041 = vmatprep.subr.mxu0 0.0
    %1042 = vmatpush1.msra.mxu0 0.0
    %1043 = vmatprep.subr.mxu0 0.0
    %1044 = vmatpush1.msra.mxu0 0.0
    %1045 = vmatprep.subr.mxu0 0.0
    %1046 = vmatpush1.msra.mxu0 0.0
    %1047 = vmatprep.subr.mxu0 0.0
    %1048 = vmatpush1.msra.mxu0 0.0
    %1049 = vmatprep.subr.mxu0 0.0
    %1050 = vmatpush1.msra.mxu0 0.0
    %1051 = vmatprep.subr.mxu0 0.0
    %1052 = vmatpush1.msra.mxu0 0.0
    %1053 = vmatprep.subr.mxu0 0.0
    %1054 = vmatpush1.msra.mxu0 0.0
    %1055 = vmatprep.subr.mxu0 0.0
    %1056 = vmatpush1.msra.mxu0 0.0
    %1057 = vmatprep.subr.mxu0 0.0
    %1058 = vmatpush1.msra.mxu0 0.0
    %1059 = vmatprep.subr.mxu0 0.0
    %1060 = vmatpush1.msra.mxu0 0.0
    %1061 = vmatprep.subr.mxu0 0.0
    %1062 = vmatpush1.msra.mxu0 0.0
    %1063 = vmatprep.subr.mxu0 0.0
    %1064 = vmatpush1.msra.mxu0 0.0
    %1065 = vmatprep.subr.mxu0 0.0
    %1066 = vmatpush1.msra.mxu0 0.0
    %1067 = vmatprep.subr.mxu0 0.0
    %1068 = vmatpush1.msra.mxu0 0.0
    %1069 = vmatprep.subr.mxu0 0.0
    %1070 = vmatpush1.msra.mxu0 0.0
    %1071 = vmatprep.subr.mxu0 0.0
    %1072 = vmatpush1.msra.mxu0 0.0
    %1073 = vmatprep.mubr.f32.mxu0 0.0
    %1074 = vmatmul.mubr.f32.gmra.mrb[0].mxu0 %v1004
    %v1075 = vpop.f32.mrb[0].mxu0
    %v1076 = vadd.f32 0.0, %v1075
    %v1077 = vpop.f32.mrb[0].mxu0
    %1078 = vmatprep.mubr.f32.mxu0 0.0
    %1079 = vmatmul.mubr.f32.gmra.mrb[0].mxu0 %v1007
    %v1080 = vpop.f32.mrb[0].mxu0
    %v1081 = vadd.f32 0.0, %v1080
    %v1082 = vpop.f32.mrb[0].mxu0
    %1083 = vdwg.mxu0
    %1084 = vmatprep.subr.mxu0 0.0
    %1085 = vmatpush1.msra.mxu0 %v1076
    %1086 = vmatprep.subr.mxu0 0.0
    %1087 = vmatpush1.msra.mxu0 %v1081
    %1088 = vmatprep.subr.mxu0 0.0
    %1089 = vmatpush1.msra.mxu0 0.0
    %1090 = vmatprep.subr.mxu0 0.0
    %1091 = vmatpush1.msra.mxu0 0.0
    %1092 = vmatprep.subr.mxu0 0.0
    %1093 = vmatpush1.msra.mxu0 0.0
    %1094 = vmatprep.subr.mxu0 0.0
    %1095 = vmatpush1.msra.mxu0 0.0
    %1096 = vmatprep.subr.mxu0 0.0
    %1097 = vmatpush1.msra.mxu0 0.0
    %1098 = vmatprep.subr.mxu0 0.0
    %1099 = vmatpush1.msra.mxu0 0.0
    %1100 = vmatprep.subr.mxu0 0.0
    %1101 = vmatpush1.msra.mxu0 0.0
    %1102 = vmatprep.subr.mxu0 0.0
    %1103 = vmatpush1.msra.mxu0 0.0
    %1104 = vmatprep.subr.mxu0 0.0
    %1105 = vmatpush1.msra.mxu0 0.0
    %1106 = vmatprep.subr.mxu0 0.0
    %1107 = vmatpush1.msra.mxu0 0.0
    %1108 = vmatprep.subr.mxu0 0.0
    %1109 = vmatpush1.msra.mxu0 0.0
    %1110 = vmatprep.subr.mxu0 0.0
    %1111 = vmatpush1.msra.mxu0 0.0
    %1112 = vmatprep.subr.mxu0 0.0
    %1113 = vmatpush1.msra.mxu0 0.0
    %1114 = vmatprep.subr.mxu0 0.0
    %1115 = vmatpush1.msra.mxu0 0.0
    %1116 = vmatprep.subr.mxu0 0.0
    %1117 = vmatpush1.msra.mxu0 0.0
    %1118 = vmatprep.subr.mxu0 0.0
    %1119 = vmatpush1.msra.mxu0 0.0
    %1120 = vmatprep.subr.mxu0 0.0
    %1121 = vmatpush1.msra.mxu0 0.0
    %1122 = vmatprep.subr.mxu0 0.0
    %1123 = vmatpush1.msra.mxu0 0.0
    %1124 = vmatprep.subr.mxu0 0.0
    %1125 = vmatpush1.msra.mxu0 0.0
    %1126 = vmatprep.subr.mxu0 0.0
    %1127 = vmatpush1.msra.mxu0 0.0
    %1128 = vmatprep.subr.mxu0 0.0
    %1129 = vmatpush1.msra.mxu0 0.0
    %1130 = vmatprep.subr.mxu0 0.0
    %1131 = vmatpush1.msra.mxu0 0.0
    %1132 = vmatprep.subr.mxu0 0.0
    %1133 = vmatpush1.msra.mxu0 0.0
    %1134 = vmatprep.subr.mxu0 0.0
    %1135 = vmatpush1.msra.mxu0 0.0
    %1136 = vmatprep.subr.mxu0 0.0
    %1137 = vmatpush1.msra.mxu0 0.0
    %1138 = vmatprep.subr.mxu0 0.0
    %1139 = vmatpush1.msra.mxu0 0.0
    %1140 = vmatprep.subr.mxu0 0.0
    %1141 = vmatpush1.msra.mxu0 0.0
    %1142 = vmatprep.subr.mxu0 0.0
    %1143 = vmatpush1.msra.mxu0 0.0
    %1144 = vmatprep.subr.mxu0 0.0
    %1145 = vmatpush1.msra.mxu0 0.0
    %1146 = vmatprep.subr.mxu0 0.0
    %1147 = vmatpush1.msra.mxu0 0.0
    %1148 = vmatprep.mubr.f32.mxu0 0.0
    %1149 = vmatmul.mubr.f32.gmra.mrb[0].mxu0 %v226
    %v1150 = vpop.f32.mrb[0].mxu0
    %v1151 = vadd.f32 0.0, %v1150
    %v1152 = vpop.f32.mrb[0].mxu0
    %1153 = vmatprep.mubr.f32.mxu0 0.0
    %1154 = vmatmul.mubr.f32.gmra.mrb[0].mxu0 %v229
    %v1155 = vpop.f32.mrb[0].mxu0
    %v1156 = vadd.f32 0.0, %v1155
    %v1157 = vpop.f32.mrb[0].mxu0
    %1158 = vdwg.mxu0
    %1159 = vmatprep.subr.mxu0 0.0
    %1160 = vmatpush1.msra.mxu0 %v1076
    %1161 = vmatprep.subr.mxu0 0.0
    %1162 = vmatpush1.msra.mxu0 %v1081
    %1163 = vmatprep.subr.mxu0 0.0
    %1164 = vmatpush1.msra.mxu0 0.0
    %1165 = vmatprep.subr.mxu0 0.0
    %1166 = vmatpush1.msra.mxu0 0.0
    %1167 = vmatprep.subr.mxu0 0.0
    %1168 = vmatpush1.msra.mxu0 0.0
    %1169 = vmatprep.subr.mxu0 0.0
    %1170 = vmatpush1.msra.mxu0 0.0
    %1171 = vmatprep.subr.mxu0 0.0
    %1172 = vmatpush1.msra.mxu0 0.0
    %1173 = vmatprep.subr.mxu0 0.0
    %1174 = vmatpush1.msra.mxu0 0.0
    %1175 = vmatprep.subr.mxu0 0.0
    %1176 = vmatpush1.msra.mxu0 0.0
    %1177 = vmatprep.subr.mxu0 0.0
    %1178 = vmatpush1.msra.mxu0 0.0
    %1179 = vmatprep.subr.mxu0 0.0
    %1180 = vmatpush1.msra.mxu0 0.0
    %1181 = vmatprep.subr.mxu0 0.0
    %1182 = vmatpush1.msra.mxu0 0.0
    %1183 = vmatprep.subr.mxu0 0.0
    %1184 = vmatpush1.msra.mxu0 0.0
    %1185 = vmatprep.subr.mxu0 0.0
    %1186 = vmatpush1.msra.mxu0 0.0
    %1187 = vmatprep.subr.mxu0 0.0
    %1188 = vmatpush1.msra.mxu0 0.0
    %1189 = vmatprep.subr.mxu0 0.0
    %1190 = vmatpush1.msra.mxu0 0.0
    %1191 = vmatprep.subr.mxu0 0.0
    %1192 = vmatpush1.msra.mxu0 0.0
    %1193 = vmatprep.subr.mxu0 0.0
    %1194 = vmatpush1.msra.mxu0 0.0
    %1195 = vmatprep.subr.mxu0 0.0
    %1196 = vmatpush1.msra.mxu0 0.0
    %1197 = vmatprep.subr.mxu0 0.0
    %1198 = vmatpush1.msra.mxu0 0.0
    %1199 = vmatprep.subr.mxu0 0.0
    %1200 = vmatpush1.msra.mxu0 0.0
    %1201 = vmatprep.subr.mxu0 0.0
    %1202 = vmatpush1.msra.mxu0 0.0
    %1203 = vmatprep.subr.mxu0 0.0
    %1204 = vmatpush1.msra.mxu0 0.0
    %1205 = vmatprep.subr.mxu0 0.0
    %1206 = vmatpush1.msra.mxu0 0.0
    %1207 = vmatprep.subr.mxu0 0.0
    %1208 = vmatpush1.msra.mxu0 0.0
    %1209 = vmatprep.subr.mxu0 0.0
    %1210 = vmatpush1.msra.mxu0 0.0
    %1211 = vmatprep.subr.mxu0 0.0
    %1212 = vmatpush1.msra.mxu0 0.0
    %1213 = vmatprep.subr.mxu0 0.0
    %1214 = vmatpush1.msra.mxu0 0.0
    %1215 = vmatprep.subr.mxu0 0.0
    %1216 = vmatpush1.msra.mxu0 0.0
    %1217 = vmatprep.subr.mxu0 0.0
    %1218 = vmatpush1.msra.mxu0 0.0
    %1219 = vmatprep.subr.mxu0 0.0
    %1220 = vmatpush1.msra.mxu0 0.0
    %1221 = vmatprep.subr.mxu0 0.0
    %1222 = vmatpush1.msra.mxu0 0.0
    %1223 = vmatprep.mubr.f32.mxu0 0.0
    %1224 = vmatmul.mubr.f32.gmra.mrb[0].mxu0 %v307
    %v1225 = vpop.f32.mrb[0].mxu0
    %v1226 = vadd.f32 0.0, %v1225
    %v1227 = vpop.f32.mrb[0].mxu0
    %1228 = vmatprep.mubr.f32.mxu0 0.0
    %1229 = vmatmul.mubr.f32.gmra.mrb[0].mxu0 %v310
    %v1230 = vpop.f32.mrb[0].mxu0
    %v1231 = vadd.f32 0.0, %v1230
    %v1232 = vpop.f32.mrb[0].mxu0
    %1233 = vdwg.mxu0
    %v1234 = vmax.f32 %v1151, 0.0
    %v1235 = vmax.f32 %v1156, 0.0
    %s1236 = scalar_lea.vmem [#allocation14], 48
    %1237 = vst.msk [vmem:[%s1236] sm:$0xff] %vm389, %v1234
    %1238 = vst.msk [vmem:[%s1236 + $0x8] sm:$0xff] %vm389, %v1235
    %v1239 = vmax.f32 %v1226, 0.0
    %v1240 = vmax.f32 %v1231, 0.0
    %1243 = vrot.lane.b32.xlu0 %v1239, 32
    %v1244 = vpop.permute.xlu0 %1243
    %1245 = vrot.lane.b32.xlu0 %v1240, 32
    %v1246 = vpop.permute.xlu0 %1245
    %1249 = vst.msk [vmem:[%s1236] sm:$0xff] %vm402, %v1244
    %1250 = vst.msk [vmem:[%s1236 + $0x8] sm:$0xff] %vm402, %v1246
    %v1251 = vld [vmem:[#allocation2] sm:$0xff]
    %v1252 = vld [vmem:[#allocation2 + $0x8] sm:$0xff]
    %s1253 = sld [smem:[#allocation6 + $0x200]]
    %v1254 = vstv %s1253
    %v1255 = vmul.f32 %v1251, %v1254
    %v1256 = vmul.f32 %v1252, %v1254
    %v1257 = vld [vmem:[%s112] sm:$0xff]
    %v1258 = vld [vmem:[%s112 + $0x8] sm:$0xff]
    %s1259 = sld [smem:[#allocation6 + $0x201]]
    %v1260 = vstv %s1259
    %v1261 = vmul.f32 %v1257, %v1260
    %v1262 = vmul.f32 %v1258, %v1260
    %v1263 = vadd.f32 %v1255, %v1261
    %v1264 = vadd.f32 %v1256, %v1262
    %v1265 = vld [vmem:[%s121] sm:$0xff]
    %v1266 = vld [vmem:[%s121 + $0x8] sm:$0xff]
    %s1267 = sld [smem:[#allocation6 + $0x202]]
    %v1268 = vstv %s1267
    %v1269 = vmul.f32 %v1265, %v1268
    %v1270 = vmul.f32 %v1266, %v1268
    %v1271 = vadd.f32 %v1263, %v1269
    %v1272 = vadd.f32 %v1264, %v1270
    %v1273 = vld [vmem:[%s130] sm:$0xff]
    %v1274 = vld [vmem:[%s130 + $0x8] sm:$0xff]
    %s1275 = sld [smem:[#allocation6 + $0x203]]
    %v1276 = vstv %s1275
    %v1277 = vmul.f32 %v1273, %v1276
    %v1278 = vmul.f32 %v1274, %v1276
    %v1279 = vadd.f32 %v1271, %v1277
    %v1280 = vadd.f32 %v1272, %v1278
    %s1281 = sld [smem:[#allocation7 + $0x4]]
    %v1282 = vstv %s1281
    %v1283 = vadd.f32 %v1279, %v1282
    %v1284 = vadd.f32 %v1280, %v1282
    %v1286 = vsel %vm143, %v1283, 0
    %v1289 = vsel %vm143, %v1284, 0
    %1291 = vmatprep.subr.mxu0 0.0
    %1292 = vmatpush1.msra.mxu0 %v104
    %1293 = vmatprep.subr.mxu0 0.0
    %1294 = vmatpush1.msra.mxu0 %v105
    %1295 = vmatprep.subr.mxu0 0.0
    %1296 = vmatpush1.msra.mxu0 0.0
    %1297 = vmatprep.subr.mxu0 0.0
    %1298 = vmatpush1.msra.mxu0 0.0
    %1299 = vmatprep.subr.mxu0 0.0
    %1300 = vmatpush1.msra.mxu0 0.0
    %1301 = vmatprep.subr.mxu0 0.0
    %1302 = vmatpush1.msra.mxu0 0.0
    %1303 = vmatprep.subr.mxu0 0.0
    %1304 = vmatpush1.msra.mxu0 0.0
    %1305 = vmatprep.subr.mxu0 0.0
    %1306 = vmatpush1.msra.mxu0 0.0
    %1307 = vmatprep.subr.mxu0 0.0
    %1308 = vmatpush1.msra.mxu0 0.0
    %1309 = vmatprep.subr.mxu0 0.0
    %1310 = vmatpush1.msra.mxu0 0.0
    %1311 = vmatprep.subr.mxu0 0.0
    %1312 = vmatpush1.msra.mxu0 0.0
    %1313 = vmatprep.subr.mxu0 0.0
    %1314 = vmatpush1.msra.mxu0 0.0
    %1315 = vmatprep.subr.mxu0 0.0
    %1316 = vmatpush1.msra.mxu0 0.0
    %1317 = vmatprep.subr.mxu0 0.0
    %1318 = vmatpush1.msra.mxu0 0.0
    %1319 = vmatprep.subr.mxu0 0.0
    %1320 = vmatpush1.msra.mxu0 0.0
    %1321 = vmatprep.subr.mxu0 0.0
    %1322 = vmatpush1.msra.mxu0 0.0
    %1323 = vmatprep.subr.mxu0 0.0
    %1324 = vmatpush1.msra.mxu0 0.0
    %1325 = vmatprep.subr.mxu0 0.0
    %1326 = vmatpush1.msra.mxu0 0.0
    %1327 = vmatprep.subr.mxu0 0.0
    %1328 = vmatpush1.msra.mxu0 0.0
    %1329 = vmatprep.subr.mxu0 0.0
    %1330 = vmatpush1.msra.mxu0 0.0
    %1331 = vmatprep.subr.mxu0 0.0
    %1332 = vmatpush1.msra.mxu0 0.0
    %1333 = vmatprep.subr.mxu0 0.0
    %1334 = vmatpush1.msra.mxu0 0.0
    %1335 = vmatprep.subr.mxu0 0.0
    %1336 = vmatpush1.msra.mxu0 0.0
    %1337 = vmatprep.subr.mxu0 0.0
    %1338 = vmatpush1.msra.mxu0 0.0
    %1339 = vmatprep.subr.mxu0 0.0
    %1340 = vmatpush1.msra.mxu0 0.0
    %1341 = vmatprep.subr.mxu0 0.0
    %1342 = vmatpush1.msra.mxu0 0.0
    %1343 = vmatprep.subr.mxu0 0.0
    %1344 = vmatpush1.msra.mxu0 0.0
    %1345 = vmatprep.subr.mxu0 0.0
    %1346 = vmatpush1.msra.mxu0 0.0
    %1347 = vmatprep.subr.mxu0 0.0
    %1348 = vmatpush1.msra.mxu0 0.0
    %1349 = vmatprep.subr.mxu0 0.0
    %1350 = vmatpush1.msra.mxu0 0.0
    %1351 = vmatprep.subr.mxu0 0.0
    %1352 = vmatpush1.msra.mxu0 0.0
    %1353 = vmatprep.subr.mxu0 0.0
    %1354 = vmatpush1.msra.mxu0 0.0
    %1355 = vmatprep.mubr.f32.mxu0 0.0
    %1356 = vmatmul.mubr.f32.gmra.mrb[0].mxu0 %v1286
    %v1357 = vpop.f32.mrb[0].mxu0
    %v1358 = vadd.f32 0.0, %v1357
    %v1359 = vpop.f32.mrb[0].mxu0
    %1360 = vmatprep.mubr.f32.mxu0 0.0
    %1361 = vmatmul.mubr.f32.gmra.mrb[0].mxu0 %v1289
    %v1362 = vpop.f32.mrb[0].mxu0
    %v1363 = vadd.f32 0.0, %v1362
    %v1364 = vpop.f32.mrb[0].mxu0
    %1365 = vdwg.mxu0
    %1366 = vmatprep.subr.mxu0 0.0
    %1367 = vmatpush1.msra.mxu0 %v1358
    %1368 = vmatprep.subr.mxu0 0.0
    %1369 = vmatpush1.msra.mxu0 %v1363
    %1370 = vmatprep.subr.mxu0 0.0
    %1371 = vmatpush1.msra.mxu0 0.0
    %1372 = vmatprep.subr.mxu0 0.0
    %1373 = vmatpush1.msra.mxu0 0.0
    %1374 = vmatprep.subr.mxu0 0.0
    %1375 = vmatpush1.msra.mxu0 0.0
    %1376 = vmatprep.subr.mxu0 0.0
    %1377 = vmatpush1.msra.mxu0 0.0
    %1378 = vmatprep.subr.mxu0 0.0
    %1379 = vmatpush1.msra.mxu0 0.0
    %1380 = vmatprep.subr.mxu0 0.0
    %1381 = vmatpush1.msra.mxu0 0.0
    %1382 = vmatprep.subr.mxu0 0.0
    %1383 = vmatpush1.msra.mxu0 0.0
    %1384 = vmatprep.subr.mxu0 0.0
    %1385 = vmatpush1.msra.mxu0 0.0
    %1386 = vmatprep.subr.mxu0 0.0
    %1387 = vmatpush1.msra.mxu0 0.0
    %1388 = vmatprep.subr.mxu0 0.0
    %1389 = vmatpush1.msra.mxu0 0.0
    %1390 = vmatprep.subr.mxu0 0.0
    %1391 = vmatpush1.msra.mxu0 0.0
    %1392 = vmatprep.subr.mxu0 0.0
    %1393 = vmatpush1.msra.mxu0 0.0
    %1394 = vmatprep.subr.mxu0 0.0
    %1395 = vmatpush1.msra.mxu0 0.0
    %1396 = vmatprep.subr.mxu0 0.0
    %1397 = vmatpush1.msra.mxu0 0.0
    %1398 = vmatprep.subr.mxu0 0.0
    %1399 = vmatpush1.msra.mxu0 0.0
    %1400 = vmatprep.subr.mxu0 0.0
    %1401 = vmatpush1.msra.mxu0 0.0
    %1402 = vmatprep.subr.mxu0 0.0
    %1403 = vmatpush1.msra.mxu0 0.0
    %1404 = vmatprep.subr.mxu0 0.0
    %1405 = vmatpush1.msra.mxu0 0.0
    %1406 = vmatprep.subr.mxu0 0.0
    %1407 = vmatpush1.msra.mxu0 0.0
    %1408 = vmatprep.subr.mxu0 0.0
    %1409 = vmatpush1.msra.mxu0 0.0
    %1410 = vmatprep.subr.mxu0 0.0
    %1411 = vmatpush1.msra.mxu0 0.0
    %1412 = vmatprep.subr.mxu0 0.0
    %1413 = vmatpush1.msra.mxu0 0.0
    %1414 = vmatprep.subr.mxu0 0.0
    %1415 = vmatpush1.msra.mxu0 0.0
    %1416 = vmatprep.subr.mxu0 0.0
    %1417 = vmatpush1.msra.mxu0 0.0
    %1418 = vmatprep.subr.mxu0 0.0
    %1419 = vmatpush1.msra.mxu0 0.0
    %1420 = vmatprep.subr.mxu0 0.0
    %1421 = vmatpush1.msra.mxu0 0.0
    %1422 = vmatprep.subr.mxu0 0.0
    %1423 = vmatpush1.msra.mxu0 0.0
    %1424 = vmatprep.subr.mxu0 0.0
    %1425 = vmatpush1.msra.mxu0 0.0
    %1426 = vmatprep.subr.mxu0 0.0
    %1427 = vmatpush1.msra.mxu0 0.0
    %1428 = vmatprep.subr.mxu0 0.0
    %1429 = vmatpush1.msra.mxu0 0.0
    %1430 = vmatprep.mubr.f32.mxu0 0.0
    %1431 = vmatmul.mubr.f32.gmra.mrb[0].mxu0 %v226
    %v1432 = vpop.f32.mrb[0].mxu0
    %v1433 = vadd.f32 0.0, %v1432
    %v1434 = vpop.f32.mrb[0].mxu0
    %1435 = vmatprep.mubr.f32.mxu0 0.0
    %1436 = vmatmul.mubr.f32.gmra.mrb[0].mxu0 %v229
    %v1437 = vpop.f32.mrb[0].mxu0
    %v1438 = vadd.f32 0.0, %v1437
    %v1439 = vpop.f32.mrb[0].mxu0
    %1440 = vdwg.mxu0
    %1441 = vmatprep.subr.mxu0 0.0
    %1442 = vmatpush1.msra.mxu0 %v1358
    %1443 = vmatprep.subr.mxu0 0.0
    %1444 = vmatpush1.msra.mxu0 %v1363
    %1445 = vmatprep.subr.mxu0 0.0
    %1446 = vmatpush1.msra.mxu0 0.0
    %1447 = vmatprep.subr.mxu0 0.0
    %1448 = vmatpush1.msra.mxu0 0.0
    %1449 = vmatprep.subr.mxu0 0.0
    %1450 = vmatpush1.msra.mxu0 0.0
    %1451 = vmatprep.subr.mxu0 0.0
    %1452 = vmatpush1.msra.mxu0 0.0
    %1453 = vmatprep.subr.mxu0 0.0
    %1454 = vmatpush1.msra.mxu0 0.0
    %1455 = vmatprep.subr.mxu0 0.0
    %1456 = vmatpush1.msra.mxu0 0.0
    %1457 = vmatprep.subr.mxu0 0.0
    %1458 = vmatpush1.msra.mxu0 0.0
    %1459 = vmatprep.subr.mxu0 0.0
    %1460 = vmatpush1.msra.mxu0 0.0
    %1461 = vmatprep.subr.mxu0 0.0
    %1462 = vmatpush1.msra.mxu0 0.0
    %1463 = vmatprep.subr.mxu0 0.0
    %1464 = vmatpush1.msra.mxu0 0.0
    %1465 = vmatprep.subr.mxu0 0.0
    %1466 = vmatpush1.msra.mxu0 0.0
    %1467 = vmatprep.subr.mxu0 0.0
    %1468 = vmatpush1.msra.mxu0 0.0
    %1469 = vmatprep.subr.mxu0 0.0
    %1470 = vmatpush1.msra.mxu0 0.0
    %1471 = vmatprep.subr.mxu0 0.0
    %1472 = vmatpush1.msra.mxu0 0.0
    %1473 = vmatprep.subr.mxu0 0.0
    %1474 = vmatpush1.msra.mxu0 0.0
    %1475 = vmatprep.subr.mxu0 0.0
    %1476 = vmatpush1.msra.mxu0 0.0
    %1477 = vmatprep.subr.mxu0 0.0
    %1478 = vmatpush1.msra.mxu0 0.0
    %1479 = vmatprep.subr.mxu0 0.0
    %1480 = vmatpush1.msra.mxu0 0.0
    %1481 = vmatprep.subr.mxu0 0.0
    %1482 = vmatpush1.msra.mxu0 0.0
    %1483 = vmatprep.subr.mxu0 0.0
    %1484 = vmatpush1.msra.mxu0 0.0
    %1485 = vmatprep.subr.mxu0 0.0
    %1486 = vmatpush1.msra.mxu0 0.0
    %1487 = vmatprep.subr.mxu0 0.0
    %1488 = vmatpush1.msra.mxu0 0.0
    %1489 = vmatprep.subr.mxu0 0.0
    %1490 = vmatpush1.msra.mxu0 0.0
    %1491 = vmatprep.subr.mxu0 0.0
    %1492 = vmatpush1.msra.mxu0 0.0
    %1493 = vmatprep.subr.mxu0 0.0
    %1494 = vmatpush1.msra.mxu0 0.0
    %1495 = vmatprep.subr.mxu0 0.0
    %1496 = vmatpush1.msra.mxu0 0.0
    %1497 = vmatprep.subr.mxu0 0.0
    %1498 = vmatpush1.msra.mxu0 0.0
    %1499 = vmatprep.subr.mxu0 0.0
    %1500 = vmatpush1.msra.mxu0 0.0
    %1501 = vmatprep.subr.mxu0 0.0
    %1502 = vmatpush1.msra.mxu0 0.0
    %1503 = vmatprep.subr.mxu0 0.0
    %1504 = vmatpush1.msra.mxu0 0.0
    %1505 = vmatprep.mubr.f32.mxu0 0.0
    %1506 = vmatmul.mubr.f32.gmra.mrb[0].mxu0 %v307
    %v1507 = vpop.f32.mrb[0].mxu0
    %v1508 = vadd.f32 0.0, %v1507
    %v1509 = vpop.f32.mrb[0].mxu0
    %1510 = vmatprep.mubr.f32.mxu0 0.0
    %1511 = vmatmul.mubr.f32.gmra.mrb[0].mxu0 %v310
    %v1512 = vpop.f32.mrb[0].mxu0
    %v1513 = vadd.f32 0.0, %v1512
    %v1514 = vpop.f32.mrb[0].mxu0
    %1515 = vdwg.mxu0
    %v1516 = vmax.f32 %v1433, 0.0
    %v1517 = vmax.f32 %v1438, 0.0
    %s1518 = scalar_lea.vmem [#allocation14], 64
    %1519 = vst.msk [vmem:[%s1518] sm:$0xff] %vm389, %v1516
    %1520 = vst.msk [vmem:[%s1518 + $0x8] sm:$0xff] %vm389, %v1517
    %v1521 = vmax.f32 %v1508, 0.0
    %v1522 = vmax.f32 %v1513, 0.0
    %1525 = vrot.lane.b32.xlu0 %v1521, 32
    %v1526 = vpop.permute.xlu0 %1525
    %1527 = vrot.lane.b32.xlu0 %v1522, 32
    %v1528 = vpop.permute.xlu0 %1527
    %1531 = vst.msk [vmem:[%s1518] sm:$0xff] %vm402, %v1526
    %1532 = vst.msk [vmem:[%s1518 + $0x8] sm:$0xff] %vm402, %v1528
    %v1533 = vld [vmem:[#allocation2] sm:$0xff]
    %v1534 = vld [vmem:[#allocation2 + $0x8] sm:$0xff]
    %s1535 = sld [smem:[#allocation6 + $0x280]]
    %v1536 = vstv %s1535
    %v1537 = vmul.f32 %v1533, %v1536
    %v1538 = vmul.f32 %v1534, %v1536
    %v1539 = vld [vmem:[%s112] sm:$0xff]
    %v1540 = vld [vmem:[%s112 + $0x8] sm:$0xff]
    %s1541 = sld [smem:[#allocation6 + $0x281]]
    %v1542 = vstv %s1541
    %v1543 = vmul.f32 %v1539, %v1542
    %v1544 = vmul.f32 %v1540, %v1542
    %v1545 = vadd.f32 %v1537, %v1543
    %v1546 = vadd.f32 %v1538, %v1544
    %v1547 = vld [vmem:[%s121] sm:$0xff]
    %v1548 = vld [vmem:[%s121 + $0x8] sm:$0xff]
    %s1549 = sld [smem:[#allocation6 + $0x282]]
    %v1550 = vstv %s1549
    %v1551 = vmul.f32 %v1547, %v1550
    %v1552 = vmul.f32 %v1548, %v1550
    %v1553 = vadd.f32 %v1545, %v1551
    %v1554 = vadd.f32 %v1546, %v1552
    %v1555 = vld [vmem:[%s130] sm:$0xff]
    %v1556 = vld [vmem:[%s130 + $0x8] sm:$0xff]
    %s1557 = sld [smem:[#allocation6 + $0x283]]
    %v1558 = vstv %s1557
    %v1559 = vmul.f32 %v1555, %v1558
    %v1560 = vmul.f32 %v1556, %v1558
    %v1561 = vadd.f32 %v1553, %v1559
    %v1562 = vadd.f32 %v1554, %v1560
    %s1563 = sld [smem:[#allocation7 + $0x5]]
    %v1564 = vstv %s1563
    %v1565 = vadd.f32 %v1561, %v1564
    %v1566 = vadd.f32 %v1562, %v1564
    %v1568 = vsel %vm143, %v1565, 0
    %v1571 = vsel %vm143, %v1566, 0
    %1573 = vmatprep.subr.mxu0 0.0
    %1574 = vmatpush1.msra.mxu0 %v104
    %1575 = vmatprep.subr.mxu0 0.0
    %1576 = vmatpush1.msra.mxu0 %v105
    %1577 = vmatprep.subr.mxu0 0.0
    %1578 = vmatpush1.msra.mxu0 0.0
    %1579 = vmatprep.subr.mxu0 0.0
    %1580 = vmatpush1.msra.mxu0 0.0
    %1581 = vmatprep.subr.mxu0 0.0
    %1582 = vmatpush1.msra.mxu0 0.0
    %1583 = vmatprep.subr.mxu0 0.0
    %1584 = vmatpush1.msra.mxu0 0.0
    %1585 = vmatprep.subr.mxu0 0.0
    %1586 = vmatpush1.msra.mxu0 0.0
    %1587 = vmatprep.subr.mxu0 0.0
    %1588 = vmatpush1.msra.mxu0 0.0
    %1589 = vmatprep.subr.mxu0 0.0
    %1590 = vmatpush1.msra.mxu0 0.0
    %1591 = vmatprep.subr.mxu0 0.0
    %1592 = vmatpush1.msra.mxu0 0.0
    %1593 = vmatprep.subr.mxu0 0.0
    %1594 = vmatpush1.msra.mxu0 0.0
    %1595 = vmatprep.subr.mxu0 0.0
    %1596 = vmatpush1.msra.mxu0 0.0
    %1597 = vmatprep.subr.mxu0 0.0
    %1598 = vmatpush1.msra.mxu0 0.0
    %1599 = vmatprep.subr.mxu0 0.0
    %1600 = vmatpush1.msra.mxu0 0.0
    %1601 = vmatprep.subr.mxu0 0.0
    %1602 = vmatpush1.msra.mxu0 0.0
    %1603 = vmatprep.subr.mxu0 0.0
    %1604 = vmatpush1.msra.mxu0 0.0
    %1605 = vmatprep.subr.mxu0 0.0
    %1606 = vmatpush1.msra.mxu0 0.0
    %1607 = vmatprep.subr.mxu0 0.0
    %1608 = vmatpush1.msra.mxu0 0.0
    %1609 = vmatprep.subr.mxu0 0.0
    %1610 = vmatpush1.msra.mxu0 0.0
    %1611 = vmatprep.subr.mxu0 0.0
    %1612 = vmatpush1.msra.mxu0 0.0
    %1613 = vmatprep.subr.mxu0 0.0
    %1614 = vmatpush1.msra.mxu0 0.0
    %1615 = vmatprep.subr.mxu0 0.0
    %1616 = vmatpush1.msra.mxu0 0.0
    %1617 = vmatprep.subr.mxu0 0.0
    %1618 = vmatpush1.msra.mxu0 0.0
    %1619 = vmatprep.subr.mxu0 0.0
    %1620 = vmatpush1.msra.mxu0 0.0
    %1621 = vmatprep.subr.mxu0 0.0
    %1622 = vmatpush1.msra.mxu0 0.0
    %1623 = vmatprep.subr.mxu0 0.0
    %1624 = vmatpush1.msra.mxu0 0.0
    %1625 = vmatprep.subr.mxu0 0.0
    %1626 = vmatpush1.msra.mxu0 0.0
    %1627 = vmatprep.subr.mxu0 0.0
    %1628 = vmatpush1.msra.mxu0 0.0
    %1629 = vmatprep.subr.mxu0 0.0
    %1630 = vmatpush1.msra.mxu0 0.0
    %1631 = vmatprep.subr.mxu0 0.0
    %1632 = vmatpush1.msra.mxu0 0.0
    %1633 = vmatprep.subr.mxu0 0.0
    %1634 = vmatpush1.msra.mxu0 0.0
    %1635 = vmatprep.subr.mxu0 0.0
    %1636 = vmatpush1.msra.mxu0 0.0
    %1637 = vmatprep.mubr.f32.mxu0 0.0
    %1638 = vmatmul.mubr.f32.gmra.mrb[0].mxu0 %v1568
    %v1639 = vpop.f32.mrb[0].mxu0
    %v1640 = vadd.f32 0.0, %v1639
    %v1641 = vpop.f32.mrb[0].mxu0
    %1642 = vmatprep.mubr.f32.mxu0 0.0
    %1643 = vmatmul.mubr.f32.gmra.mrb[0].mxu0 %v1571
    %v1644 = vpop.f32.mrb[0].mxu0
    %v1645 = vadd.f32 0.0, %v1644
    %v1646 = vpop.f32.mrb[0].mxu0
    %1647 = vdwg.mxu0
    %1648 = vmatprep.subr.mxu0 0.0
    %1649 = vmatpush1.msra.mxu0 %v1640
    %1650 = vmatprep.subr.mxu0 0.0
    %1651 = vmatpush1.msra.mxu0 %v1645
    %1652 = vmatprep.subr.mxu0 0.0
    %1653 = vmatpush1.msra.mxu0 0.0
    %1654 = vmatprep.subr.mxu0 0.0
    %1655 = vmatpush1.msra.mxu0 0.0
    %1656 = vmatprep.subr.mxu0 0.0
    %1657 = vmatpush1.msra.mxu0 0.0
    %1658 = vmatprep.subr.mxu0 0.0
    %1659 = vmatpush1.msra.mxu0 0.0
    %1660 = vmatprep.subr.mxu0 0.0
    %1661 = vmatpush1.msra.mxu0 0.0
    %1662 = vmatprep.subr.mxu0 0.0
    %1663 = vmatpush1.msra.mxu0 0.0
    %1664 = vmatprep.subr.mxu0 0.0
    %1665 = vmatpush1.msra.mxu0 0.0
    %1666 = vmatprep.subr.mxu0 0.0
    %1667 = vmatpush1.msra.mxu0 0.0
    %1668 = vmatprep.subr.mxu0 0.0
    %1669 = vmatpush1.msra.mxu0 0.0
    %1670 = vmatprep.subr.mxu0 0.0
    %1671 = vmatpush1.msra.mxu0 0.0
    %1672 = vmatprep.subr.mxu0 0.0
    %1673 = vmatpush1.msra.mxu0 0.0
    %1674 = vmatprep.subr.mxu0 0.0
    %1675 = vmatpush1.msra.mxu0 0.0
    %1676 = vmatprep.subr.mxu0 0.0
    %1677 = vmatpush1.msra.mxu0 0.0
    %1678 = vmatprep.subr.mxu0 0.0
    %1679 = vmatpush1.msra.mxu0 0.0
    %1680 = vmatprep.subr.mxu0 0.0
    %1681 = vmatpush1.msra.mxu0 0.0
    %1682 = vmatprep.subr.mxu0 0.0
    %1683 = vmatpush1.msra.mxu0 0.0
    %1684 = vmatprep.subr.mxu0 0.0
    %1685 = vmatpush1.msra.mxu0 0.0
    %1686 = vmatprep.subr.mxu0 0.0
    %1687 = vmatpush1.msra.mxu0 0.0
    %1688 = vmatprep.subr.mxu0 0.0
    %1689 = vmatpush1.msra.mxu0 0.0
    %1690 = vmatprep.subr.mxu0 0.0
    %1691 = vmatpush1.msra.mxu0 0.0
    %1692 = vmatprep.subr.mxu0 0.0
    %1693 = vmatpush1.msra.mxu0 0.0
    %1694 = vmatprep.subr.mxu0 0.0
    %1695 = vmatpush1.msra.mxu0 0.0
    %1696 = vmatprep.subr.mxu0 0.0
    %1697 = vmatpush1.msra.mxu0 0.0
    %1698 = vmatprep.subr.mxu0 0.0
    %1699 = vmatpush1.msra.mxu0 0.0
    %1700 = vmatprep.subr.mxu0 0.0
    %1701 = vmatpush1.msra.mxu0 0.0
    %1702 = vmatprep.subr.mxu0 0.0
    %1703 = vmatpush1.msra.mxu0 0.0
    %1704 = vmatprep.subr.mxu0 0.0
    %1705 = vmatpush1.msra.mxu0 0.0
    %1706 = vmatprep.subr.mxu0 0.0
    %1707 = vmatpush1.msra.mxu0 0.0
    %1708 = vmatprep.subr.mxu0 0.0
    %1709 = vmatpush1.msra.mxu0 0.0
    %1710 = vmatprep.subr.mxu0 0.0
    %1711 = vmatpush1.msra.mxu0 0.0
    %1712 = vmatprep.mubr.f32.mxu0 0.0
    %1713 = vmatmul.mubr.f32.gmra.mrb[0].mxu0 %v226
    %v1714 = vpop.f32.mrb[0].mxu0
    %v1715 = vadd.f32 0.0, %v1714
    %v1716 = vpop.f32.mrb[0].mxu0
    %1717 = vmatprep.mubr.f32.mxu0 0.0
    %1718 = vmatmul.mubr.f32.gmra.mrb[0].mxu0 %v229
    %v1719 = vpop.f32.mrb[0].mxu0
    %v1720 = vadd.f32 0.0, %v1719
    %v1721 = vpop.f32.mrb[0].mxu0
    %1722 = vdwg.mxu0
    %1723 = vmatprep.subr.mxu0 0.0
    %1724 = vmatpush1.msra.mxu0 %v1640
    %1725 = vmatprep.subr.mxu0 0.0
    %1726 = vmatpush1.msra.mxu0 %v1645
    %1727 = vmatprep.subr.mxu0 0.0
    %1728 = vmatpush1.msra.mxu0 0.0
    %1729 = vmatprep.subr.mxu0 0.0
    %1730 = vmatpush1.msra.mxu0 0.0
    %1731 = vmatprep.subr.mxu0 0.0
    %1732 = vmatpush1.msra.mxu0 0.0
    %1733 = vmatprep.subr.mxu0 0.0
    %1734 = vmatpush1.msra.mxu0 0.0
    %1735 = vmatprep.subr.mxu0 0.0
    %1736 = vmatpush1.msra.mxu0 0.0
    %1737 = vmatprep.subr.mxu0 0.0
    %1738 = vmatpush1.msra.mxu0 0.0
    %1739 = vmatprep.subr.mxu0 0.0
    %1740 = vmatpush1.msra.mxu0 0.0
    %1741 = vmatprep.subr.mxu0 0.0
    %1742 = vmatpush1.msra.mxu0 0.0
    %1743 = vmatprep.subr.mxu0 0.0
    %1744 = vmatpush1.msra.mxu0 0.0
    %1745 = vmatprep.subr.mxu0 0.0
    %1746 = vmatpush1.msra.mxu0 0.0
    %1747 = vmatprep.subr.mxu0 0.0
    %1748 = vmatpush1.msra.mxu0 0.0
    %1749 = vmatprep.subr.mxu0 0.0
    %1750 = vmatpush1.msra.mxu0 0.0
    %1751 = vmatprep.subr.mxu0 0.0
    %1752 = vmatpush1.msra.mxu0 0.0
    %1753 = vmatprep.subr.mxu0 0.0
    %1754 = vmatpush1.msra.mxu0 0.0
    %1755 = vmatprep.subr.mxu0 0.0
    %1756 = vmatpush1.msra.mxu0 0.0
    %1757 = vmatprep.subr.mxu0 0.0
    %1758 = vmatpush1.msra.mxu0 0.0
    %1759 = vmatprep.subr.mxu0 0.0
    %1760 = vmatpush1.msra.mxu0 0.0
    %1761 = vmatprep.subr.mxu0 0.0
    %1762 = vmatpush1.msra.mxu0 0.0
    %1763 = vmatprep.subr.mxu0 0.0
    %1764 = vmatpush1.msra.mxu0 0.0
    %1765 = vmatprep.subr.mxu0 0.0
    %1766 = vmatpush1.msra.mxu0 0.0
    %1767 = vmatprep.subr.mxu0 0.0
    %1768 = vmatpush1.msra.mxu0 0.0
    %1769 = vmatprep.subr.mxu0 0.0
    %1770 = vmatpush1.msra.mxu0 0.0
    %1771 = vmatprep.subr.mxu0 0.0
    %1772 = vmatpush1.msra.mxu0 0.0
    %1773 = vmatprep.subr.mxu0 0.0
    %1774 = vmatpush1.msra.mxu0 0.0
    %1775 = vmatprep.subr.mxu0 0.0
    %1776 = vmatpush1.msra.mxu0 0.0
    %1777 = vmatprep.subr.mxu0 0.0
    %1778 = vmatpush1.msra.mxu0 0.0
    %1779 = vmatprep.subr.mxu0 0.0
    %1780 = vmatpush1.msra.mxu0 0.0
    %1781 = vmatprep.subr.mxu0 0.0
    %1782 = vmatpush1.msra.mxu0 0.0
    %1783 = vmatprep.subr.mxu0 0.0
    %1784 = vmatpush1.msra.mxu0 0.0
    %1785 = vmatprep.subr.mxu0 0.0
    %1786 = vmatpush1.msra.mxu0 0.0
    %1787 = vmatprep.mubr.f32.mxu0 0.0
    %1788 = vmatmul.mubr.f32.gmra.mrb[0].mxu0 %v307
    %v1789 = vpop.f32.mrb[0].mxu0
    %v1790 = vadd.f32 0.0, %v1789
    %v1791 = vpop.f32.mrb[0].mxu0
    %1792 = vmatprep.mubr.f32.mxu0 0.0
    %1793 = vmatmul.mubr.f32.gmra.mrb[0].mxu0 %v310
    %v1794 = vpop.f32.mrb[0].mxu0
    %v1795 = vadd.f32 0.0, %v1794
    %v1796 = vpop.f32.mrb[0].mxu0
    %1797 = vdwg.mxu0
    %v1798 = vmax.f32 %v1715, 0.0
    %v1799 = vmax.f32 %v1720, 0.0
    %s1800 = scalar_lea.vmem [#allocation14], 80
    %1801 = vst.msk [vmem:[%s1800] sm:$0xff] %vm389, %v1798
    %1802 = vst.msk [vmem:[%s1800 + $0x8] sm:$0xff] %vm389, %v1799
    %v1803 = vmax.f32 %v1790, 0.0
    %v1804 = vmax.f32 %v1795, 0.0
    %1807 = vrot.lane.b32.xlu0 %v1803, 32
    %v1808 = vpop.permute.xlu0 %1807
    %1809 = vrot.lane.b32.xlu0 %v1804, 32
    %v1810 = vpop.permute.xlu0 %1809
    %1813 = vst.msk [vmem:[%s1800] sm:$0xff] %vm402, %v1808
    %1814 = vst.msk [vmem:[%s1800 + $0x8] sm:$0xff] %vm402, %v1810
    %v1815 = vld [vmem:[#allocation2] sm:$0xff]
    %v1816 = vld [vmem:[#allocation2 + $0x8] sm:$0xff]
    %s1817 = sld [smem:[#allocation6 + $0x300]]
    %v1818 = vstv %s1817
    %v1819 = vmul.f32 %v1815, %v1818
    %v1820 = vmul.f32 %v1816, %v1818
    %v1821 = vld [vmem:[%s112] sm:$0xff]
    %v1822 = vld [vmem:[%s112 + $0x8] sm:$0xff]
    %s1823 = sld [smem:[#allocation6 + $0x301]]
    %v1824 = vstv %s1823
    %v1825 = vmul.f32 %v1821, %v1824
    %v1826 = vmul.f32 %v1822, %v1824
    %v1827 = vadd.f32 %v1819, %v1825
    %v1828 = vadd.f32 %v1820, %v1826
    %v1829 = vld [vmem:[%s121] sm:$0xff]
    %v1830 = vld [vmem:[%s121 + $0x8] sm:$0xff]
    %s1831 = sld [smem:[#allocation6 + $0x302]]
    %v1832 = vstv %s1831
    %v1833 = vmul.f32 %v1829, %v1832
    %v1834 = vmul.f32 %v1830, %v1832
    %v1835 = vadd.f32 %v1827, %v1833
    %v1836 = vadd.f32 %v1828, %v1834
    %v1837 = vld [vmem:[%s130] sm:$0xff]
    %v1838 = vld [vmem:[%s130 + $0x8] sm:$0xff]
    %s1839 = sld [smem:[#allocation6 + $0x303]]
    %v1840 = vstv %s1839
    %v1841 = vmul.f32 %v1837, %v1840
    %v1842 = vmul.f32 %v1838, %v1840
    %v1843 = vadd.f32 %v1835, %v1841
    %v1844 = vadd.f32 %v1836, %v1842
    %s1845 = sld [smem:[#allocation7 + $0x6]]
    %v1846 = vstv %s1845
    %v1847 = vadd.f32 %v1843, %v1846
    %v1848 = vadd.f32 %v1844, %v1846
    %v1850 = vsel %vm143, %v1847, 0
    %v1853 = vsel %vm143, %v1848, 0
    %1855 = vmatprep.subr.mxu0 0.0
    %1856 = vmatpush1.msra.mxu0 %v104
    %1857 = vmatprep.subr.mxu0 0.0
    %1858 = vmatpush1.msra.mxu0 %v105
    %1859 = vmatprep.subr.mxu0 0.0
    %1860 = vmatpush1.msra.mxu0 0.0
    %1861 = vmatprep.subr.mxu0 0.0
    %1862 = vmatpush1.msra.mxu0 0.0
    %1863 = vmatprep.subr.mxu0 0.0
    %1864 = vmatpush1.msra.mxu0 0.0
    %1865 = vmatprep.subr.mxu0 0.0
    %1866 = vmatpush1.msra.mxu0 0.0
    %1867 = vmatprep.subr.mxu0 0.0
    %1868 = vmatpush1.msra.mxu0 0.0
    %1869 = vmatprep.subr.mxu0 0.0
    %1870 = vmatpush1.msra.mxu0 0.0
    %1871 = vmatprep.subr.mxu0 0.0
    %1872 = vmatpush1.msra.mxu0 0.0
    %1873 = vmatprep.subr.mxu0 0.0
    %1874 = vmatpush1.msra.mxu0 0.0
    %1875 = vmatprep.subr.mxu0 0.0
    %1876 = vmatpush1.msra.mxu0 0.0
    %1877 = vmatprep.subr.mxu0 0.0
    %1878 = vmatpush1.msra.mxu0 0.0
    %1879 = vmatprep.subr.mxu0 0.0
    %1880 = vmatpush1.msra.mxu0 0.0
    %1881 = vmatprep.subr.mxu0 0.0
    %1882 = vmatpush1.msra.mxu0 0.0
    %1883 = vmatprep.subr.mxu0 0.0
    %1884 = vmatpush1.msra.mxu0 0.0
    %1885 = vmatprep.subr.mxu0 0.0
    %1886 = vmatpush1.msra.mxu0 0.0
    %1887 = vmatprep.subr.mxu0 0.0
    %1888 = vmatpush1.msra.mxu0 0.0
    %1889 = vmatprep.subr.mxu0 0.0
    %1890 = vmatpush1.msra.mxu0 0.0
    %1891 = vmatprep.subr.mxu0 0.0
    %1892 = vmatpush1.msra.mxu0 0.0
    %1893 = vmatprep.subr.mxu0 0.0
    %1894 = vmatpush1.msra.mxu0 0.0
    %1895 = vmatprep.subr.mxu0 0.0
    %1896 = vmatpush1.msra.mxu0 0.0
    %1897 = vmatprep.subr.mxu0 0.0
    %1898 = vmatpush1.msra.mxu0 0.0
    %1899 = vmatprep.subr.mxu0 0.0
    %1900 = vmatpush1.msra.mxu0 0.0
    %1901 = vmatprep.subr.mxu0 0.0
    %1902 = vmatpush1.msra.mxu0 0.0
    %1903 = vmatprep.subr.mxu0 0.0
    %1904 = vmatpush1.msra.mxu0 0.0
    %1905 = vmatprep.subr.mxu0 0.0
    %1906 = vmatpush1.msra.mxu0 0.0
    %1907 = vmatprep.subr.mxu0 0.0
    %1908 = vmatpush1.msra.mxu0 0.0
    %1909 = vmatprep.subr.mxu0 0.0
    %1910 = vmatpush1.msra.mxu0 0.0
    %1911 = vmatprep.subr.mxu0 0.0
    %1912 = vmatpush1.msra.mxu0 0.0
    %1913 = vmatprep.subr.mxu0 0.0
    %1914 = vmatpush1.msra.mxu0 0.0
    %1915 = vmatprep.subr.mxu0 0.0
    %1916 = vmatpush1.msra.mxu0 0.0
    %1917 = vmatprep.subr.mxu0 0.0
    %1918 = vmatpush1.msra.mxu0 0.0
    %1919 = vmatprep.mubr.f32.mxu0 0.0
    %1920 = vmatmul.mubr.f32.gmra.mrb[0].mxu0 %v1850
    %v1921 = vpop.f32.mrb[0].mxu0
    %v1922 = vadd.f32 0.0, %v1921
    %v1923 = vpop.f32.mrb[0].mxu0
    %1924 = vmatprep.mubr.f32.mxu0 0.0
    %1925 = vmatmul.mubr.f32.gmra.mrb[0].mxu0 %v1853
    %v1926 = vpop.f32.mrb[0].mxu0
    %v1927 = vadd.f32 0.0, %v1926
    %v1928 = vpop.f32.mrb[0].mxu0
    %1929 = vdwg.mxu0
    %1930 = vmatprep.subr.mxu0 0.0
    %1931 = vmatpush1.msra.mxu0 %v1922
    %1932 = vmatprep.subr.mxu0 0.0
    %1933 = vmatpush1.msra.mxu0 %v1927
    %1934 = vmatprep.subr.mxu0 0.0
    %1935 = vmatpush1.msra.mxu0 0.0
    %1936 = vmatprep.subr.mxu0 0.0
    %1937 = vmatpush1.msra.mxu0 0.0
    %1938 = vmatprep.subr.mxu0 0.0
    %1939 = vmatpush1.msra.mxu0 0.0
    %1940 = vmatprep.subr.mxu0 0.0
    %1941 = vmatpush1.msra.mxu0 0.0
    %1942 = vmatprep.subr.mxu0 0.0
    %1943 = vmatpush1.msra.mxu0 0.0
    %1944 = vmatprep.subr.mxu0 0.0
    %1945 = vmatpush1.msra.mxu0 0.0
    %1946 = vmatprep.subr.mxu0 0.0
    %1947 = vmatpush1.msra.mxu0 0.0
    %1948 = vmatprep.subr.mxu0 0.0
    %1949 = vmatpush1.msra.mxu0 0.0
    %1950 = vmatprep.subr.mxu0 0.0
    %1951 = vmatpush1.msra.mxu0 0.0
    %1952 = vmatprep.subr.mxu0 0.0
    %1953 = vmatpush1.msra.mxu0 0.0
    %1954 = vmatprep.subr.mxu0 0.0
    %1955 = vmatpush1.msra.mxu0 0.0
    %1956 = vmatprep.subr.mxu0 0.0
    %1957 = vmatpush1.msra.mxu0 0.0
    %1958 = vmatprep.subr.mxu0 0.0
    %1959 = vmatpush1.msra.mxu0 0.0
    %1960 = vmatprep.subr.mxu0 0.0
    %1961 = vmatpush1.msra.mxu0 0.0
    %1962 = vmatprep.subr.mxu0 0.0
    %1963 = vmatpush1.msra.mxu0 0.0
    %1964 = vmatprep.subr.mxu0 0.0
    %1965 = vmatpush1.msra.mxu0 0.0
    %1966 = vmatprep.subr.mxu0 0.0
    %1967 = vmatpush1.msra.mxu0 0.0
    %1968 = vmatprep.subr.mxu0 0.0
    %1969 = vmatpush1.msra.mxu0 0.0
    %1970 = vmatprep.subr.mxu0 0.0
    %1971 = vmatpush1.msra.mxu0 0.0
    %1972 = vmatprep.subr.mxu0 0.0
    %1973 = vmatpush1.msra.mxu0 0.0
    %1974 = vmatprep.subr.mxu0 0.0
    %1975 = vmatpush1.msra.mxu0 0.0
    %1976 = vmatprep.subr.mxu0 0.0
    %1977 = vmatpush1.msra.mxu0 0.0
    %1978 = vmatprep.subr.mxu0 0.0
    %1979 = vmatpush1.msra.mxu0 0.0
    %1980 = vmatprep.subr.mxu0 0.0
    %1981 = vmatpush1.msra.mxu0 0.0
    %1982 = vmatprep.subr.mxu0 0.0
    %1983 = vmatpush1.msra.mxu0 0.0
    %1984 = vmatprep.subr.mxu0 0.0
    %1985 = vmatpush1.msra.mxu0 0.0
    %1986 = vmatprep.subr.mxu0 0.0
    %1987 = vmatpush1.msra.mxu0 0.0
    %1988 = vmatprep.subr.mxu0 0.0
    %1989 = vmatpush1.msra.mxu0 0.0
    %1990 = vmatprep.subr.mxu0 0.0
    %1991 = vmatpush1.msra.mxu0 0.0
    %1992 = vmatprep.subr.mxu0 0.0
    %1993 = vmatpush1.msra.mxu0 0.0
    %1994 = vmatprep.mubr.f32.mxu0 0.0
    %1995 = vmatmul.mubr.f32.gmra.mrb[0].mxu0 %v226
    %v1996 = vpop.f32.mrb[0].mxu0
    %v1997 = vadd.f32 0.0, %v1996
    %v1998 = vpop.f32.mrb[0].mxu0
    %1999 = vmatprep.mubr.f32.mxu0 0.0
    %2000 = vmatmul.mubr.f32.gmra.mrb[0].mxu0 %v229
    %v2001 = vpop.f32.mrb[0].mxu0
    %v2002 = vadd.f32 0.0, %v2001
    %v2003 = vpop.f32.mrb[0].mxu0
    %2004 = vdwg.mxu0
    %2005 = vmatprep.subr.mxu0 0.0
    %2006 = vmatpush1.msra.mxu0 %v1922
    %2007 = vmatprep.subr.mxu0 0.0
    %2008 = vmatpush1.msra.mxu0 %v1927
    %2009 = vmatprep.subr.mxu0 0.0
    %2010 = vmatpush1.msra.mxu0 0.0
    %2011 = vmatprep.subr.mxu0 0.0
    %2012 = vmatpush1.msra.mxu0 0.0
    %2013 = vmatprep.subr.mxu0 0.0
    %2014 = vmatpush1.msra.mxu0 0.0
    %2015 = vmatprep.subr.mxu0 0.0
    %2016 = vmatpush1.msra.mxu0 0.0
    %2017 = vmatprep.subr.mxu0 0.0
    %2018 = vmatpush1.msra.mxu0 0.0
    %2019 = vmatprep.subr.mxu0 0.0
    %2020 = vmatpush1.msra.mxu0 0.0
    %2021 = vmatprep.subr.mxu0 0.0
    %2022 = vmatpush1.msra.mxu0 0.0
    %2023 = vmatprep.subr.mxu0 0.0
    %2024 = vmatpush1.msra.mxu0 0.0
    %2025 = vmatprep.subr.mxu0 0.0
    %2026 = vmatpush1.msra.mxu0 0.0
    %2027 = vmatprep.subr.mxu0 0.0
    %2028 = vmatpush1.msra.mxu0 0.0
    %2029 = vmatprep.subr.mxu0 0.0
    %2030 = vmatpush1.msra.mxu0 0.0
    %2031 = vmatprep.subr.mxu0 0.0
    %2032 = vmatpush1.msra.mxu0 0.0
    %2033 = vmatprep.subr.mxu0 0.0
    %2034 = vmatpush1.msra.mxu0 0.0
    %2035 = vmatprep.subr.mxu0 0.0
    %2036 = vmatpush1.msra.mxu0 0.0
    %2037 = vmatprep.subr.mxu0 0.0
    %2038 = vmatpush1.msra.mxu0 0.0
    %2039 = vmatprep.subr.mxu0 0.0
    %2040 = vmatpush1.msra.mxu0 0.0
    %2041 = vmatprep.subr.mxu0 0.0
    %2042 = vmatpush1.msra.mxu0 0.0
    %2043 = vmatprep.subr.mxu0 0.0
    %2044 = vmatpush1.msra.mxu0 0.0
    %2045 = vmatprep.subr.mxu0 0.0
    %2046 = vmatpush1.msra.mxu0 0.0
    %2047 = vmatprep.subr.mxu0 0.0
    %2048 = vmatpush1.msra.mxu0 0.0
    %2049 = vmatprep.subr.mxu0 0.0
    %2050 = vmatpush1.msra.mxu0 0.0
    %2051 = vmatprep.subr.mxu0 0.0
    %2052 = vmatpush1.msra.mxu0 0.0
    %2053 = vmatprep.subr.mxu0 0.0
    %2054 = vmatpush1.msra.mxu0 0.0
    %2055 = vmatprep.subr.mxu0 0.0
    %2056 = vmatpush1.msra.mxu0 0.0
    %2057 = vmatprep.subr.mxu0 0.0
    %2058 = vmatpush1.msra.mxu0 0.0
    %2059 = vmatprep.subr.mxu0 0.0
    %2060 = vmatpush1.msra.mxu0 0.0
    %2061 = vmatprep.subr.mxu0 0.0
    %2062 = vmatpush1.msra.mxu0 0.0
    %2063 = vmatprep.subr.mxu0 0.0
    %2064 = vmatpush1.msra.mxu0 0.0
    %2065 = vmatprep.subr.mxu0 0.0
    %2066 = vmatpush1.msra.mxu0 0.0
    %2067 = vmatprep.subr.mxu0 0.0
    %2068 = vmatpush1.msra.mxu0 0.0
    %2069 = vmatprep.mubr.f32.mxu0 0.0
    %2070 = vmatmul.mubr.f32.gmra.mrb[0].mxu0 %v307
    %v2071 = vpop.f32.mrb[0].mxu0
    %v2072 = vadd.f32 0.0, %v2071
    %v2073 = vpop.f32.mrb[0].mxu0
    %2074 = vmatprep.mubr.f32.mxu0 0.0
    %2075 = vmatmul.mubr.f32.gmra.mrb[0].mxu0 %v310
    %v2076 = vpop.f32.mrb[0].mxu0
    %v2077 = vadd.f32 0.0, %v2076
    %v2078 = vpop.f32.mrb[0].mxu0
    %2079 = vdwg.mxu0
    %v2080 = vmax.f32 %v1997, 0.0
    %v2081 = vmax.f32 %v2002, 0.0
    %s2082 = scalar_lea.vmem [#allocation14], 96
    %2083 = vst.msk [vmem:[%s2082] sm:$0xff] %vm389, %v2080
    %2084 = vst.msk [vmem:[%s2082 + $0x8] sm:$0xff] %vm389, %v2081
    %v2085 = vmax.f32 %v2072, 0.0
    %v2086 = vmax.f32 %v2077, 0.0
    %2089 = vrot.lane.b32.xlu0 %v2085, 32
    %v2090 = vpop.permute.xlu0 %2089
    %2091 = vrot.lane.b32.xlu0 %v2086, 32
    %v2092 = vpop.permute.xlu0 %2091
    %2095 = vst.msk [vmem:[%s2082] sm:$0xff] %vm402, %v2090
    %2096 = vst.msk [vmem:[%s2082 + $0x8] sm:$0xff] %vm402, %v2092
    %v2097 = vld [vmem:[#allocation2] sm:$0xff]
    %v2098 = vld [vmem:[#allocation2 + $0x8] sm:$0xff]
    %s2099 = sld [smem:[#allocation6 + $0x380]]
    %v2100 = vstv %s2099
    %v2101 = vmul.f32 %v2097, %v2100
    %v2102 = vmul.f32 %v2098, %v2100
    %v2103 = vld [vmem:[%s112] sm:$0xff]
    %v2104 = vld [vmem:[%s112 + $0x8] sm:$0xff]
    %s2105 = sld [smem:[#allocation6 + $0x381]]
    %v2106 = vstv %s2105
    %v2107 = vmul.f32 %v2103, %v2106
    %v2108 = vmul.f32 %v2104, %v2106
    %v2109 = vadd.f32 %v2101, %v2107
    %v2110 = vadd.f32 %v2102, %v2108
    %v2111 = vld [vmem:[%s121] sm:$0xff]
    %v2112 = vld [vmem:[%s121 + $0x8] sm:$0xff]
    %s2113 = sld [smem:[#allocation6 + $0x382]]
    %v2114 = vstv %s2113
    %v2115 = vmul.f32 %v2111, %v2114
    %v2116 = vmul.f32 %v2112, %v2114
    %v2117 = vadd.f32 %v2109, %v2115
    %v2118 = vadd.f32 %v2110, %v2116
    %v2119 = vld [vmem:[%s130] sm:$0xff]
    %v2120 = vld [vmem:[%s130 + $0x8] sm:$0xff]
    %s2121 = sld [smem:[#allocation6 + $0x383]]
    %v2122 = vstv %s2121
    %v2123 = vmul.f32 %v2119, %v2122
    %v2124 = vmul.f32 %v2120, %v2122
    %v2125 = vadd.f32 %v2117, %v2123
    %v2126 = vadd.f32 %v2118, %v2124
    %s2127 = sld [smem:[#allocation7 + $0x7]]
    %v2128 = vstv %s2127
    %v2129 = vadd.f32 %v2125, %v2128
    %v2130 = vadd.f32 %v2126, %v2128
    %v2132 = vsel %vm143, %v2129, 0
    %v2135 = vsel %vm143, %v2130, 0
    %2137 = vmatprep.subr.mxu0 0.0
    %2138 = vmatpush1.msra.mxu0 %v104
    %2139 = vmatprep.subr.mxu0 0.0
    %2140 = vmatpush1.msra.mxu0 %v105
    %2141 = vmatprep.subr.mxu0 0.0
    %2142 = vmatpush1.msra.mxu0 0.0
    %2143 = vmatprep.subr.mxu0 0.0
    %2144 = vmatpush1.msra.mxu0 0.0
    %2145 = vmatprep.subr.mxu0 0.0
    %2146 = vmatpush1.msra.mxu0 0.0
    %2147 = vmatprep.subr.mxu0 0.0
    %2148 = vmatpush1.msra.mxu0 0.0
    %2149 = vmatprep.subr.mxu0 0.0
    %2150 = vmatpush1.msra.mxu0 0.0
    %2151 = vmatprep.subr.mxu0 0.0
    %2152 = vmatpush1.msra.mxu0 0.0
    %2153 = vmatprep.subr.mxu0 0.0
    %2154 = vmatpush1.msra.mxu0 0.0
    %2155 = vmatprep.subr.mxu0 0.0
    %2156 = vmatpush1.msra.mxu0 0.0
    %2157 = vmatprep.subr.mxu0 0.0
    %2158 = vmatpush1.msra.mxu0 0.0
    %2159 = vmatprep.subr.mxu0 0.0
    %2160 = vmatpush1.msra.mxu0 0.0
    %2161 = vmatprep.subr.mxu0 0.0
    %2162 = vmatpush1.msra.mxu0 0.0
    %2163 = vmatprep.subr.mxu0 0.0
    %2164 = vmatpush1.msra.mxu0 0.0
    %2165 = vmatprep.subr.mxu0 0.0
    %2166 = vmatpush1.msra.mxu0 0.0
    %2167 = vmatprep.subr.mxu0 0.0
    %2168 = vmatpush1.msra.mxu0 0.0
    %2169 = vmatprep.subr.mxu0 0.0
    %2170 = vmatpush1.msra.mxu0 0.0
    %2171 = vmatprep.subr.mxu0 0.0
    %2172 = vmatpush1.msra.mxu0 0.0
    %2173 = vmatprep.subr.mxu0 0.0
    %2174 = vmatpush1.msra.mxu0 0.0
    %2175 = vmatprep.subr.mxu0 0.0
    %2176 = vmatpush1.msra.mxu0 0.0
    %2177 = vmatprep.subr.mxu0 0.0
    %2178 = vmatpush1.msra.mxu0 0.0
    %2179 = vmatprep.subr.mxu0 0.0
    %2180 = vmatpush1.msra.mxu0 0.0
    %2181 = vmatprep.subr.mxu0 0.0
    %2182 = vmatpush1.msra.mxu0 0.0
    %2183 = vmatprep.subr.mxu0 0.0
    %2184 = vmatpush1.msra.mxu0 0.0
    %2185 = vmatprep.subr.mxu0 0.0
    %2186 = vmatpush1.msra.mxu0 0.0
    %2187 = vmatprep.subr.mxu0 0.0
    %2188 = vmatpush1.msra.mxu0 0.0
    %2189 = vmatprep.subr.mxu0 0.0
    %2190 = vmatpush1.msra.mxu0 0.0
    %2191 = vmatprep.subr.mxu0 0.0
    %2192 = vmatpush1.msra.mxu0 0.0
    %2193 = vmatprep.subr.mxu0 0.0
    %2194 = vmatpush1.msra.mxu0 0.0
    %2195 = vmatprep.subr.mxu0 0.0
    %2196 = vmatpush1.msra.mxu0 0.0
    %2197 = vmatprep.subr.mxu0 0.0
    %2198 = vmatpush1.msra.mxu0 0.0
    %2199 = vmatprep.subr.mxu0 0.0
    %2200 = vmatpush1.msra.mxu0 0.0
    %2201 = vmatprep.mubr.f32.mxu0 0.0
    %2202 = vmatmul.mubr.f32.gmra.mrb[0].mxu0 %v2132
    %v2203 = vpop.f32.mrb[0].mxu0
    %v2204 = vadd.f32 0.0, %v2203
    %v2205 = vpop.f32.mrb[0].mxu0
    %2206 = vmatprep.mubr.f32.mxu0 0.0
    %2207 = vmatmul.mubr.f32.gmra.mrb[0].mxu0 %v2135
    %v2208 = vpop.f32.mrb[0].mxu0
    %v2209 = vadd.f32 0.0, %v2208
    %v2210 = vpop.f32.mrb[0].mxu0
    %2211 = vdwg.mxu0
    %2212 = vmatprep.subr.mxu0 0.0
    %2213 = vmatpush1.msra.mxu0 %v2204
    %2214 = vmatprep.subr.mxu0 0.0
    %2215 = vmatpush1.msra.mxu0 %v2209
    %2216 = vmatprep.subr.mxu0 0.0
    %2217 = vmatpush1.msra.mxu0 0.0
    %2218 = vmatprep.subr.mxu0 0.0
    %2219 = vmatpush1.msra.mxu0 0.0
    %2220 = vmatprep.subr.mxu0 0.0
    %2221 = vmatpush1.msra.mxu0 0.0
    %2222 = vmatprep.subr.mxu0 0.0
    %2223 = vmatpush1.msra.mxu0 0.0
    %2224 = vmatprep.subr.mxu0 0.0
    %2225 = vmatpush1.msra.mxu0 0.0
    %2226 = vmatprep.subr.mxu0 0.0
    %2227 = vmatpush1.msra.mxu0 0.0
    %2228 = vmatprep.subr.mxu0 0.0
    %2229 = vmatpush1.msra.mxu0 0.0
    %2230 = vmatprep.subr.mxu0 0.0
    %2231 = vmatpush1.msra.mxu0 0.0
    %2232 = vmatprep.subr.mxu0 0.0
    %2233 = vmatpush1.msra.mxu0 0.0
    %2234 = vmatprep.subr.mxu0 0.0
    %2235 = vmatpush1.msra.mxu0 0.0
    %2236 = vmatprep.subr.mxu0 0.0
    %2237 = vmatpush1.msra.mxu0 0.0
    %2238 = vmatprep.subr.mxu0 0.0
    %2239 = vmatpush1.msra.mxu0 0.0
    %2240 = vmatprep.subr.mxu0 0.0
    %2241 = vmatpush1.msra.mxu0 0.0
    %2242 = vmatprep.subr.mxu0 0.0
    %2243 = vmatpush1.msra.mxu0 0.0
    %2244 = vmatprep.subr.mxu0 0.0
    %2245 = vmatpush1.msra.mxu0 0.0
    %2246 = vmatprep.subr.mxu0 0.0
    %2247 = vmatpush1.msra.mxu0 0.0
    %2248 = vmatprep.subr.mxu0 0.0
    %2249 = vmatpush1.msra.mxu0 0.0
    %2250 = vmatprep.subr.mxu0 0.0
    %2251 = vmatpush1.msra.mxu0 0.0
    %2252 = vmatprep.subr.mxu0 0.0
    %2253 = vmatpush1.msra.mxu0 0.0
    %2254 = vmatprep.subr.mxu0 0.0
    %2255 = vmatpush1.msra.mxu0 0.0
    %2256 = vmatprep.subr.mxu0 0.0
    %2257 = vmatpush1.msra.mxu0 0.0
    %2258 = vmatprep.subr.mxu0 0.0
    %2259 = vmatpush1.msra.mxu0 0.0
    %2260 = vmatprep.subr.mxu0 0.0
    %2261 = vmatpush1.msra.mxu0 0.0
    %2262 = vmatprep.subr.mxu0 0.0
    %2263 = vmatpush1.msra.mxu0 0.0
    %2264 = vmatprep.subr.mxu0 0.0
    %2265 = vmatpush1.msra.mxu0 0.0
    %2266 = vmatprep.subr.mxu0 0.0
    %2267 = vmatpush1.msra.mxu0 0.0
    %2268 = vmatprep.subr.mxu0 0.0
    %2269 = vmatpush1.msra.mxu0 0.0
    %2270 = vmatprep.subr.mxu0 0.0
    %2271 = vmatpush1.msra.mxu0 0.0
    %2272 = vmatprep.subr.mxu0 0.0
    %2273 = vmatpush1.msra.mxu0 0.0
    %2274 = vmatprep.subr.mxu0 0.0
    %2275 = vmatpush1.msra.mxu0 0.0
    %2276 = vmatprep.mubr.f32.mxu0 0.0
    %2277 = vmatmul.mubr.f32.gmra.mrb[0].mxu0 %v226
    %v2278 = vpop.f32.mrb[0].mxu0
    %v2279 = vadd.f32 0.0, %v2278
    %v2280 = vpop.f32.mrb[0].mxu0
    %2281 = vmatprep.mubr.f32.mxu0 0.0
    %2282 = vmatmul.mubr.f32.gmra.mrb[0].mxu0 %v229
    %v2283 = vpop.f32.mrb[0].mxu0
    %v2284 = vadd.f32 0.0, %v2283
    %v2285 = vpop.f32.mrb[0].mxu0
    %2286 = vdwg.mxu0
    %2287 = vmatprep.subr.mxu0 0.0
    %2288 = vmatpush1.msra.mxu0 %v2204
    %2289 = vmatprep.subr.mxu0 0.0
    %2290 = vmatpush1.msra.mxu0 %v2209
    %2291 = vmatprep.subr.mxu0 0.0
    %2292 = vmatpush1.msra.mxu0 0.0
    %2293 = vmatprep.subr.mxu0 0.0
    %2294 = vmatpush1.msra.mxu0 0.0
    %2295 = vmatprep.subr.mxu0 0.0
    %2296 = vmatpush1.msra.mxu0 0.0
    %2297 = vmatprep.subr.mxu0 0.0
    %2298 = vmatpush1.msra.mxu0 0.0
    %2299 = vmatprep.subr.mxu0 0.0
    %2300 = vmatpush1.msra.mxu0 0.0
    %2301 = vmatprep.subr.mxu0 0.0
    %2302 = vmatpush1.msra.mxu0 0.0
    %2303 = vmatprep.subr.mxu0 0.0
    %2304 = vmatpush1.msra.mxu0 0.0
    %2305 = vmatprep.subr.mxu0 0.0
    %2306 = vmatpush1.msra.mxu0 0.0
    %2307 = vmatprep.subr.mxu0 0.0
    %2308 = vmatpush1.msra.mxu0 0.0
    %2309 = vmatprep.subr.mxu0 0.0
    %2310 = vmatpush1.msra.mxu0 0.0
    %2311 = vmatprep.subr.mxu0 0.0
    %2312 = vmatpush1.msra.mxu0 0.0
    %2313 = vmatprep.subr.mxu0 0.0
    %2314 = vmatpush1.msra.mxu0 0.0
    %2315 = vmatprep.subr.mxu0 0.0
    %2316 = vmatpush1.msra.mxu0 0.0
    %2317 = vmatprep.subr.mxu0 0.0
    %2318 = vmatpush1.msra.mxu0 0.0
    %2319 = vmatprep.subr.mxu0 0.0
    %2320 = vmatpush1.msra.mxu0 0.0
    %2321 = vmatprep.subr.mxu0 0.0
    %2322 = vmatpush1.msra.mxu0 0.0
    %2323 = vmatprep.subr.mxu0 0.0
    %2324 = vmatpush1.msra.mxu0 0.0
    %2325 = vmatprep.subr.mxu0 0.0
    %2326 = vmatpush1.msra.mxu0 0.0
    %2327 = vmatprep.subr.mxu0 0.0
    %2328 = vmatpush1.msra.mxu0 0.0
    %2329 = vmatprep.subr.mxu0 0.0
    %2330 = vmatpush1.msra.mxu0 0.0
    %2331 = vmatprep.subr.mxu0 0.0
    %2332 = vmatpush1.msra.mxu0 0.0
    %2333 = vmatprep.subr.mxu0 0.0
    %2334 = vmatpush1.msra.mxu0 0.0
    %2335 = vmatprep.subr.mxu0 0.0
    %2336 = vmatpush1.msra.mxu0 0.0
    %2337 = vmatprep.subr.mxu0 0.0
    %2338 = vmatpush1.msra.mxu0 0.0
    %2339 = vmatprep.subr.mxu0 0.0
    %2340 = vmatpush1.msra.mxu0 0.0
    %2341 = vmatprep.subr.mxu0 0.0
    %2342 = vmatpush1.msra.mxu0 0.0
    %2343 = vmatprep.subr.mxu0 0.0
    %2344 = vmatpush1.msra.mxu0 0.0
    %2345 = vmatprep.subr.mxu0 0.0
    %2346 = vmatpush1.msra.mxu0 0.0
    %2347 = vmatprep.subr.mxu0 0.0
    %2348 = vmatpush1.msra.mxu0 0.0
    %2349 = vmatprep.subr.mxu0 0.0
    %2350 = vmatpush1.msra.mxu0 0.0
    %2351 = vmatprep.mubr.f32.mxu0 0.0
    %2352 = vmatmul.mubr.f32.gmra.mrb[0].mxu0 %v307
    %v2353 = vpop.f32.mrb[0].mxu0
    %v2354 = vadd.f32 0.0, %v2353
    %v2355 = vpop.f32.mrb[0].mxu0
    %2356 = vmatprep.mubr.f32.mxu0 0.0
    %2357 = vmatmul.mubr.f32.gmra.mrb[0].mxu0 %v310
    %v2358 = vpop.f32.mrb[0].mxu0
    %v2359 = vadd.f32 0.0, %v2358
    %v2360 = vpop.f32.mrb[0].mxu0
    %2361 = vdwg.mxu0
    %v2362 = vmax.f32 %v2279, 0.0
    %v2363 = vmax.f32 %v2284, 0.0
    %s2364 = scalar_lea.vmem [#allocation14], 112
    %2365 = vst.msk [vmem:[%s2364] sm:$0xff] %vm389, %v2362
    %2366 = vst.msk [vmem:[%s2364 + $0x8] sm:$0xff] %vm389, %v2363
    %v2367 = vmax.f32 %v2354, 0.0
    %v2368 = vmax.f32 %v2359, 0.0
    %2371 = vrot.lane.b32.xlu0 %v2367, 32
    %v2372 = vpop.permute.xlu0 %2371
    %2373 = vrot.lane.b32.xlu0 %v2368, 32
    %v2374 = vpop.permute.xlu0 %2373
    %2377 = vst.msk [vmem:[%s2364] sm:$0xff] %vm402, %v2372
    %2378 = vst.msk [vmem:[%s2364 + $0x8] sm:$0xff] %vm402, %v2374
    %s2379 = scalar_lea.vmem [#allocation2], 64
    %v2380 = vld [vmem:[%s2379] sm:$0xff]
    %v2381 = vld [vmem:[%s2379 + $0x8] sm:$0xff]
    %s2382 = sld [smem:[#allocation6]]
    %v2383 = vstv %s2382
    %v2384 = vmul.f32 %v2380, %v2383
    %v2385 = vmul.f32 %v2381, %v2383
    %s2386 = scalar_lea.vmem [#allocation2], 80
    %v2387 = vld [vmem:[%s2386] sm:$0xff]
    %v2388 = vld [vmem:[%s2386 + $0x8] sm:$0xff]
    %s2389 = sld [smem:[#allocation6 + $0x1]]
    %v2390 = vstv %s2389
    %v2391 = vmul.f32 %v2387, %v2390
    %v2392 = vmul.f32 %v2388, %v2390
    %v2393 = vadd.f32 %v2384, %v2391
    %v2394 = vadd.f32 %v2385, %v2392
    %s2395 = scalar_lea.vmem [#allocation2], 96
    %v2396 = vld [vmem:[%s2395] sm:$0xff]
    %v2397 = vld [vmem:[%s2395 + $0x8] sm:$0xff]
    %s2398 = sld [smem:[#allocation6 + $0x2]]
    %v2399 = vstv %s2398
    %v2400 = vmul.f32 %v2396, %v2399
    %v2401 = vmul.f32 %v2397, %v2399
    %v2402 = vadd.f32 %v2393, %v2400
    %v2403 = vadd.f32 %v2394, %v2401
    %s2404 = scalar_lea.vmem [#allocation2], 112
    %v2405 = vld [vmem:[%s2404] sm:$0xff]
    %v2406 = vld [vmem:[%s2404 + $0x8] sm:$0xff]
    %s2407 = sld [smem:[#allocation6 + $0x3]]
    %v2408 = vstv %s2407
    %v2409 = vmul.f32 %v2405, %v2408
    %v2410 = vmul.f32 %v2406, %v2408
    %v2411 = vadd.f32 %v2402, %v2409
    %v2412 = vadd.f32 %v2403, %v2410
    %s2413 = sld [smem:[#allocation7]]
    %v2414 = vstv %s2413
    %v2415 = vadd.f32 %v2411, %v2414
    %v2416 = vadd.f32 %v2412, %v2414
    %v2418 = vsel %vm143, %v2415, 0
    %v2421 = vsel %vm143, %v2416, 0
    %2423 = vmatprep.subr.mxu0 0.0
    %2424 = vmatpush1.msra.mxu0 %v104
    %2425 = vmatprep.subr.mxu0 0.0
    %2426 = vmatpush1.msra.mxu0 %v105
    %2427 = vmatprep.subr.mxu0 0.0
    %2428 = vmatpush1.msra.mxu0 0.0
    %2429 = vmatprep.subr.mxu0 0.0
    %2430 = vmatpush1.msra.mxu0 0.0
    %2431 = vmatprep.subr.mxu0 0.0
    %2432 = vmatpush1.msra.mxu0 0.0
    %2433 = vmatprep.subr.mxu0 0.0
    %2434 = vmatpush1.msra.mxu0 0.0
    %2435 = vmatprep.subr.mxu0 0.0
    %2436 = vmatpush1.msra.mxu0 0.0
    %2437 = vmatprep.subr.mxu0 0.0
    %2438 = vmatpush1.msra.mxu0 0.0
    %2439 = vmatprep.subr.mxu0 0.0
    %2440 = vmatpush1.msra.mxu0 0.0
    %2441 = vmatprep.subr.mxu0 0.0
    %2442 = vmatpush1.msra.mxu0 0.0
    %2443 = vmatprep.subr.mxu0 0.0
    %2444 = vmatpush1.msra.mxu0 0.0
    %2445 = vmatprep.subr.mxu0 0.0
    %2446 = vmatpush1.msra.mxu0 0.0
    %2447 = vmatprep.subr.mxu0 0.0
    %2448 = vmatpush1.msra.mxu0 0.0
    %2449 = vmatprep.subr.mxu0 0.0
    %2450 = vmatpush1.msra.mxu0 0.0
    %2451 = vmatprep.subr.mxu0 0.0
    %2452 = vmatpush1.msra.mxu0 0.0
    %2453 = vmatprep.subr.mxu0 0.0
    %2454 = vmatpush1.msra.mxu0 0.0
    %2455 = vmatprep.subr.mxu0 0.0
    %2456 = vmatpush1.msra.mxu0 0.0
    %2457 = vmatprep.subr.mxu0 0.0
    %2458 = vmatpush1.msra.mxu0 0.0
    %2459 = vmatprep.subr.mxu0 0.0
    %2460 = vmatpush1.msra.mxu0 0.0
    %2461 = vmatprep.subr.mxu0 0.0
    %2462 = vmatpush1.msra.mxu0 0.0
    %2463 = vmatprep.subr.mxu0 0.0
    %2464 = vmatpush1.msra.mxu0 0.0
    %2465 = vmatprep.subr.mxu0 0.0
    %2466 = vmatpush1.msra.mxu0 0.0
    %2467 = vmatprep.subr.mxu0 0.0
    %2468 = vmatpush1.msra.mxu0 0.0
    %2469 = vmatprep.subr.mxu0 0.0
    %2470 = vmatpush1.msra.mxu0 0.0
    %2471 = vmatprep.subr.mxu0 0.0
    %2472 = vmatpush1.msra.mxu0 0.0
    %2473 = vmatprep.subr.mxu0 0.0
    %2474 = vmatpush1.msra.mxu0 0.0
    %2475 = vmatprep.subr.mxu0 0.0
    %2476 = vmatpush1.msra.mxu0 0.0
    %2477 = vmatprep.subr.mxu0 0.0
    %2478 = vmatpush1.msra.mxu0 0.0
    %2479 = vmatprep.subr.mxu0 0.0
    %2480 = vmatpush1.msra.mxu0 0.0
    %2481 = vmatprep.subr.mxu0 0.0
    %2482 = vmatpush1.msra.mxu0 0.0
    %2483 = vmatprep.subr.mxu0 0.0
    %2484 = vmatpush1.msra.mxu0 0.0
    %2485 = vmatprep.subr.mxu0 0.0
    %2486 = vmatpush1.msra.mxu0 0.0
    %2487 = vmatprep.mubr.f32.mxu0 0.0
    %2488 = vmatmul.mubr.f32.gmra.mrb[0].mxu0 %v2418
    %v2489 = vpop.f32.mrb[0].mxu0
    %v2490 = vadd.f32 0.0, %v2489
    %v2491 = vpop.f32.mrb[0].mxu0
    %2492 = vmatprep.mubr.f32.mxu0 0.0
    %2493 = vmatmul.mubr.f32.gmra.mrb[0].mxu0 %v2421
    %v2494 = vpop.f32.mrb[0].mxu0
    %v2495 = vadd.f32 0.0, %v2494
    %v2496 = vpop.f32.mrb[0].mxu0
    %2497 = vdwg.mxu0
    %2498 = vmatprep.subr.mxu0 0.0
    %2499 = vmatpush1.msra.mxu0 %v2490
    %2500 = vmatprep.subr.mxu0 0.0
    %2501 = vmatpush1.msra.mxu0 %v2495
    %2502 = vmatprep.subr.mxu0 0.0
    %2503 = vmatpush1.msra.mxu0 0.0
    %2504 = vmatprep.subr.mxu0 0.0
    %2505 = vmatpush1.msra.mxu0 0.0
    %2506 = vmatprep.subr.mxu0 0.0
    %2507 = vmatpush1.msra.mxu0 0.0
    %2508 = vmatprep.subr.mxu0 0.0
    %2509 = vmatpush1.msra.mxu0 0.0
    %2510 = vmatprep.subr.mxu0 0.0
    %2511 = vmatpush1.msra.mxu0 0.0
    %2512 = vmatprep.subr.mxu0 0.0
    %2513 = vmatpush1.msra.mxu0 0.0
    %2514 = vmatprep.subr.mxu0 0.0
    %2515 = vmatpush1.msra.mxu0 0.0
    %2516 = vmatprep.subr.mxu0 0.0
    %2517 = vmatpush1.msra.mxu0 0.0
    %2518 = vmatprep.subr.mxu0 0.0
    %2519 = vmatpush1.msra.mxu0 0.0
    %2520 = vmatprep.subr.mxu0 0.0
    %2521 = vmatpush1.msra.mxu0 0.0
    %2522 = vmatprep.subr.mxu0 0.0
    %2523 = vmatpush1.msra.mxu0 0.0
    %2524 = vmatprep.subr.mxu0 0.0
    %2525 = vmatpush1.msra.mxu0 0.0
    %2526 = vmatprep.subr.mxu0 0.0
    %2527 = vmatpush1.msra.mxu0 0.0
    %2528 = vmatprep.subr.mxu0 0.0
    %2529 = vmatpush1.msra.mxu0 0.0
    %2530 = vmatprep.subr.mxu0 0.0
    %2531 = vmatpush1.msra.mxu0 0.0
    %2532 = vmatprep.subr.mxu0 0.0
    %2533 = vmatpush1.msra.mxu0 0.0
    %2534 = vmatprep.subr.mxu0 0.0
    %2535 = vmatpush1.msra.mxu0 0.0
    %2536 = vmatprep.subr.mxu0 0.0
    %2537 = vmatpush1.msra.mxu0 0.0
    %2538 = vmatprep.subr.mxu0 0.0
    %2539 = vmatpush1.msra.mxu0 0.0
    %2540 = vmatprep.subr.mxu0 0.0
    %2541 = vmatpush1.msra.mxu0 0.0
    %2542 = vmatprep.subr.mxu0 0.0
    %2543 = vmatpush1.msra.mxu0 0.0
    %2544 = vmatprep.subr.mxu0 0.0
    %2545 = vmatpush1.msra.mxu0 0.0
    %2546 = vmatprep.subr.mxu0 0.0
    %2547 = vmatpush1.msra.mxu0 0.0
    %2548 = vmatprep.subr.mxu0 0.0
    %2549 = vmatpush1.msra.mxu0 0.0
    %2550 = vmatprep.subr.mxu0 0.0
    %2551 = vmatpush1.msra.mxu0 0.0
    %2552 = vmatprep.subr.mxu0 0.0
    %2553 = vmatpush1.msra.mxu0 0.0
    %2554 = vmatprep.subr.mxu0 0.0
    %2555 = vmatpush1.msra.mxu0 0.0
    %2556 = vmatprep.subr.mxu0 0.0
    %2557 = vmatpush1.msra.mxu0 0.0
    %2558 = vmatprep.subr.mxu0 0.0
    %2559 = vmatpush1.msra.mxu0 0.0
    %2560 = vmatprep.subr.mxu0 0.0
    %2561 = vmatpush1.msra.mxu0 0.0
    %2562 = vmatprep.mubr.f32.mxu0 0.0
    %2563 = vmatmul.mubr.f32.gmra.mrb[0].mxu0 %v226
    %v2564 = vpop.f32.mrb[0].mxu0
    %v2565 = vadd.f32 0.0, %v2564
    %v2566 = vpop.f32.mrb[0].mxu0
    %2567 = vmatprep.mubr.f32.mxu0 0.0
    %2568 = vmatmul.mubr.f32.gmra.mrb[0].mxu0 %v229
    %v2569 = vpop.f32.mrb[0].mxu0
    %v2570 = vadd.f32 0.0, %v2569
    %v2571 = vpop.f32.mrb[0].mxu0
    %2572 = vdwg.mxu0
    %2573 = vmatprep.subr.mxu0 0.0
    %2574 = vmatpush1.msra.mxu0 %v2490
    %2575 = vmatprep.subr.mxu0 0.0
    %2576 = vmatpush1.msra.mxu0 %v2495
    %2577 = vmatprep.subr.mxu0 0.0
    %2578 = vmatpush1.msra.mxu0 0.0
    %2579 = vmatprep.subr.mxu0 0.0
    %2580 = vmatpush1.msra.mxu0 0.0
    %2581 = vmatprep.subr.mxu0 0.0
    %2582 = vmatpush1.msra.mxu0 0.0
    %2583 = vmatprep.subr.mxu0 0.0
    %2584 = vmatpush1.msra.mxu0 0.0
    %2585 = vmatprep.subr.mxu0 0.0
    %2586 = vmatpush1.msra.mxu0 0.0
    %2587 = vmatprep.subr.mxu0 0.0
    %2588 = vmatpush1.msra.mxu0 0.0
    %2589 = vmatprep.subr.mxu0 0.0
    %2590 = vmatpush1.msra.mxu0 0.0
    %2591 = vmatprep.subr.mxu0 0.0
    %2592 = vmatpush1.msra.mxu0 0.0
    %2593 = vmatprep.subr.mxu0 0.0
    %2594 = vmatpush1.msra.mxu0 0.0
    %2595 = vmatprep.subr.mxu0 0.0
    %2596 = vmatpush1.msra.mxu0 0.0
    %2597 = vmatprep.subr.mxu0 0.0
    %2598 = vmatpush1.msra.mxu0 0.0
    %2599 = vmatprep.subr.mxu0 0.0
    %2600 = vmatpush1.msra.mxu0 0.0
    %2601 = vmatprep.subr.mxu0 0.0
    %2602 = vmatpush1.msra.mxu0 0.0
    %2603 = vmatprep.subr.mxu0 0.0
    %2604 = vmatpush1.msra.mxu0 0.0
    %2605 = vmatprep.subr.mxu0 0.0
    %2606 = vmatpush1.msra.mxu0 0.0
    %2607 = vmatprep.subr.mxu0 0.0
    %2608 = vmatpush1.msra.mxu0 0.0
    %2609 = vmatprep.subr.mxu0 0.0
    %2610 = vmatpush1.msra.mxu0 0.0
    %2611 = vmatprep.subr.mxu0 0.0
    %2612 = vmatpush1.msra.mxu0 0.0
    %2613 = vmatprep.subr.mxu0 0.0
    %2614 = vmatpush1.msra.mxu0 0.0
    %2615 = vmatprep.subr.mxu0 0.0
    %2616 = vmatpush1.msra.mxu0 0.0
    %2617 = vmatprep.subr.mxu0 0.0
    %2618 = vmatpush1.msra.mxu0 0.0
    %2619 = vmatprep.subr.mxu0 0.0
    %2620 = vmatpush1.msra.mxu0 0.0
    %2621 = vmatprep.subr.mxu0 0.0
    %2622 = vmatpush1.msra.mxu0 0.0
    %2623 = vmatprep.subr.mxu0 0.0
    %2624 = vmatpush1.msra.mxu0 0.0
    %2625 = vmatprep.subr.mxu0 0.0
    %2626 = vmatpush1.msra.mxu0 0.0
    %2627 = vmatprep.subr.mxu0 0.0
    %2628 = vmatpush1.msra.mxu0 0.0
    %2629 = vmatprep.subr.mxu0 0.0
    %2630 = vmatpush1.msra.mxu0 0.0
    %2631 = vmatprep.subr.mxu0 0.0
    %2632 = vmatpush1.msra.mxu0 0.0
    %2633 = vmatprep.subr.mxu0 0.0
    %2634 = vmatpush1.msra.mxu0 0.0
    %2635 = vmatprep.subr.mxu0 0.0
    %2636 = vmatpush1.msra.mxu0 0.0
    %2637 = vmatprep.mubr.f32.mxu0 0.0
    %2638 = vmatmul.mubr.f32.gmra.mrb[0].mxu0 %v307
    %v2639 = vpop.f32.mrb[0].mxu0
    %v2640 = vadd.f32 0.0, %v2639
    %v2641 = vpop.f32.mrb[0].mxu0
    %2642 = vmatprep.mubr.f32.mxu0 0.0
    %2643 = vmatmul.mubr.f32.gmra.mrb[0].mxu0 %v310
    %v2644 = vpop.f32.mrb[0].mxu0
    %v2645 = vadd.f32 0.0, %v2644
    %v2646 = vpop.f32.mrb[0].mxu0
    %2647 = vdwg.mxu0
    %v2648 = vmax.f32 %v2565, 0.0
    %v2649 = vmax.f32 %v2570, 0.0
    %s2650 = scalar_lea.vmem [#allocation14], 128
    %2651 = vst.msk [vmem:[%s2650] sm:$0xff] %vm389, %v2648
    %2652 = vst.msk [vmem:[%s2650 + $0x8] sm:$0xff] %vm389, %v2649
    %v2653 = vmax.f32 %v2640, 0.0
    %v2654 = vmax.f32 %v2645, 0.0
    %2657 = vrot.lane.b32.xlu0 %v2653, 32
    %v2658 = vpop.permute.xlu0 %2657
    %2659 = vrot.lane.b32.xlu0 %v2654, 32
    %v2660 = vpop.permute.xlu0 %2659
    %2663 = vst.msk [vmem:[%s2650] sm:$0xff] %vm402, %v2658
    %2664 = vst.msk [vmem:[%s2650 + $0x8] sm:$0xff] %vm402, %v2660
    %v2665 = vld [vmem:[%s2379] sm:$0xff]
    %v2666 = vld [vmem:[%s2379 + $0x8] sm:$0xff]
    %s2667 = sld [smem:[#allocation6 + $0x80]]
    %v2668 = vstv %s2667
    %v2669 = vmul.f32 %v2665, %v2668
    %v2670 = vmul.f32 %v2666, %v2668
    %v2671 = vld [vmem:[%s2386] sm:$0xff]
    %v2672 = vld [vmem:[%s2386 + $0x8] sm:$0xff]
    %s2673 = sld [smem:[#allocation6 + $0x81]]
    %v2674 = vstv %s2673
    %v2675 = vmul.f32 %v2671, %v2674
    %v2676 = vmul.f32 %v2672, %v2674
    %v2677 = vadd.f32 %v2669, %v2675
    %v2678 = vadd.f32 %v2670, %v2676
    %v2679 = vld [vmem:[%s2395] sm:$0xff]
    %v2680 = vld [vmem:[%s2395 + $0x8] sm:$0xff]
    %s2681 = sld [smem:[#allocation6 + $0x82]]
    %v2682 = vstv %s2681
    %v2683 = vmul.f32 %v2679, %v2682
    %v2684 = vmul.f32 %v2680, %v2682
    %v2685 = vadd.f32 %v2677, %v2683
    %v2686 = vadd.f32 %v2678, %v2684
    %v2687 = vld [vmem:[%s2404] sm:$0xff]
    %v2688 = vld [vmem:[%s2404 + $0x8] sm:$0xff]
    %s2689 = sld [smem:[#allocation6 + $0x83]]
    %v2690 = vstv %s2689
    %v2691 = vmul.f32 %v2687, %v2690
    %v2692 = vmul.f32 %v2688, %v2690
    %v2693 = vadd.f32 %v2685, %v2691
    %v2694 = vadd.f32 %v2686, %v2692
    %s2695 = sld [smem:[#allocation7 + $0x1]]
    %v2696 = vstv %s2695
    %v2697 = vadd.f32 %v2693, %v2696
    %v2698 = vadd.f32 %v2694, %v2696
    %v2700 = vsel %vm143, %v2697, 0
    %v2703 = vsel %vm143, %v2698, 0
    %2705 = vmatprep.subr.mxu0 0.0
    %2706 = vmatpush1.msra.mxu0 %v104
    %2707 = vmatprep.subr.mxu0 0.0
    %2708 = vmatpush1.msra.mxu0 %v105
    %2709 = vmatprep.subr.mxu0 0.0
    %2710 = vmatpush1.msra.mxu0 0.0
    %2711 = vmatprep.subr.mxu0 0.0
    %2712 = vmatpush1.msra.mxu0 0.0
    %2713 = vmatprep.subr.mxu0 0.0
    %2714 = vmatpush1.msra.mxu0 0.0
    %2715 = vmatprep.subr.mxu0 0.0
    %2716 = vmatpush1.msra.mxu0 0.0
    %2717 = vmatprep.subr.mxu0 0.0
    %2718 = vmatpush1.msra.mxu0 0.0
    %2719 = vmatprep.subr.mxu0 0.0
    %2720 = vmatpush1.msra.mxu0 0.0
    %2721 = vmatprep.subr.mxu0 0.0
    %2722 = vmatpush1.msra.mxu0 0.0
    %2723 = vmatprep.subr.mxu0 0.0
    %2724 = vmatpush1.msra.mxu0 0.0
    %2725 = vmatprep.subr.mxu0 0.0
    %2726 = vmatpush1.msra.mxu0 0.0
    %2727 = vmatprep.subr.mxu0 0.0
    %2728 = vmatpush1.msra.mxu0 0.0
    %2729 = vmatprep.subr.mxu0 0.0
    %2730 = vmatpush1.msra.mxu0 0.0
    %2731 = vmatprep.subr.mxu0 0.0
    %2732 = vmatpush1.msra.mxu0 0.0
    %2733 = vmatprep.subr.mxu0 0.0
    %2734 = vmatpush1.msra.mxu0 0.0
    %2735 = vmatprep.subr.mxu0 0.0
    %2736 = vmatpush1.msra.mxu0 0.0
    %2737 = vmatprep.subr.mxu0 0.0
    %2738 = vmatpush1.msra.mxu0 0.0
    %2739 = vmatprep.subr.mxu0 0.0
    %2740 = vmatpush1.msra.mxu0 0.0
    %2741 = vmatprep.subr.mxu0 0.0
    %2742 = vmatpush1.msra.mxu0 0.0
    %2743 = vmatprep.subr.mxu0 0.0
    %2744 = vmatpush1.msra.mxu0 0.0
    %2745 = vmatprep.subr.mxu0 0.0
    %2746 = vmatpush1.msra.mxu0 0.0
    %2747 = vmatprep.subr.mxu0 0.0
    %2748 = vmatpush1.msra.mxu0 0.0
    %2749 = vmatprep.subr.mxu0 0.0
    %2750 = vmatpush1.msra.mxu0 0.0
    %2751 = vmatprep.subr.mxu0 0.0
    %2752 = vmatpush1.msra.mxu0 0.0
    %2753 = vmatprep.subr.mxu0 0.0
    %2754 = vmatpush1.msra.mxu0 0.0
    %2755 = vmatprep.subr.mxu0 0.0
    %2756 = vmatpush1.msra.mxu0 0.0
    %2757 = vmatprep.subr.mxu0 0.0
    %2758 = vmatpush1.msra.mxu0 0.0
    %2759 = vmatprep.subr.mxu0 0.0
    %2760 = vmatpush1.msra.mxu0 0.0
    %2761 = vmatprep.subr.mxu0 0.0
    %2762 = vmatpush1.msra.mxu0 0.0
    %2763 = vmatprep.subr.mxu0 0.0
    %2764 = vmatpush1.msra.mxu0 0.0
    %2765 = vmatprep.subr.mxu0 0.0
    %2766 = vmatpush1.msra.mxu0 0.0
    %2767 = vmatprep.subr.mxu0 0.0
    %2768 = vmatpush1.msra.mxu0 0.0
    %2769 = vmatprep.mubr.f32.mxu0 0.0
    %2770 = vmatmul.mubr.f32.gmra.mrb[0].mxu0 %v2700
    %v2771 = vpop.f32.mrb[0].mxu0
    %v2772 = vadd.f32 0.0, %v2771
    %v2773 = vpop.f32.mrb[0].mxu0
    %2774 = vmatprep.mubr.f32.mxu0 0.0
    %2775 = vmatmul.mubr.f32.gmra.mrb[0].mxu0 %v2703
    %v2776 = vpop.f32.mrb[0].mxu0
    %v2777 = vadd.f32 0.0, %v2776
    %v2778 = vpop.f32.mrb[0].mxu0
    %2779 = vdwg.mxu0
    %2780 = vmatprep.subr.mxu0 0.0
    %2781 = vmatpush1.msra.mxu0 %v2772
    %2782 = vmatprep.subr.mxu0 0.0
    %2783 = vmatpush1.msra.mxu0 %v2777
    %2784 = vmatprep.subr.mxu0 0.0
    %2785 = vmatpush1.msra.mxu0 0.0
    %2786 = vmatprep.subr.mxu0 0.0
    %2787 = vmatpush1.msra.mxu0 0.0
    %2788 = vmatprep.subr.mxu0 0.0
    %2789 = vmatpush1.msra.mxu0 0.0
    %2790 = vmatprep.subr.mxu0 0.0
    %2791 = vmatpush1.msra.mxu0 0.0
    %2792 = vmatprep.subr.mxu0 0.0
    %2793 = vmatpush1.msra.mxu0 0.0
    %2794 = vmatprep.subr.mxu0 0.0
    %2795 = vmatpush1.msra.mxu0 0.0
    %2796 = vmatprep.subr.mxu0 0.0
    %2797 = vmatpush1.msra.mxu0 0.0
    %2798 = vmatprep.subr.mxu0 0.0
    %2799 = vmatpush1.msra.mxu0 0.0
    %2800 = vmatprep.subr.mxu0 0.0
    %2801 = vmatpush1.msra.mxu0 0.0
    %2802 = vmatprep.subr.mxu0 0.0
    %2803 = vmatpush1.msra.mxu0 0.0
    %2804 = vmatprep.subr.mxu0 0.0
    %2805 = vmatpush1.msra.mxu0 0.0
    %2806 = vmatprep.subr.mxu0 0.0
    %2807 = vmatpush1.msra.mxu0 0.0
    %2808 = vmatprep.subr.mxu0 0.0
    %2809 = vmatpush1.msra.mxu0 0.0
    %2810 = vmatprep.subr.mxu0 0.0
    %2811 = vmatpush1.msra.mxu0 0.0
    %2812 = vmatprep.subr.mxu0 0.0
    %2813 = vmatpush1.msra.mxu0 0.0
    %2814 = vmatprep.subr.mxu0 0.0
    %2815 = vmatpush1.msra.mxu0 0.0
    %2816 = vmatprep.subr.mxu0 0.0
    %2817 = vmatpush1.msra.mxu0 0.0
    %2818 = vmatprep.subr.mxu0 0.0
    %2819 = vmatpush1.msra.mxu0 0.0
    %2820 = vmatprep.subr.mxu0 0.0
    %2821 = vmatpush1.msra.mxu0 0.0
    %2822 = vmatprep.subr.mxu0 0.0
    %2823 = vmatpush1.msra.mxu0 0.0
    %2824 = vmatprep.subr.mxu0 0.0
    %2825 = vmatpush1.msra.mxu0 0.0
    %2826 = vmatprep.subr.mxu0 0.0
    %2827 = vmatpush1.msra.mxu0 0.0
    %2828 = vmatprep.subr.mxu0 0.0
    %2829 = vmatpush1.msra.mxu0 0.0
    %2830 = vmatprep.subr.mxu0 0.0
    %2831 = vmatpush1.msra.mxu0 0.0
    %2832 = vmatprep.subr.mxu0 0.0
    %2833 = vmatpush1.msra.mxu0 0.0
    %2834 = vmatprep.subr.mxu0 0.0
    %2835 = vmatpush1.msra.mxu0 0.0
    %2836 = vmatprep.subr.mxu0 0.0
    %2837 = vmatpush1.msra.mxu0 0.0
    %2838 = vmatprep.subr.mxu0 0.0
    %2839 = vmatpush1.msra.mxu0 0.0
    %2840 = vmatprep.subr.mxu0 0.0
    %2841 = vmatpush1.msra.mxu0 0.0
    %2842 = vmatprep.subr.mxu0 0.0
    %2843 = vmatpush1.msra.mxu0 0.0
    %2844 = vmatprep.mubr.f32.mxu0 0.0
    %2845 = vmatmul.mubr.f32.gmra.mrb[0].mxu0 %v226
    %v2846 = vpop.f32.mrb[0].mxu0
    %v2847 = vadd.f32 0.0, %v2846
    %v2848 = vpop.f32.mrb[0].mxu0
    %2849 = vmatprep.mubr.f32.mxu0 0.0
    %2850 = vmatmul.mubr.f32.gmra.mrb[0].mxu0 %v229
    %v2851 = vpop.f32.mrb[0].mxu0
    %v2852 = vadd.f32 0.0, %v2851
    %v2853 = vpop.f32.mrb[0].mxu0
    %2854 = vdwg.mxu0
    %2855 = vmatprep.subr.mxu0 0.0
    %2856 = vmatpush1.msra.mxu0 %v2772
    %2857 = vmatprep.subr.mxu0 0.0
    %2858 = vmatpush1.msra.mxu0 %v2777
    %2859 = vmatprep.subr.mxu0 0.0
    %2860 = vmatpush1.msra.mxu0 0.0
    %2861 = vmatprep.subr.mxu0 0.0
    %2862 = vmatpush1.msra.mxu0 0.0
    %2863 = vmatprep.subr.mxu0 0.0
    %2864 = vmatpush1.msra.mxu0 0.0
    %2865 = vmatprep.subr.mxu0 0.0
    %2866 = vmatpush1.msra.mxu0 0.0
    %2867 = vmatprep.subr.mxu0 0.0
    %2868 = vmatpush1.msra.mxu0 0.0
    %2869 = vmatprep.subr.mxu0 0.0
    %2870 = vmatpush1.msra.mxu0 0.0
    %2871 = vmatprep.subr.mxu0 0.0
    %2872 = vmatpush1.msra.mxu0 0.0
    %2873 = vmatprep.subr.mxu0 0.0
    %2874 = vmatpush1.msra.mxu0 0.0
    %2875 = vmatprep.subr.mxu0 0.0
    %2876 = vmatpush1.msra.mxu0 0.0
    %2877 = vmatprep.subr.mxu0 0.0
    %2878 = vmatpush1.msra.mxu0 0.0
    %2879 = vmatprep.subr.mxu0 0.0
    %2880 = vmatpush1.msra.mxu0 0.0
    %2881 = vmatprep.subr.mxu0 0.0
    %2882 = vmatpush1.msra.mxu0 0.0
    %2883 = vmatprep.subr.mxu0 0.0
    %2884 = vmatpush1.msra.mxu0 0.0
    %2885 = vmatprep.subr.mxu0 0.0
    %2886 = vmatpush1.msra.mxu0 0.0
    %2887 = vmatprep.subr.mxu0 0.0
    %2888 = vmatpush1.msra.mxu0 0.0
    %2889 = vmatprep.subr.mxu0 0.0
    %2890 = vmatpush1.msra.mxu0 0.0
    %2891 = vmatprep.subr.mxu0 0.0
    %2892 = vmatpush1.msra.mxu0 0.0
    %2893 = vmatprep.subr.mxu0 0.0
    %2894 = vmatpush1.msra.mxu0 0.0
    %2895 = vmatprep.subr.mxu0 0.0
    %2896 = vmatpush1.msra.mxu0 0.0
    %2897 = vmatprep.subr.mxu0 0.0
    %2898 = vmatpush1.msra.mxu0 0.0
    %2899 = vmatprep.subr.mxu0 0.0
    %2900 = vmatpush1.msra.mxu0 0.0
    %2901 = vmatprep.subr.mxu0 0.0
    %2902 = vmatpush1.msra.mxu0 0.0
    %2903 = vmatprep.subr.mxu0 0.0
    %2904 = vmatpush1.msra.mxu0 0.0
    %2905 = vmatprep.subr.mxu0 0.0
    %2906 = vmatpush1.msra.mxu0 0.0
    %2907 = vmatprep.subr.mxu0 0.0
    %2908 = vmatpush1.msra.mxu0 0.0
    %2909 = vmatprep.subr.mxu0 0.0
    %2910 = vmatpush1.msra.mxu0 0.0
    %2911 = vmatprep.subr.mxu0 0.0
    %2912 = vmatpush1.msra.mxu0 0.0
    %2913 = vmatprep.subr.mxu0 0.0
    %2914 = vmatpush1.msra.mxu0 0.0
    %2915 = vmatprep.subr.mxu0 0.0
    %2916 = vmatpush1.msra.mxu0 0.0
    %2917 = vmatprep.subr.mxu0 0.0
    %2918 = vmatpush1.msra.mxu0 0.0
    %2919 = vmatprep.mubr.f32.mxu0 0.0
    %2920 = vmatmul.mubr.f32.gmra.mrb[0].mxu0 %v307
    %v2921 = vpop.f32.mrb[0].mxu0
    %v2922 = vadd.f32 0.0, %v2921
    %v2923 = vpop.f32.mrb[0].mxu0
    %2924 = vmatprep.mubr.f32.mxu0 0.0
    %2925 = vmatmul.mubr.f32.gmra.mrb[0].mxu0 %v310
    %v2926 = vpop.f32.mrb[0].mxu0
    %v2927 = vadd.f32 0.0, %v2926
    %v2928 = vpop.f32.mrb[0].mxu0
    %2929 = vdwg.mxu0
    %v2930 = vmax.f32 %v2847, 0.0
    %v2931 = vmax.f32 %v2852, 0.0
    %s2932 = scalar_lea.vmem [#allocation14], 144
    %2933 = vst.msk [vmem:[%s2932] sm:$0xff] %vm389, %v2930
    %2934 = vst.msk [vmem:[%s2932 + $0x8] sm:$0xff] %vm389, %v2931
    %v2935 = vmax.f32 %v2922, 0.0
    %v2936 = vmax.f32 %v2927, 0.0
    %2939 = vrot.lane.b32.xlu0 %v2935, 32
    %v2940 = vpop.permute.xlu0 %2939
    %2941 = vrot.lane.b32.xlu0 %v2936, 32
    %v2942 = vpop.permute.xlu0 %2941
    %2945 = vst.msk [vmem:[%s2932] sm:$0xff] %vm402, %v2940
    %2946 = vst.msk [vmem:[%s2932 + $0x8] sm:$0xff] %vm402, %v2942
    %v2947 = vld [vmem:[%s2379] sm:$0xff]
    %v2948 = vld [vmem:[%s2379 + $0x8] sm:$0xff]
    %s2949 = sld [smem:[#allocation6 + $0x100]]
    %v2950 = vstv %s2949
    %v2951 = vmul.f32 %v2947, %v2950
    %v2952 = vmul.f32 %v2948, %v2950
    %v2953 = vld [vmem:[%s2386] sm:$0xff]
    %v2954 = vld [vmem:[%s2386 + $0x8] sm:$0xff]
    %s2955 = sld [smem:[#allocation6 + $0x101]]
    %v2956 = vstv %s2955
    %v2957 = vmul.f32 %v2953, %v2956
    %v2958 = vmul.f32 %v2954, %v2956
    %v2959 = vadd.f32 %v2951, %v2957
    %v2960 = vadd.f32 %v2952, %v2958
    %v2961 = vld [vmem:[%s2395] sm:$0xff]
    %v2962 = vld [vmem:[%s2395 + $0x8] sm:$0xff]
    %s2963 = sld [smem:[#allocation6 + $0x102]]
    %v2964 = vstv %s2963
    %v2965 = vmul.f32 %v2961, %v2964
    %v2966 = vmul.f32 %v2962, %v2964
    %v2967 = vadd.f32 %v2959, %v2965
    %v2968 = vadd.f32 %v2960, %v2966
    %v2969 = vld [vmem:[%s2404] sm:$0xff]
    %v2970 = vld [vmem:[%s2404 + $0x8] sm:$0xff]
    %s2971 = sld [smem:[#allocation6 + $0x103]]
    %v2972 = vstv %s2971
    %v2973 = vmul.f32 %v2969, %v2972
    %v2974 = vmul.f32 %v2970, %v2972
    %v2975 = vadd.f32 %v2967, %v2973
    %v2976 = vadd.f32 %v2968, %v2974
    %s2977 = sld [smem:[#allocation7 + $0x2]]
    %v2978 = vstv %s2977
    %v2979 = vadd.f32 %v2975, %v2978
    %v2980 = vadd.f32 %v2976, %v2978
    %v2982 = vsel %vm143, %v2979, 0
    %v2985 = vsel %vm143, %v2980, 0
    %2987 = vmatprep.subr.mxu0 0.0
    %2988 = vmatpush1.msra.mxu0 %v104
    %2989 = vmatprep.subr.mxu0 0.0
    %2990 = vmatpush1.msra.mxu0 %v105
    %2991 = vmatprep.subr.mxu0 0.0
    %2992 = vmatpush1.msra.mxu0 0.0
    %2993 = vmatprep.subr.mxu0 0.0
    %2994 = vmatpush1.msra.mxu0 0.0
    %2995 = vmatprep.subr.mxu0 0.0
    %2996 = vmatpush1.msra.mxu0 0.0
    %2997 = vmatprep.subr.mxu0 0.0
    %2998 = vmatpush1.msra.mxu0 0.0
    %2999 = vmatprep.subr.mxu0 0.0
    %3000 = vmatpush1.msra.mxu0 0.0
    %3001 = vmatprep.subr.mxu0 0.0
    %3002 = vmatpush1.msra.mxu0 0.0
    %3003 = vmatprep.subr.mxu0 0.0
    %3004 = vmatpush1.msra.mxu0 0.0
    %3005 = vmatprep.subr.mxu0 0.0
    %3006 = vmatpush1.msra.mxu0 0.0
    %3007 = vmatprep.subr.mxu0 0.0
    %3008 = vmatpush1.msra.mxu0 0.0
    %3009 = vmatprep.subr.mxu0 0.0
    %3010 = vmatpush1.msra.mxu0 0.0
    %3011 = vmatprep.subr.mxu0 0.0
    %3012 = vmatpush1.msra.mxu0 0.0
    %3013 = vmatprep.subr.mxu0 0.0
    %3014 = vmatpush1.msra.mxu0 0.0
    %3015 = vmatprep.subr.mxu0 0.0
    %3016 = vmatpush1.msra.mxu0 0.0
    %3017 = vmatprep.subr.mxu0 0.0
    %3018 = vmatpush1.msra.mxu0 0.0
    %3019 = vmatprep.subr.mxu0 0.0
    %3020 = vmatpush1.msra.mxu0 0.0
    %3021 = vmatprep.subr.mxu0 0.0
    %3022 = vmatpush1.msra.mxu0 0.0
    %3023 = vmatprep.subr.mxu0 0.0
    %3024 = vmatpush1.msra.mxu0 0.0
    %3025 = vmatprep.subr.mxu0 0.0
    %3026 = vmatpush1.msra.mxu0 0.0
    %3027 = vmatprep.subr.mxu0 0.0
    %3028 = vmatpush1.msra.mxu0 0.0
    %3029 = vmatprep.subr.mxu0 0.0
    %3030 = vmatpush1.msra.mxu0 0.0
    %3031 = vmatprep.subr.mxu0 0.0
    %3032 = vmatpush1.msra.mxu0 0.0
    %3033 = vmatprep.subr.mxu0 0.0
    %3034 = vmatpush1.msra.mxu0 0.0
    %3035 = vmatprep.subr.mxu0 0.0
    %3036 = vmatpush1.msra.mxu0 0.0
    %3037 = vmatprep.subr.mxu0 0.0
    %3038 = vmatpush1.msra.mxu0 0.0
    %3039 = vmatprep.subr.mxu0 0.0
    %3040 = vmatpush1.msra.mxu0 0.0
    %3041 = vmatprep.subr.mxu0 0.0
    %3042 = vmatpush1.msra.mxu0 0.0
    %3043 = vmatprep.subr.mxu0 0.0
    %3044 = vmatpush1.msra.mxu0 0.0
    %3045 = vmatprep.subr.mxu0 0.0
    %3046 = vmatpush1.msra.mxu0 0.0
    %3047 = vmatprep.subr.mxu0 0.0
    %3048 = vmatpush1.msra.mxu0 0.0
    %3049 = vmatprep.subr.mxu0 0.0
    %3050 = vmatpush1.msra.mxu0 0.0
    %3051 = vmatprep.mubr.f32.mxu0 0.0
    %3052 = vmatmul.mubr.f32.gmra.mrb[0].mxu0 %v2982
    %v3053 = vpop.f32.mrb[0].mxu0
    %v3054 = vadd.f32 0.0, %v3053
    %v3055 = vpop.f32.mrb[0].mxu0
    %3056 = vmatprep.mubr.f32.mxu0 0.0
    %3057 = vmatmul.mubr.f32.gmra.mrb[0].mxu0 %v2985
    %v3058 = vpop.f32.mrb[0].mxu0
    %v3059 = vadd.f32 0.0, %v3058
    %v3060 = vpop.f32.mrb[0].mxu0
    %3061 = vdwg.mxu0
    %3062 = vmatprep.subr.mxu0 0.0
    %3063 = vmatpush1.msra.mxu0 %v3054
    %3064 = vmatprep.subr.mxu0 0.0
    %3065 = vmatpush1.msra.mxu0 %v3059
    %3066 = vmatprep.subr.mxu0 0.0
    %3067 = vmatpush1.msra.mxu0 0.0
    %3068 = vmatprep.subr.mxu0 0.0
    %3069 = vmatpush1.msra.mxu0 0.0
    %3070 = vmatprep.subr.mxu0 0.0
    %3071 = vmatpush1.msra.mxu0 0.0
    %3072 = vmatprep.subr.mxu0 0.0
    %3073 = vmatpush1.msra.mxu0 0.0
    %3074 = vmatprep.subr.mxu0 0.0
    %3075 = vmatpush1.msra.mxu0 0.0
    %3076 = vmatprep.subr.mxu0 0.0
    %3077 = vmatpush1.msra.mxu0 0.0
    %3078 = vmatprep.subr.mxu0 0.0
    %3079 = vmatpush1.msra.mxu0 0.0
    %3080 = vmatprep.subr.mxu0 0.0
    %3081 = vmatpush1.msra.mxu0 0.0
    %3082 = vmatprep.subr.mxu0 0.0
    %3083 = vmatpush1.msra.mxu0 0.0
    %3084 = vmatprep.subr.mxu0 0.0
    %3085 = vmatpush1.msra.mxu0 0.0
    %3086 = vmatprep.subr.mxu0 0.0
    %3087 = vmatpush1.msra.mxu0 0.0
    %3088 = vmatprep.subr.mxu0 0.0
    %3089 = vmatpush1.msra.mxu0 0.0
    %3090 = vmatprep.subr.mxu0 0.0
    %3091 = vmatpush1.msra.mxu0 0.0
    %3092 = vmatprep.subr.mxu0 0.0
    %3093 = vmatpush1.msra.mxu0 0.0
    %3094 = vmatprep.subr.mxu0 0.0
    %3095 = vmatpush1.msra.mxu0 0.0
    %3096 = vmatprep.subr.mxu0 0.0
    %3097 = vmatpush1.msra.mxu0 0.0
    %3098 = vmatprep.subr.mxu0 0.0
    %3099 = vmatpush1.msra.mxu0 0.0
    %3100 = vmatprep.subr.mxu0 0.0
    %3101 = vmatpush1.msra.mxu0 0.0
    %3102 = vmatprep.subr.mxu0 0.0
    %3103 = vmatpush1.msra.mxu0 0.0
    %3104 = vmatprep.subr.mxu0 0.0
    %3105 = vmatpush1.msra.mxu0 0.0
    %3106 = vmatprep.subr.mxu0 0.0
    %3107 = vmatpush1.msra.mxu0 0.0
    %3108 = vmatprep.subr.mxu0 0.0
    %3109 = vmatpush1.msra.mxu0 0.0
    %3110 = vmatprep.subr.mxu0 0.0
    %3111 = vmatpush1.msra.mxu0 0.0
    %3112 = vmatprep.subr.mxu0 0.0
    %3113 = vmatpush1.msra.mxu0 0.0
    %3114 = vmatprep.subr.mxu0 0.0
    %3115 = vmatpush1.msra.mxu0 0.0
    %3116 = vmatprep.subr.mxu0 0.0
    %3117 = vmatpush1.msra.mxu0 0.0
    %3118 = vmatprep.subr.mxu0 0.0
    %3119 = vmatpush1.msra.mxu0 0.0
    %3120 = vmatprep.subr.mxu0 0.0
    %3121 = vmatpush1.msra.mxu0 0.0
    %3122 = vmatprep.subr.mxu0 0.0
    %3123 = vmatpush1.msra.mxu0 0.0
    %3124 = vmatprep.subr.mxu0 0.0
    %3125 = vmatpush1.msra.mxu0 0.0
    %3126 = vmatprep.mubr.f32.mxu0 0.0
    %3127 = vmatmul.mubr.f32.gmra.mrb[0].mxu0 %v226
    %v3128 = vpop.f32.mrb[0].mxu0
    %v3129 = vadd.f32 0.0, %v3128
    %v3130 = vpop.f32.mrb[0].mxu0
    %3131 = vmatprep.mubr.f32.mxu0 0.0
    %3132 = vmatmul.mubr.f32.gmra.mrb[0].mxu0 %v229
    %v3133 = vpop.f32.mrb[0].mxu0
    %v3134 = vadd.f32 0.0, %v3133
    %v3135 = vpop.f32.mrb[0].mxu0
    %3136 = vdwg.mxu0
    %3137 = vmatprep.subr.mxu0 0.0
    %3138 = vmatpush1.msra.mxu0 %v3054
    %3139 = vmatprep.subr.mxu0 0.0
    %3140 = vmatpush1.msra.mxu0 %v3059
    %3141 = vmatprep.subr.mxu0 0.0
    %3142 = vmatpush1.msra.mxu0 0.0
    %3143 = vmatprep.subr.mxu0 0.0
    %3144 = vmatpush1.msra.mxu0 0.0
    %3145 = vmatprep.subr.mxu0 0.0
    %3146 = vmatpush1.msra.mxu0 0.0
    %3147 = vmatprep.subr.mxu0 0.0
    %3148 = vmatpush1.msra.mxu0 0.0
    %3149 = vmatprep.subr.mxu0 0.0
    %3150 = vmatpush1.msra.mxu0 0.0
    %3151 = vmatprep.subr.mxu0 0.0
    %3152 = vmatpush1.msra.mxu0 0.0
    %3153 = vmatprep.subr.mxu0 0.0
    %3154 = vmatpush1.msra.mxu0 0.0
    %3155 = vmatprep.subr.mxu0 0.0
    %3156 = vmatpush1.msra.mxu0 0.0
    %3157 = vmatprep.subr.mxu0 0.0
    %3158 = vmatpush1.msra.mxu0 0.0
    %3159 = vmatprep.subr.mxu0 0.0
    %3160 = vmatpush1.msra.mxu0 0.0
    %3161 = vmatprep.subr.mxu0 0.0
    %3162 = vmatpush1.msra.mxu0 0.0
    %3163 = vmatprep.subr.mxu0 0.0
    %3164 = vmatpush1.msra.mxu0 0.0
    %3165 = vmatprep.subr.mxu0 0.0
    %3166 = vmatpush1.msra.mxu0 0.0
    %3167 = vmatprep.subr.mxu0 0.0
    %3168 = vmatpush1.msra.mxu0 0.0
    %3169 = vmatprep.subr.mxu0 0.0
    %3170 = vmatpush1.msra.mxu0 0.0
    %3171 = vmatprep.subr.mxu0 0.0
    %3172 = vmatpush1.msra.mxu0 0.0
    %3173 = vmatprep.subr.mxu0 0.0
    %3174 = vmatpush1.msra.mxu0 0.0
    %3175 = vmatprep.subr.mxu0 0.0
    %3176 = vmatpush1.msra.mxu0 0.0
    %3177 = vmatprep.subr.mxu0 0.0
    %3178 = vmatpush1.msra.mxu0 0.0
    %3179 = vmatprep.subr.mxu0 0.0
    %3180 = vmatpush1.msra.mxu0 0.0
    %3181 = vmatprep.subr.mxu0 0.0
    %3182 = vmatpush1.msra.mxu0 0.0
    %3183 = vmatprep.subr.mxu0 0.0
    %3184 = vmatpush1.msra.mxu0 0.0
    %3185 = vmatprep.subr.mxu0 0.0
    %3186 = vmatpush1.msra.mxu0 0.0
    %3187 = vmatprep.subr.mxu0 0.0
    %3188 = vmatpush1.msra.mxu0 0.0
    %3189 = vmatprep.subr.mxu0 0.0
    %3190 = vmatpush1.msra.mxu0 0.0
    %3191 = vmatprep.subr.mxu0 0.0
    %3192 = vmatpush1.msra.mxu0 0.0
    %3193 = vmatprep.subr.mxu0 0.0
    %3194 = vmatpush1.msra.mxu0 0.0
    %3195 = vmatprep.subr.mxu0 0.0
    %3196 = vmatpush1.msra.mxu0 0.0
    %3197 = vmatprep.subr.mxu0 0.0
    %3198 = vmatpush1.msra.mxu0 0.0
    %3199 = vmatprep.subr.mxu0 0.0
    %3200 = vmatpush1.msra.mxu0 0.0
    %3201 = vmatprep.mubr.f32.mxu0 0.0
    %3202 = vmatmul.mubr.f32.gmra.mrb[0].mxu0 %v307
    %v3203 = vpop.f32.mrb[0].mxu0
    %v3204 = vadd.f32 0.0, %v3203
    %v3205 = vpop.f32.mrb[0].mxu0
    %3206 = vmatprep.mubr.f32.mxu0 0.0
    %3207 = vmatmul.mubr.f32.gmra.mrb[0].mxu0 %v310
    %v3208 = vpop.f32.mrb[0].mxu0
    %v3209 = vadd.f32 0.0, %v3208
    %v3210 = vpop.f32.mrb[0].mxu0
    %3211 = vdwg.mxu0
    %v3212 = vmax.f32 %v3129, 0.0
    %v3213 = vmax.f32 %v3134, 0.0
    %s3214 = scalar_lea.vmem [#allocation14], 160
    %3215 = vst.msk [vmem:[%s3214] sm:$0xff] %vm389, %v3212
    %3216 = vst.msk [vmem:[%s3214 + $0x8] sm:$0xff] %vm389, %v3213
    %v3217 = vmax.f32 %v3204, 0.0
    %v3218 = vmax.f32 %v3209, 0.0
    %3221 = vrot.lane.b32.xlu0 %v3217, 32
    %v3222 = vpop.permute.xlu0 %3221
    %3223 = vrot.lane.b32.xlu0 %v3218, 32
    %v3224 = vpop.permute.xlu0 %3223
    %3227 = vst.msk [vmem:[%s3214] sm:$0xff] %vm402, %v3222
    %3228 = vst.msk [vmem:[%s3214 + $0x8] sm:$0xff] %vm402, %v3224
    %v3229 = vld [vmem:[%s2379] sm:$0xff]
    %v3230 = vld [vmem:[%s2379 + $0x8] sm:$0xff]
    %s3231 = sld [smem:[#allocation6 + $0x180]]
    %v3232 = vstv %s3231
    %v3233 = vmul.f32 %v3229, %v3232
    %v3234 = vmul.f32 %v3230, %v3232
    %v3235 = vld [vmem:[%s2386] sm:$0xff]
    %v3236 = vld [vmem:[%s2386 + $0x8] sm:$0xff]
    %s3237 = sld [smem:[#allocation6 + $0x181]]
    %v3238 = vstv %s3237
    %v3239 = vmul.f32 %v3235, %v3238
    %v3240 = vmul.f32 %v3236, %v3238
    %v3241 = vadd.f32 %v3233, %v3239
    %v3242 = vadd.f32 %v3234, %v3240
    %v3243 = vld [vmem:[%s2395] sm:$0xff]
    %v3244 = vld [vmem:[%s2395 + $0x8] sm:$0xff]
    %s3245 = sld [smem:[#allocation6 + $0x182]]
    %v3246 = vstv %s3245
    %v3247 = vmul.f32 %v3243, %v3246
    %v3248 = vmul.f32 %v3244, %v3246
    %v3249 = vadd.f32 %v3241, %v3247
    %v3250 = vadd.f32 %v3242, %v3248
    %v3251 = vld [vmem:[%s2404] sm:$0xff]
    %v3252 = vld [vmem:[%s2404 + $0x8] sm:$0xff]
    %s3253 = sld [smem:[#allocation6 + $0x183]]
    %v3254 = vstv %s3253
    %v3255 = vmul.f32 %v3251, %v3254
    %v3256 = vmul.f32 %v3252, %v3254
    %v3257 = vadd.f32 %v3249, %v3255
    %v3258 = vadd.f32 %v3250, %v3256
    %s3259 = sld [smem:[#allocation7 + $0x3]]
    %v3260 = vstv %s3259
    %v3261 = vadd.f32 %v3257, %v3260
    %v3262 = vadd.f32 %v3258, %v3260
    %v3264 = vsel %vm143, %v3261, 0
    %v3267 = vsel %vm143, %v3262, 0
    %3269 = vmatprep.subr.mxu0 0.0
    %3270 = vmatpush1.msra.mxu0 %v104
    %3271 = vmatprep.subr.mxu0 0.0
    %3272 = vmatpush1.msra.mxu0 %v105
    %3273 = vmatprep.subr.mxu0 0.0
    %3274 = vmatpush1.msra.mxu0 0.0
    %3275 = vmatprep.subr.mxu0 0.0
    %3276 = vmatpush1.msra.mxu0 0.0
    %3277 = vmatprep.subr.mxu0 0.0
    %3278 = vmatpush1.msra.mxu0 0.0
    %3279 = vmatprep.subr.mxu0 0.0
    %3280 = vmatpush1.msra.mxu0 0.0
    %3281 = vmatprep.subr.mxu0 0.0
    %3282 = vmatpush1.msra.mxu0 0.0
    %3283 = vmatprep.subr.mxu0 0.0
    %3284 = vmatpush1.msra.mxu0 0.0
    %3285 = vmatprep.subr.mxu0 0.0
    %3286 = vmatpush1.msra.mxu0 0.0
    %3287 = vmatprep.subr.mxu0 0.0
    %3288 = vmatpush1.msra.mxu0 0.0
    %3289 = vmatprep.subr.mxu0 0.0
    %3290 = vmatpush1.msra.mxu0 0.0
    %3291 = vmatprep.subr.mxu0 0.0
    %3292 = vmatpush1.msra.mxu0 0.0
    %3293 = vmatprep.subr.mxu0 0.0
    %3294 = vmatpush1.msra.mxu0 0.0
    %3295 = vmatprep.subr.mxu0 0.0
    %3296 = vmatpush1.msra.mxu0 0.0
    %3297 = vmatprep.subr.mxu0 0.0
    %3298 = vmatpush1.msra.mxu0 0.0
    %3299 = vmatprep.subr.mxu0 0.0
    %3300 = vmatpush1.msra.mxu0 0.0
    %3301 = vmatprep.subr.mxu0 0.0
    %3302 = vmatpush1.msra.mxu0 0.0
    %3303 = vmatprep.subr.mxu0 0.0
    %3304 = vmatpush1.msra.mxu0 0.0
    %3305 = vmatprep.subr.mxu0 0.0
    %3306 = vmatpush1.msra.mxu0 0.0
    %3307 = vmatprep.subr.mxu0 0.0
    %3308 = vmatpush1.msra.mxu0 0.0
    %3309 = vmatprep.subr.mxu0 0.0
    %3310 = vmatpush1.msra.mxu0 0.0
    %3311 = vmatprep.subr.mxu0 0.0
    %3312 = vmatpush1.msra.mxu0 0.0
    %3313 = vmatprep.subr.mxu0 0.0
    %3314 = vmatpush1.msra.mxu0 0.0
    %3315 = vmatprep.subr.mxu0 0.0
    %3316 = vmatpush1.msra.mxu0 0.0
    %3317 = vmatprep.subr.mxu0 0.0
    %3318 = vmatpush1.msra.mxu0 0.0
    %3319 = vmatprep.subr.mxu0 0.0
    %3320 = vmatpush1.msra.mxu0 0.0
    %3321 = vmatprep.subr.mxu0 0.0
    %3322 = vmatpush1.msra.mxu0 0.0
    %3323 = vmatprep.subr.mxu0 0.0
    %3324 = vmatpush1.msra.mxu0 0.0
    %3325 = vmatprep.subr.mxu0 0.0
    %3326 = vmatpush1.msra.mxu0 0.0
    %3327 = vmatprep.subr.mxu0 0.0
    %3328 = vmatpush1.msra.mxu0 0.0
    %3329 = vmatprep.subr.mxu0 0.0
    %3330 = vmatpush1.msra.mxu0 0.0
    %3331 = vmatprep.subr.mxu0 0.0
    %3332 = vmatpush1.msra.mxu0 0.0
    %3333 = vmatprep.mubr.f32.mxu0 0.0
    %3334 = vmatmul.mubr.f32.gmra.mrb[0].mxu0 %v3264
    %v3335 = vpop.f32.mrb[0].mxu0
    %v3336 = vadd.f32 0.0, %v3335
    %v3337 = vpop.f32.mrb[0].mxu0
    %3338 = vmatprep.mubr.f32.mxu0 0.0
    %3339 = vmatmul.mubr.f32.gmra.mrb[0].mxu0 %v3267
    %v3340 = vpop.f32.mrb[0].mxu0
    %v3341 = vadd.f32 0.0, %v3340
    %v3342 = vpop.f32.mrb[0].mxu0
    %3343 = vdwg.mxu0
    %3344 = vmatprep.subr.mxu0 0.0
    %3345 = vmatpush1.msra.mxu0 %v3336
    %3346 = vmatprep.subr.mxu0 0.0
    %3347 = vmatpush1.msra.mxu0 %v3341
    %3348 = vmatprep.subr.mxu0 0.0
    %3349 = vmatpush1.msra.mxu0 0.0
    %3350 = vmatprep.subr.mxu0 0.0
    %3351 = vmatpush1.msra.mxu0 0.0
    %3352 = vmatprep.subr.mxu0 0.0
    %3353 = vmatpush1.msra.mxu0 0.0
    %3354 = vmatprep.subr.mxu0 0.0
    %3355 = vmatpush1.msra.mxu0 0.0
    %3356 = vmatprep.subr.mxu0 0.0
    %3357 = vmatpush1.msra.mxu0 0.0
    %3358 = vmatprep.subr.mxu0 0.0
    %3359 = vmatpush1.msra.mxu0 0.0
    %3360 = vmatprep.subr.mxu0 0.0
    %3361 = vmatpush1.msra.mxu0 0.0
    %3362 = vmatprep.subr.mxu0 0.0
    %3363 = vmatpush1.msra.mxu0 0.0
    %3364 = vmatprep.subr.mxu0 0.0
    %3365 = vmatpush1.msra.mxu0 0.0
    %3366 = vmatprep.subr.mxu0 0.0
    %3367 = vmatpush1.msra.mxu0 0.0
    %3368 = vmatprep.subr.mxu0 0.0
    %3369 = vmatpush1.msra.mxu0 0.0
    %3370 = vmatprep.subr.mxu0 0.0
    %3371 = vmatpush1.msra.mxu0 0.0
    %3372 = vmatprep.subr.mxu0 0.0
    %3373 = vmatpush1.msra.mxu0 0.0
    %3374 = vmatprep.subr.mxu0 0.0
    %3375 = vmatpush1.msra.mxu0 0.0
    %3376 = vmatprep.subr.mxu0 0.0
    %3377 = vmatpush1.msra.mxu0 0.0
    %3378 = vmatprep.subr.mxu0 0.0
    %3379 = vmatpush1.msra.mxu0 0.0
    %3380 = vmatprep.subr.mxu0 0.0
    %3381 = vmatpush1.msra.mxu0 0.0
    %3382 = vmatprep.subr.mxu0 0.0
    %3383 = vmatpush1.msra.mxu0 0.0
    %3384 = vmatprep.subr.mxu0 0.0
    %3385 = vmatpush1.msra.mxu0 0.0
    %3386 = vmatprep.subr.mxu0 0.0
    %3387 = vmatpush1.msra.mxu0 0.0
    %3388 = vmatprep.subr.mxu0 0.0
    %3389 = vmatpush1.msra.mxu0 0.0
    %3390 = vmatprep.subr.mxu0 0.0
    %3391 = vmatpush1.msra.mxu0 0.0
    %3392 = vmatprep.subr.mxu0 0.0
    %3393 = vmatpush1.msra.mxu0 0.0
    %3394 = vmatprep.subr.mxu0 0.0
    %3395 = vmatpush1.msra.mxu0 0.0
    %3396 = vmatprep.subr.mxu0 0.0
    %3397 = vmatpush1.msra.mxu0 0.0
    %3398 = vmatprep.subr.mxu0 0.0
    %3399 = vmatpush1.msra.mxu0 0.0
    %3400 = vmatprep.subr.mxu0 0.0
    %3401 = vmatpush1.msra.mxu0 0.0
    %3402 = vmatprep.subr.mxu0 0.0
    %3403 = vmatpush1.msra.mxu0 0.0
    %3404 = vmatprep.subr.mxu0 0.0
    %3405 = vmatpush1.msra.mxu0 0.0
    %3406 = vmatprep.subr.mxu0 0.0
    %3407 = vmatpush1.msra.mxu0 0.0
    %3408 = vmatprep.mubr.f32.mxu0 0.0
    %3409 = vmatmul.mubr.f32.gmra.mrb[0].mxu0 %v226
    %v3410 = vpop.f32.mrb[0].mxu0
    %v3411 = vadd.f32 0.0, %v3410
    %v3412 = vpop.f32.mrb[0].mxu0
    %3413 = vmatprep.mubr.f32.mxu0 0.0
    %3414 = vmatmul.mubr.f32.gmra.mrb[0].mxu0 %v229
    %v3415 = vpop.f32.mrb[0].mxu0
    %v3416 = vadd.f32 0.0, %v3415
    %v3417 = vpop.f32.mrb[0].mxu0
    %3418 = vdwg.mxu0
    %3419 = vmatprep.subr.mxu0 0.0
    %3420 = vmatpush1.msra.mxu0 %v3336
    %3421 = vmatprep.subr.mxu0 0.0
    %3422 = vmatpush1.msra.mxu0 %v3341
    %3423 = vmatprep.subr.mxu0 0.0
    %3424 = vmatpush1.msra.mxu0 0.0
    %3425 = vmatprep.subr.mxu0 0.0
    %3426 = vmatpush1.msra.mxu0 0.0
    %3427 = vmatprep.subr.mxu0 0.0
    %3428 = vmatpush1.msra.mxu0 0.0
    %3429 = vmatprep.subr.mxu0 0.0
    %3430 = vmatpush1.msra.mxu0 0.0
    %3431 = vmatprep.subr.mxu0 0.0
    %3432 = vmatpush1.msra.mxu0 0.0
    %3433 = vmatprep.subr.mxu0 0.0
    %3434 = vmatpush1.msra.mxu0 0.0
    %3435 = vmatprep.subr.mxu0 0.0
    %3436 = vmatpush1.msra.mxu0 0.0
    %3437 = vmatprep.subr.mxu0 0.0
    %3438 = vmatpush1.msra.mxu0 0.0
    %3439 = vmatprep.subr.mxu0 0.0
    %3440 = vmatpush1.msra.mxu0 0.0
    %3441 = vmatprep.subr.mxu0 0.0
    %3442 = vmatpush1.msra.mxu0 0.0
    %3443 = vmatprep.subr.mxu0 0.0
    %3444 = vmatpush1.msra.mxu0 0.0
    %3445 = vmatprep.subr.mxu0 0.0
    %3446 = vmatpush1.msra.mxu0 0.0
    %3447 = vmatprep.subr.mxu0 0.0
    %3448 = vmatpush1.msra.mxu0 0.0
    %3449 = vmatprep.subr.mxu0 0.0
    %3450 = vmatpush1.msra.mxu0 0.0
    %3451 = vmatprep.subr.mxu0 0.0
    %3452 = vmatpush1.msra.mxu0 0.0
    %3453 = vmatprep.subr.mxu0 0.0
    %3454 = vmatpush1.msra.mxu0 0.0
    %3455 = vmatprep.subr.mxu0 0.0
    %3456 = vmatpush1.msra.mxu0 0.0
    %3457 = vmatprep.subr.mxu0 0.0
    %3458 = vmatpush1.msra.mxu0 0.0
    %3459 = vmatprep.subr.mxu0 0.0
    %3460 = vmatpush1.msra.mxu0 0.0
    %3461 = vmatprep.subr.mxu0 0.0
    %3462 = vmatpush1.msra.mxu0 0.0
    %3463 = vmatprep.subr.mxu0 0.0
    %3464 = vmatpush1.msra.mxu0 0.0
    %3465 = vmatprep.subr.mxu0 0.0
    %3466 = vmatpush1.msra.mxu0 0.0
    %3467 = vmatprep.subr.mxu0 0.0
    %3468 = vmatpush1.msra.mxu0 0.0
    %3469 = vmatprep.subr.mxu0 0.0
    %3470 = vmatpush1.msra.mxu0 0.0
    %3471 = vmatprep.subr.mxu0 0.0
    %3472 = vmatpush1.msra.mxu0 0.0
    %3473 = vmatprep.subr.mxu0 0.0
    %3474 = vmatpush1.msra.mxu0 0.0
    %3475 = vmatprep.subr.mxu0 0.0
    %3476 = vmatpush1.msra.mxu0 0.0
    %3477 = vmatprep.subr.mxu0 0.0
    %3478 = vmatpush1.msra.mxu0 0.0
    %3479 = vmatprep.subr.mxu0 0.0
    %3480 = vmatpush1.msra.mxu0 0.0
    %3481 = vmatprep.subr.mxu0 0.0
    %3482 = vmatpush1.msra.mxu0 0.0
    %3483 = vmatprep.mubr.f32.mxu0 0.0
    %3484 = vmatmul.mubr.f32.gmra.mrb[0].mxu0 %v307
    %v3485 = vpop.f32.mrb[0].mxu0
    %v3486 = vadd.f32 0.0, %v3485
    %v3487 = vpop.f32.mrb[0].mxu0
    %3488 = vmatprep.mubr.f32.mxu0 0.0
    %3489 = vmatmul.mubr.f32.gmra.mrb[0].mxu0 %v310
    %v3490 = vpop.f32.mrb[0].mxu0
    %v3491 = vadd.f32 0.0, %v3490
    %v3492 = vpop.f32.mrb[0].mxu0
    %3493 = vdwg.mxu0
    %v3494 = vmax.f32 %v3411, 0.0
    %v3495 = vmax.f32 %v3416, 0.0
    %s3496 = scalar_lea.vmem [#allocation14], 176
    %3497 = vst.msk [vmem:[%s3496] sm:$0xff] %vm389, %v3494
    %3498 = vst.msk [vmem:[%s3496 + $0x8] sm:$0xff] %vm389, %v3495
    %v3499 = vmax.f32 %v3486, 0.0
    %v3500 = vmax.f32 %v3491, 0.0
    %3503 = vrot.lane.b32.xlu0 %v3499, 32
    %v3504 = vpop.permute.xlu0 %3503
    %3505 = vrot.lane.b32.xlu0 %v3500, 32
    %v3506 = vpop.permute.xlu0 %3505
    %3509 = vst.msk [vmem:[%s3496] sm:$0xff] %vm402, %v3504
    %3510 = vst.msk [vmem:[%s3496 + $0x8] sm:$0xff] %vm402, %v3506
    %v3511 = vld [vmem:[%s2379] sm:$0xff]
    %v3512 = vld [vmem:[%s2379 + $0x8] sm:$0xff]
    %s3513 = sld [smem:[#allocation6 + $0x200]]
    %v3514 = vstv %s3513
    %v3515 = vmul.f32 %v3511, %v3514
    %v3516 = vmul.f32 %v3512, %v3514
    %v3517 = vld [vmem:[%s2386] sm:$0xff]
    %v3518 = vld [vmem:[%s2386 + $0x8] sm:$0xff]
    %s3519 = sld [smem:[#allocation6 + $0x201]]
    %v3520 = vstv %s3519
    %v3521 = vmul.f32 %v3517, %v3520
    %v3522 = vmul.f32 %v3518, %v3520
    %v3523 = vadd.f32 %v3515, %v3521
    %v3524 = vadd.f32 %v3516, %v3522
    %v3525 = vld [vmem:[%s2395] sm:$0xff]
    %v3526 = vld [vmem:[%s2395 + $0x8] sm:$0xff]
    %s3527 = sld [smem:[#allocation6 + $0x202]]
    %v3528 = vstv %s3527
    %v3529 = vmul.f32 %v3525, %v3528
    %v3530 = vmul.f32 %v3526, %v3528
    %v3531 = vadd.f32 %v3523, %v3529
    %v3532 = vadd.f32 %v3524, %v3530
    %v3533 = vld [vmem:[%s2404] sm:$0xff]
    %v3534 = vld [vmem:[%s2404 + $0x8] sm:$0xff]
    %s3535 = sld [smem:[#allocation6 + $0x203]]
    %v3536 = vstv %s3535
    %v3537 = vmul.f32 %v3533, %v3536
    %v3538 = vmul.f32 %v3534, %v3536
    %v3539 = vadd.f32 %v3531, %v3537
    %v3540 = vadd.f32 %v3532, %v3538
    %s3541 = sld [smem:[#allocation7 + $0x4]]
    %v3542 = vstv %s3541
    %v3543 = vadd.f32 %v3539, %v3542
    %v3544 = vadd.f32 %v3540, %v3542
    %v3546 = vsel %vm143, %v3543, 0
    %v3549 = vsel %vm143, %v3544, 0
    %3551 = vmatprep.subr.mxu0 0.0
    %3552 = vmatpush1.msra.mxu0 %v104
    %3553 = vmatprep.subr.mxu0 0.0
    %3554 = vmatpush1.msra.mxu0 %v105
    %3555 = vmatprep.subr.mxu0 0.0
    %3556 = vmatpush1.msra.mxu0 0.0
    %3557 = vmatprep.subr.mxu0 0.0
    %3558 = vmatpush1.msra.mxu0 0.0
    %3559 = vmatprep.subr.mxu0 0.0
    %3560 = vmatpush1.msra.mxu0 0.0
    %3561 = vmatprep.subr.mxu0 0.0
    %3562 = vmatpush1.msra.mxu0 0.0
    %3563 = vmatprep.subr.mxu0 0.0
    %3564 = vmatpush1.msra.mxu0 0.0
    %3565 = vmatprep.subr.mxu0 0.0
    %3566 = vmatpush1.msra.mxu0 0.0
    %3567 = vmatprep.subr.mxu0 0.0
    %3568 = vmatpush1.msra.mxu0 0.0
    %3569 = vmatprep.subr.mxu0 0.0
    %3570 = vmatpush1.msra.mxu0 0.0
    %3571 = vmatprep.subr.mxu0 0.0
    %3572 = vmatpush1.msra.mxu0 0.0
    %3573 = vmatprep.subr.mxu0 0.0
    %3574 = vmatpush1.msra.mxu0 0.0
    %3575 = vmatprep.subr.mxu0 0.0
    %3576 = vmatpush1.msra.mxu0 0.0
    %3577 = vmatprep.subr.mxu0 0.0
    %3578 = vmatpush1.msra.mxu0 0.0
    %3579 = vmatprep.subr.mxu0 0.0
    %3580 = vmatpush1.msra.mxu0 0.0
    %3581 = vmatprep.subr.mxu0 0.0
    %3582 = vmatpush1.msra.mxu0 0.0
    %3583 = vmatprep.subr.mxu0 0.0
    %3584 = vmatpush1.msra.mxu0 0.0
    %3585 = vmatprep.subr.mxu0 0.0
    %3586 = vmatpush1.msra.mxu0 0.0
    %3587 = vmatprep.subr.mxu0 0.0
    %3588 = vmatpush1.msra.mxu0 0.0
    %3589 = vmatprep.subr.mxu0 0.0
    %3590 = vmatpush1.msra.mxu0 0.0
    %3591 = vmatprep.subr.mxu0 0.0
    %3592 = vmatpush1.msra.mxu0 0.0
    %3593 = vmatprep.subr.mxu0 0.0
    %3594 = vmatpush1.msra.mxu0 0.0
    %3595 = vmatprep.subr.mxu0 0.0
    %3596 = vmatpush1.msra.mxu0 0.0
    %3597 = vmatprep.subr.mxu0 0.0
    %3598 = vmatpush1.msra.mxu0 0.0
    %3599 = vmatprep.subr.mxu0 0.0
    %3600 = vmatpush1.msra.mxu0 0.0
    %3601 = vmatprep.subr.mxu0 0.0
    %3602 = vmatpush1.msra.mxu0 0.0
    %3603 = vmatprep.subr.mxu0 0.0
    %3604 = vmatpush1.msra.mxu0 0.0
    %3605 = vmatprep.subr.mxu0 0.0
    %3606 = vmatpush1.msra.mxu0 0.0
    %3607 = vmatprep.subr.mxu0 0.0
    %3608 = vmatpush1.msra.mxu0 0.0
    %3609 = vmatprep.subr.mxu0 0.0
    %3610 = vmatpush1.msra.mxu0 0.0
    %3611 = vmatprep.subr.mxu0 0.0
    %3612 = vmatpush1.msra.mxu0 0.0
    %3613 = vmatprep.subr.mxu0 0.0
    %3614 = vmatpush1.msra.mxu0 0.0
    %3615 = vmatprep.mubr.f32.mxu0 0.0
    %3616 = vmatmul.mubr.f32.gmra.mrb[0].mxu0 %v3546
    %v3617 = vpop.f32.mrb[0].mxu0
    %v3618 = vadd.f32 0.0, %v3617
    %v3619 = vpop.f32.mrb[0].mxu0
    %3620 = vmatprep.mubr.f32.mxu0 0.0
    %3621 = vmatmul.mubr.f32.gmra.mrb[0].mxu0 %v3549
    %v3622 = vpop.f32.mrb[0].mxu0
    %v3623 = vadd.f32 0.0, %v3622
    %v3624 = vpop.f32.mrb[0].mxu0
    %3625 = vdwg.mxu0
    %3626 = vmatprep.subr.mxu0 0.0
    %3627 = vmatpush1.msra.mxu0 %v3618
    %3628 = vmatprep.subr.mxu0 0.0
    %3629 = vmatpush1.msra.mxu0 %v3623
    %3630 = vmatprep.subr.mxu0 0.0
    %3631 = vmatpush1.msra.mxu0 0.0
    %3632 = vmatprep.subr.mxu0 0.0
    %3633 = vmatpush1.msra.mxu0 0.0
    %3634 = vmatprep.subr.mxu0 0.0
    %3635 = vmatpush1.msra.mxu0 0.0
    %3636 = vmatprep.subr.mxu0 0.0
    %3637 = vmatpush1.msra.mxu0 0.0
    %3638 = vmatprep.subr.mxu0 0.0
    %3639 = vmatpush1.msra.mxu0 0.0
    %3640 = vmatprep.subr.mxu0 0.0
    %3641 = vmatpush1.msra.mxu0 0.0
    %3642 = vmatprep.subr.mxu0 0.0
    %3643 = vmatpush1.msra.mxu0 0.0
    %3644 = vmatprep.subr.mxu0 0.0
    %3645 = vmatpush1.msra.mxu0 0.0
    %3646 = vmatprep.subr.mxu0 0.0
    %3647 = vmatpush1.msra.mxu0 0.0
    %3648 = vmatprep.subr.mxu0 0.0
    %3649 = vmatpush1.msra.mxu0 0.0
    %3650 = vmatprep.subr.mxu0 0.0
    %3651 = vmatpush1.msra.mxu0 0.0
    %3652 = vmatprep.subr.mxu0 0.0
    %3653 = vmatpush1.msra.mxu0 0.0
    %3654 = vmatprep.subr.mxu0 0.0
    %3655 = vmatpush1.msra.mxu0 0.0
    %3656 = vmatprep.subr.mxu0 0.0
    %3657 = vmatpush1.msra.mxu0 0.0
    %3658 = vmatprep.subr.mxu0 0.0
    %3659 = vmatpush1.msra.mxu0 0.0
    %3660 = vmatprep.subr.mxu0 0.0
    %3661 = vmatpush1.msra.mxu0 0.0
    %3662 = vmatprep.subr.mxu0 0.0
    %3663 = vmatpush1.msra.mxu0 0.0
    %3664 = vmatprep.subr.mxu0 0.0
    %3665 = vmatpush1.msra.mxu0 0.0
    %3666 = vmatprep.subr.mxu0 0.0
    %3667 = vmatpush1.msra.mxu0 0.0
    %3668 = vmatprep.subr.mxu0 0.0
    %3669 = vmatpush1.msra.mxu0 0.0
    %3670 = vmatprep.subr.mxu0 0.0
    %3671 = vmatpush1.msra.mxu0 0.0
    %3672 = vmatprep.subr.mxu0 0.0
    %3673 = vmatpush1.msra.mxu0 0.0
    %3674 = vmatprep.subr.mxu0 0.0
    %3675 = vmatpush1.msra.mxu0 0.0
    %3676 = vmatprep.subr.mxu0 0.0
    %3677 = vmatpush1.msra.mxu0 0.0
    %3678 = vmatprep.subr.mxu0 0.0
    %3679 = vmatpush1.msra.mxu0 0.0
    %3680 = vmatprep.subr.mxu0 0.0
    %3681 = vmatpush1.msra.mxu0 0.0
    %3682 = vmatprep.subr.mxu0 0.0
    %3683 = vmatpush1.msra.mxu0 0.0
    %3684 = vmatprep.subr.mxu0 0.0
    %3685 = vmatpush1.msra.mxu0 0.0
    %3686 = vmatprep.subr.mxu0 0.0
    %3687 = vmatpush1.msra.mxu0 0.0
    %3688 = vmatprep.subr.mxu0 0.0
    %3689 = vmatpush1.msra.mxu0 0.0
    %3690 = vmatprep.mubr.f32.mxu0 0.0
    %3691 = vmatmul.mubr.f32.gmra.mrb[0].mxu0 %v226
    %v3692 = vpop.f32.mrb[0].mxu0
    %v3693 = vadd.f32 0.0, %v3692
    %v3694 = vpop.f32.mrb[0].mxu0
    %3695 = vmatprep.mubr.f32.mxu0 0.0
    %3696 = vmatmul.mubr.f32.gmra.mrb[0].mxu0 %v229
    %v3697 = vpop.f32.mrb[0].mxu0
    %v3698 = vadd.f32 0.0, %v3697
    %v3699 = vpop.f32.mrb[0].mxu0
    %3700 = vdwg.mxu0
    %3701 = vmatprep.subr.mxu0 0.0
    %3702 = vmatpush1.msra.mxu0 %v3618
    %3703 = vmatprep.subr.mxu0 0.0
    %3704 = vmatpush1.msra.mxu0 %v3623
    %3705 = vmatprep.subr.mxu0 0.0
    %3706 = vmatpush1.msra.mxu0 0.0
    %3707 = vmatprep.subr.mxu0 0.0
    %3708 = vmatpush1.msra.mxu0 0.0
    %3709 = vmatprep.subr.mxu0 0.0
    %3710 = vmatpush1.msra.mxu0 0.0
    %3711 = vmatprep.subr.mxu0 0.0
    %3712 = vmatpush1.msra.mxu0 0.0
    %3713 = vmatprep.subr.mxu0 0.0
    %3714 = vmatpush1.msra.mxu0 0.0
    %3715 = vmatprep.subr.mxu0 0.0
    %3716 = vmatpush1.msra.mxu0 0.0
    %3717 = vmatprep.subr.mxu0 0.0
    %3718 = vmatpush1.msra.mxu0 0.0
    %3719 = vmatprep.subr.mxu0 0.0
    %3720 = vmatpush1.msra.mxu0 0.0
    %3721 = vmatprep.subr.mxu0 0.0
    %3722 = vmatpush1.msra.mxu0 0.0
    %3723 = vmatprep.subr.mxu0 0.0
    %3724 = vmatpush1.msra.mxu0 0.0
    %3725 = vmatprep.subr.mxu0 0.0
    %3726 = vmatpush1.msra.mxu0 0.0
    %3727 = vmatprep.subr.mxu0 0.0
    %3728 = vmatpush1.msra.mxu0 0.0
    %3729 = vmatprep.subr.mxu0 0.0
    %3730 = vmatpush1.msra.mxu0 0.0
    %3731 = vmatprep.subr.mxu0 0.0
    %3732 = vmatpush1.msra.mxu0 0.0
    %3733 = vmatprep.subr.mxu0 0.0
    %3734 = vmatpush1.msra.mxu0 0.0
    %3735 = vmatprep.subr.mxu0 0.0
    %3736 = vmatpush1.msra.mxu0 0.0
    %3737 = vmatprep.subr.mxu0 0.0
    %3738 = vmatpush1.msra.mxu0 0.0
    %3739 = vmatprep.subr.mxu0 0.0
    %3740 = vmatpush1.msra.mxu0 0.0
    %3741 = vmatprep.subr.mxu0 0.0
    %3742 = vmatpush1.msra.mxu0 0.0
    %3743 = vmatprep.subr.mxu0 0.0
    %3744 = vmatpush1.msra.mxu0 0.0
    %3745 = vmatprep.subr.mxu0 0.0
    %3746 = vmatpush1.msra.mxu0 0.0
    %3747 = vmatprep.subr.mxu0 0.0
    %3748 = vmatpush1.msra.mxu0 0.0
    %3749 = vmatprep.subr.mxu0 0.0
    %3750 = vmatpush1.msra.mxu0 0.0
    %3751 = vmatprep.subr.mxu0 0.0
    %3752 = vmatpush1.msra.mxu0 0.0
    %3753 = vmatprep.subr.mxu0 0.0
    %3754 = vmatpush1.msra.mxu0 0.0
    %3755 = vmatprep.subr.mxu0 0.0
    %3756 = vmatpush1.msra.mxu0 0.0
    %3757 = vmatprep.subr.mxu0 0.0
    %3758 = vmatpush1.msra.mxu0 0.0
    %3759 = vmatprep.subr.mxu0 0.0
    %3760 = vmatpush1.msra.mxu0 0.0
    %3761 = vmatprep.subr.mxu0 0.0
    %3762 = vmatpush1.msra.mxu0 0.0
    %3763 = vmatprep.subr.mxu0 0.0
    %3764 = vmatpush1.msra.mxu0 0.0
    %3765 = vmatprep.mubr.f32.mxu0 0.0
    %3766 = vmatmul.mubr.f32.gmra.mrb[0].mxu0 %v307
    %v3767 = vpop.f32.mrb[0].mxu0
    %v3768 = vadd.f32 0.0, %v3767
    %v3769 = vpop.f32.mrb[0].mxu0
    %3770 = vmatprep.mubr.f32.mxu0 0.0
    %3771 = vmatmul.mubr.f32.gmra.mrb[0].mxu0 %v310
    %v3772 = vpop.f32.mrb[0].mxu0
    %v3773 = vadd.f32 0.0, %v3772
    %v3774 = vpop.f32.mrb[0].mxu0
    %3775 = vdwg.mxu0
    %v3776 = vmax.f32 %v3693, 0.0
    %v3777 = vmax.f32 %v3698, 0.0
    %s3778 = scalar_lea.vmem [#allocation14], 192
    %3779 = vst.msk [vmem:[%s3778] sm:$0xff] %vm389, %v3776
    %3780 = vst.msk [vmem:[%s3778 + $0x8] sm:$0xff] %vm389, %v3777
    %v3781 = vmax.f32 %v3768, 0.0
    %v3782 = vmax.f32 %v3773, 0.0
    %3785 = vrot.lane.b32.xlu0 %v3781, 32
    %v3786 = vpop.permute.xlu0 %3785
    %3787 = vrot.lane.b32.xlu0 %v3782, 32
    %v3788 = vpop.permute.xlu0 %3787
    %3791 = vst.msk [vmem:[%s3778] sm:$0xff] %vm402, %v3786
    %3792 = vst.msk [vmem:[%s3778 + $0x8] sm:$0xff] %vm402, %v3788
    %v3793 = vld [vmem:[%s2379] sm:$0xff]
    %v3794 = vld [vmem:[%s2379 + $0x8] sm:$0xff]
    %s3795 = sld [smem:[#allocation6 + $0x280]]
    %v3796 = vstv %s3795
    %v3797 = vmul.f32 %v3793, %v3796
    %v3798 = vmul.f32 %v3794, %v3796
    %v3799 = vld [vmem:[%s2386] sm:$0xff]
    %v3800 = vld [vmem:[%s2386 + $0x8] sm:$0xff]
    %s3801 = sld [smem:[#allocation6 + $0x281]]
    %v3802 = vstv %s3801
    %v3803 = vmul.f32 %v3799, %v3802
    %v3804 = vmul.f32 %v3800, %v3802
    %v3805 = vadd.f32 %v3797, %v3803
    %v3806 = vadd.f32 %v3798, %v3804
    %v3807 = vld [vmem:[%s2395] sm:$0xff]
    %v3808 = vld [vmem:[%s2395 + $0x8] sm:$0xff]
    %s3809 = sld [smem:[#allocation6 + $0x282]]
    %v3810 = vstv %s3809
    %v3811 = vmul.f32 %v3807, %v3810
    %v3812 = vmul.f32 %v3808, %v3810
    %v3813 = vadd.f32 %v3805, %v3811
    %v3814 = vadd.f32 %v3806, %v3812
    %v3815 = vld [vmem:[%s2404] sm:$0xff]
    %v3816 = vld [vmem:[%s2404 + $0x8] sm:$0xff]
    %s3817 = sld [smem:[#allocation6 + $0x283]]
    %v3818 = vstv %s3817
    %v3819 = vmul.f32 %v3815, %v3818
    %v3820 = vmul.f32 %v3816, %v3818
    %v3821 = vadd.f32 %v3813, %v3819
    %v3822 = vadd.f32 %v3814, %v3820
    %s3823 = sld [smem:[#allocation7 + $0x5]]
    %v3824 = vstv %s3823
    %v3825 = vadd.f32 %v3821, %v3824
    %v3826 = vadd.f32 %v3822, %v3824
    %v3828 = vsel %vm143, %v3825, 0
    %v3831 = vsel %vm143, %v3826, 0
    %3833 = vmatprep.subr.mxu0 0.0
    %3834 = vmatpush1.msra.mxu0 %v104
    %3835 = vmatprep.subr.mxu0 0.0
    %3836 = vmatpush1.msra.mxu0 %v105
    %3837 = vmatprep.subr.mxu0 0.0
    %3838 = vmatpush1.msra.mxu0 0.0
    %3839 = vmatprep.subr.mxu0 0.0
    %3840 = vmatpush1.msra.mxu0 0.0
    %3841 = vmatprep.subr.mxu0 0.0
    %3842 = vmatpush1.msra.mxu0 0.0
    %3843 = vmatprep.subr.mxu0 0.0
    %3844 = vmatpush1.msra.mxu0 0.0
    %3845 = vmatprep.subr.mxu0 0.0
    %3846 = vmatpush1.msra.mxu0 0.0
    %3847 = vmatprep.subr.mxu0 0.0
    %3848 = vmatpush1.msra.mxu0 0.0
    %3849 = vmatprep.subr.mxu0 0.0
    %3850 = vmatpush1.msra.mxu0 0.0
    %3851 = vmatprep.subr.mxu0 0.0
    %3852 = vmatpush1.msra.mxu0 0.0
    %3853 = vmatprep.subr.mxu0 0.0
    %3854 = vmatpush1.msra.mxu0 0.0
    %3855 = vmatprep.subr.mxu0 0.0
    %3856 = vmatpush1.msra.mxu0 0.0
    %3857 = vmatprep.subr.mxu0 0.0
    %3858 = vmatpush1.msra.mxu0 0.0
    %3859 = vmatprep.subr.mxu0 0.0
    %3860 = vmatpush1.msra.mxu0 0.0
    %3861 = vmatprep.subr.mxu0 0.0
    %3862 = vmatpush1.msra.mxu0 0.0
    %3863 = vmatprep.subr.mxu0 0.0
    %3864 = vmatpush1.msra.mxu0 0.0
    %3865 = vmatprep.subr.mxu0 0.0
    %3866 = vmatpush1.msra.mxu0 0.0
    %3867 = vmatprep.subr.mxu0 0.0
    %3868 = vmatpush1.msra.mxu0 0.0
    %3869 = vmatprep.subr.mxu0 0.0
    %3870 = vmatpush1.msra.mxu0 0.0
    %3871 = vmatprep.subr.mxu0 0.0
    %3872 = vmatpush1.msra.mxu0 0.0
    %3873 = vmatprep.subr.mxu0 0.0
    %3874 = vmatpush1.msra.mxu0 0.0
    %3875 = vmatprep.subr.mxu0 0.0
    %3876 = vmatpush1.msra.mxu0 0.0
    %3877 = vmatprep.subr.mxu0 0.0
    %3878 = vmatpush1.msra.mxu0 0.0
    %3879 = vmatprep.subr.mxu0 0.0
    %3880 = vmatpush1.msra.mxu0 0.0
    %3881 = vmatprep.subr.mxu0 0.0
    %3882 = vmatpush1.msra.mxu0 0.0
    %3883 = vmatprep.subr.mxu0 0.0
    %3884 = vmatpush1.msra.mxu0 0.0
    %3885 = vmatprep.subr.mxu0 0.0
    %3886 = vmatpush1.msra.mxu0 0.0
    %3887 = vmatprep.subr.mxu0 0.0
    %3888 = vmatpush1.msra.mxu0 0.0
    %3889 = vmatprep.subr.mxu0 0.0
    %3890 = vmatpush1.msra.mxu0 0.0
    %3891 = vmatprep.subr.mxu0 0.0
    %3892 = vmatpush1.msra.mxu0 0.0
    %3893 = vmatprep.subr.mxu0 0.0
    %3894 = vmatpush1.msra.mxu0 0.0
    %3895 = vmatprep.subr.mxu0 0.0
    %3896 = vmatpush1.msra.mxu0 0.0
    %3897 = vmatprep.mubr.f32.mxu0 0.0
    %3898 = vmatmul.mubr.f32.gmra.mrb[0].mxu0 %v3828
    %v3899 = vpop.f32.mrb[0].mxu0
    %v3900 = vadd.f32 0.0, %v3899
    %v3901 = vpop.f32.mrb[0].mxu0
    %3902 = vmatprep.mubr.f32.mxu0 0.0
    %3903 = vmatmul.mubr.f32.gmra.mrb[0].mxu0 %v3831
    %v3904 = vpop.f32.mrb[0].mxu0
    %v3905 = vadd.f32 0.0, %v3904
    %v3906 = vpop.f32.mrb[0].mxu0
    %3907 = vdwg.mxu0
    %3908 = vmatprep.subr.mxu0 0.0
    %3909 = vmatpush1.msra.mxu0 %v3900
    %3910 = vmatprep.subr.mxu0 0.0
    %3911 = vmatpush1.msra.mxu0 %v3905
    %3912 = vmatprep.subr.mxu0 0.0
    %3913 = vmatpush1.msra.mxu0 0.0
    %3914 = vmatprep.subr.mxu0 0.0
    %3915 = vmatpush1.msra.mxu0 0.0
    %3916 = vmatprep.subr.mxu0 0.0
    %3917 = vmatpush1.msra.mxu0 0.0
    %3918 = vmatprep.subr.mxu0 0.0
    %3919 = vmatpush1.msra.mxu0 0.0
    %3920 = vmatprep.subr.mxu0 0.0
    %3921 = vmatpush1.msra.mxu0 0.0
    %3922 = vmatprep.subr.mxu0 0.0
    %3923 = vmatpush1.msra.mxu0 0.0
    %3924 = vmatprep.subr.mxu0 0.0
    %3925 = vmatpush1.msra.mxu0 0.0
    %3926 = vmatprep.subr.mxu0 0.0
    %3927 = vmatpush1.msra.mxu0 0.0
    %3928 = vmatprep.subr.mxu0 0.0
    %3929 = vmatpush1.msra.mxu0 0.0
    %3930 = vmatprep.subr.mxu0 0.0
    %3931 = vmatpush1.msra.mxu0 0.0
    %3932 = vmatprep.subr.mxu0 0.0
    %3933 = vmatpush1.msra.mxu0 0.0
    %3934 = vmatprep.subr.mxu0 0.0
    %3935 = vmatpush1.msra.mxu0 0.0
    %3936 = vmatprep.subr.mxu0 0.0
    %3937 = vmatpush1.msra.mxu0 0.0
    %3938 = vmatprep.subr.mxu0 0.0
    %3939 = vmatpush1.msra.mxu0 0.0
    %3940 = vmatprep.subr.mxu0 0.0
    %3941 = vmatpush1.msra.mxu0 0.0
    %3942 = vmatprep.subr.mxu0 0.0
    %3943 = vmatpush1.msra.mxu0 0.0
    %3944 = vmatprep.subr.mxu0 0.0
    %3945 = vmatpush1.msra.mxu0 0.0
    %3946 = vmatprep.subr.mxu0 0.0
    %3947 = vmatpush1.msra.mxu0 0.0
    %3948 = vmatprep.subr.mxu0 0.0
    %3949 = vmatpush1.msra.mxu0 0.0
    %3950 = vmatprep.subr.mxu0 0.0
    %3951 = vmatpush1.msra.mxu0 0.0
    %3952 = vmatprep.subr.mxu0 0.0
    %3953 = vmatpush1.msra.mxu0 0.0
    %3954 = vmatprep.subr.mxu0 0.0
    %3955 = vmatpush1.msra.mxu0 0.0
    %3956 = vmatprep.subr.mxu0 0.0
    %3957 = vmatpush1.msra.mxu0 0.0
    %3958 = vmatprep.subr.mxu0 0.0
    %3959 = vmatpush1.msra.mxu0 0.0
    %3960 = vmatprep.subr.mxu0 0.0
    %3961 = vmatpush1.msra.mxu0 0.0
    %3962 = vmatprep.subr.mxu0 0.0
    %3963 = vmatpush1.msra.mxu0 0.0
    %3964 = vmatprep.subr.mxu0 0.0
    %3965 = vmatpush1.msra.mxu0 0.0
    %3966 = vmatprep.subr.mxu0 0.0
    %3967 = vmatpush1.msra.mxu0 0.0
    %3968 = vmatprep.subr.mxu0 0.0
    %3969 = vmatpush1.msra.mxu0 0.0
    %3970 = vmatprep.subr.mxu0 0.0
    %3971 = vmatpush1.msra.mxu0 0.0
    %3972 = vmatprep.mubr.f32.mxu0 0.0
    %3973 = vmatmul.mubr.f32.gmra.mrb[0].mxu0 %v226
    %v3974 = vpop.f32.mrb[0].mxu0
    %v3975 = vadd.f32 0.0, %v3974
    %v3976 = vpop.f32.mrb[0].mxu0
    %3977 = vmatprep.mubr.f32.mxu0 0.0
    %3978 = vmatmul.mubr.f32.gmra.mrb[0].mxu0 %v229
    %v3979 = vpop.f32.mrb[0].mxu0
    %v3980 = vadd.f32 0.0, %v3979
    %v3981 = vpop.f32.mrb[0].mxu0
    %3982 = vdwg.mxu0
    %3983 = vmatprep.subr.mxu0 0.0
    %3984 = vmatpush1.msra.mxu0 %v3900
    %3985 = vmatprep.subr.mxu0 0.0
    %3986 = vmatpush1.msra.mxu0 %v3905
    %3987 = vmatprep.subr.mxu0 0.0
    %3988 = vmatpush1.msra.mxu0 0.0
    %3989 = vmatprep.subr.mxu0 0.0
    %3990 = vmatpush1.msra.mxu0 0.0
    %3991 = vmatprep.subr.mxu0 0.0
    %3992 = vmatpush1.msra.mxu0 0.0
    %3993 = vmatprep.subr.mxu0 0.0
    %3994 = vmatpush1.msra.mxu0 0.0
    %3995 = vmatprep.subr.mxu0 0.0
    %3996 = vmatpush1.msra.mxu0 0.0
    %3997 = vmatprep.subr.mxu0 0.0
    %3998 = vmatpush1.msra.mxu0 0.0
    %3999 = vmatprep.subr.mxu0 0.0
    %4000 = vmatpush1.msra.mxu0 0.0
    %4001 = vmatprep.subr.mxu0 0.0
    %4002 = vmatpush1.msra.mxu0 0.0
    %4003 = vmatprep.subr.mxu0 0.0
    %4004 = vmatpush1.msra.mxu0 0.0
    %4005 = vmatprep.subr.mxu0 0.0
    %4006 = vmatpush1.msra.mxu0 0.0
    %4007 = vmatprep.subr.mxu0 0.0
    %4008 = vmatpush1.msra.mxu0 0.0
    %4009 = vmatprep.subr.mxu0 0.0
    %4010 = vmatpush1.msra.mxu0 0.0
    %4011 = vmatprep.subr.mxu0 0.0
    %4012 = vmatpush1.msra.mxu0 0.0
    %4013 = vmatprep.subr.mxu0 0.0
    %4014 = vmatpush1.msra.mxu0 0.0
    %4015 = vmatprep.subr.mxu0 0.0
    %4016 = vmatpush1.msra.mxu0 0.0
    %4017 = vmatprep.subr.mxu0 0.0
    %4018 = vmatpush1.msra.mxu0 0.0
    %4019 = vmatprep.subr.mxu0 0.0
    %4020 = vmatpush1.msra.mxu0 0.0
    %4021 = vmatprep.subr.mxu0 0.0
    %4022 = vmatpush1.msra.mxu0 0.0
    %4023 = vmatprep.subr.mxu0 0.0
    %4024 = vmatpush1.msra.mxu0 0.0
    %4025 = vmatprep.subr.mxu0 0.0
    %4026 = vmatpush1.msra.mxu0 0.0
    %4027 = vmatprep.subr.mxu0 0.0
    %4028 = vmatpush1.msra.mxu0 0.0
    %4029 = vmatprep.subr.mxu0 0.0
    %4030 = vmatpush1.msra.mxu0 0.0
    %4031 = vmatprep.subr.mxu0 0.0
    %4032 = vmatpush1.msra.mxu0 0.0
    %4033 = vmatprep.subr.mxu0 0.0
    %4034 = vmatpush1.msra.mxu0 0.0
    %4035 = vmatprep.subr.mxu0 0.0
    %4036 = vmatpush1.msra.mxu0 0.0
    %4037 = vmatprep.subr.mxu0 0.0
    %4038 = vmatpush1.msra.mxu0 0.0
    %4039 = vmatprep.subr.mxu0 0.0
    %4040 = vmatpush1.msra.mxu0 0.0
    %4041 = vmatprep.subr.mxu0 0.0
    %4042 = vmatpush1.msra.mxu0 0.0
    %4043 = vmatprep.subr.mxu0 0.0
    %4044 = vmatpush1.msra.mxu0 0.0
    %4045 = vmatprep.subr.mxu0 0.0
    %4046 = vmatpush1.msra.mxu0 0.0
    %4047 = vmatprep.mubr.f32.mxu0 0.0
    %4048 = vmatmul.mubr.f32.gmra.mrb[0].mxu0 %v307
    %v4049 = vpop.f32.mrb[0].mxu0
    %v4050 = vadd.f32 0.0, %v4049
    %v4051 = vpop.f32.mrb[0].mxu0
    %4052 = vmatprep.mubr.f32.mxu0 0.0
    %4053 = vmatmul.mubr.f32.gmra.mrb[0].mxu0 %v310
    %v4054 = vpop.f32.mrb[0].mxu0
    %v4055 = vadd.f32 0.0, %v4054
    %v4056 = vpop.f32.mrb[0].mxu0
    %4057 = vdwg.mxu0
    %v4058 = vmax.f32 %v3975, 0.0
    %v4059 = vmax.f32 %v3980, 0.0
    %s4060 = scalar_lea.vmem [#allocation14], 208
    %4061 = vst.msk [vmem:[%s4060] sm:$0xff] %vm389, %v4058
    %4062 = vst.msk [vmem:[%s4060 + $0x8] sm:$0xff] %vm389, %v4059
    %v4063 = vmax.f32 %v4050, 0.0
    %v4064 = vmax.f32 %v4055, 0.0
    %4067 = vrot.lane.b32.xlu0 %v4063, 32
    %v4068 = vpop.permute.xlu0 %4067
    %4069 = vrot.lane.b32.xlu0 %v4064, 32
    %v4070 = vpop.permute.xlu0 %4069
    %4073 = vst.msk [vmem:[%s4060] sm:$0xff] %vm402, %v4068
    %4074 = vst.msk [vmem:[%s4060 + $0x8] sm:$0xff] %vm402, %v4070
    %v4075 = vld [vmem:[%s2379] sm:$0xff]
    %v4076 = vld [vmem:[%s2379 + $0x8] sm:$0xff]
    %s4077 = sld [smem:[#allocation6 + $0x300]]
    %v4078 = vstv %s4077
    %v4079 = vmul.f32 %v4075, %v4078
    %v4080 = vmul.f32 %v4076, %v4078
    %v4081 = vld [vmem:[%s2386] sm:$0xff]
    %v4082 = vld [vmem:[%s2386 + $0x8] sm:$0xff]
    %s4083 = sld [smem:[#allocation6 + $0x301]]
    %v4084 = vstv %s4083
    %v4085 = vmul.f32 %v4081, %v4084
    %v4086 = vmul.f32 %v4082, %v4084
    %v4087 = vadd.f32 %v4079, %v4085
    %v4088 = vadd.f32 %v4080, %v4086
    %v4089 = vld [vmem:[%s2395] sm:$0xff]
    %v4090 = vld [vmem:[%s2395 + $0x8] sm:$0xff]
    %s4091 = sld [smem:[#allocation6 + $0x302]]
    %v4092 = vstv %s4091
    %v4093 = vmul.f32 %v4089, %v4092
    %v4094 = vmul.f32 %v4090, %v4092
    %v4095 = vadd.f32 %v4087, %v4093
    %v4096 = vadd.f32 %v4088, %v4094
    %v4097 = vld [vmem:[%s2404] sm:$0xff]
    %v4098 = vld [vmem:[%s2404 + $0x8] sm:$0xff]
    %s4099 = sld [smem:[#allocation6 + $0x303]]
    %v4100 = vstv %s4099
    %v4101 = vmul.f32 %v4097, %v4100
    %v4102 = vmul.f32 %v4098, %v4100
    %v4103 = vadd.f32 %v4095, %v4101
    %v4104 = vadd.f32 %v4096, %v4102
    %s4105 = sld [smem:[#allocation7 + $0x6]]
    %v4106 = vstv %s4105
    %v4107 = vadd.f32 %v4103, %v4106
    %v4108 = vadd.f32 %v4104, %v4106
    %v4110 = vsel %vm143, %v4107, 0
    %v4113 = vsel %vm143, %v4108, 0
    %4115 = vmatprep.subr.mxu0 0.0
    %4116 = vmatpush1.msra.mxu0 %v104
    %4117 = vmatprep.subr.mxu0 0.0
    %4118 = vmatpush1.msra.mxu0 %v105
    %4119 = vmatprep.subr.mxu0 0.0
    %4120 = vmatpush1.msra.mxu0 0.0
    %4121 = vmatprep.subr.mxu0 0.0
    %4122 = vmatpush1.msra.mxu0 0.0
    %4123 = vmatprep.subr.mxu0 0.0
    %4124 = vmatpush1.msra.mxu0 0.0
    %4125 = vmatprep.subr.mxu0 0.0
    %4126 = vmatpush1.msra.mxu0 0.0
    %4127 = vmatprep.subr.mxu0 0.0
    %4128 = vmatpush1.msra.mxu0 0.0
    %4129 = vmatprep.subr.mxu0 0.0
    %4130 = vmatpush1.msra.mxu0 0.0
    %4131 = vmatprep.subr.mxu0 0.0
    %4132 = vmatpush1.msra.mxu0 0.0
    %4133 = vmatprep.subr.mxu0 0.0
    %4134 = vmatpush1.msra.mxu0 0.0
    %4135 = vmatprep.subr.mxu0 0.0
    %4136 = vmatpush1.msra.mxu0 0.0
    %4137 = vmatprep.subr.mxu0 0.0
    %4138 = vmatpush1.msra.mxu0 0.0
    %4139 = vmatprep.subr.mxu0 0.0
    %4140 = vmatpush1.msra.mxu0 0.0
    %4141 = vmatprep.subr.mxu0 0.0
    %4142 = vmatpush1.msra.mxu0 0.0
    %4143 = vmatprep.subr.mxu0 0.0
    %4144 = vmatpush1.msra.mxu0 0.0
    %4145 = vmatprep.subr.mxu0 0.0
    %4146 = vmatpush1.msra.mxu0 0.0
    %4147 = vmatprep.subr.mxu0 0.0
    %4148 = vmatpush1.msra.mxu0 0.0
    %4149 = vmatprep.subr.mxu0 0.0
    %4150 = vmatpush1.msra.mxu0 0.0
    %4151 = vmatprep.subr.mxu0 0.0
    %4152 = vmatpush1.msra.mxu0 0.0
    %4153 = vmatprep.subr.mxu0 0.0
    %4154 = vmatpush1.msra.mxu0 0.0
    %4155 = vmatprep.subr.mxu0 0.0
    %4156 = vmatpush1.msra.mxu0 0.0
    %4157 = vmatprep.subr.mxu0 0.0
    %4158 = vmatpush1.msra.mxu0 0.0
    %4159 = vmatprep.subr.mxu0 0.0
    %4160 = vmatpush1.msra.mxu0 0.0
    %4161 = vmatprep.subr.mxu0 0.0
    %4162 = vmatpush1.msra.mxu0 0.0
    %4163 = vmatprep.subr.mxu0 0.0
    %4164 = vmatpush1.msra.mxu0 0.0
    %4165 = vmatprep.subr.mxu0 0.0
    %4166 = vmatpush1.msra.mxu0 0.0
    %4167 = vmatprep.subr.mxu0 0.0
    %4168 = vmatpush1.msra.mxu0 0.0
    %4169 = vmatprep.subr.mxu0 0.0
    %4170 = vmatpush1.msra.mxu0 0.0
    %4171 = vmatprep.subr.mxu0 0.0
    %4172 = vmatpush1.msra.mxu0 0.0
    %4173 = vmatprep.subr.mxu0 0.0
    %4174 = vmatpush1.msra.mxu0 0.0
    %4175 = vmatprep.subr.mxu0 0.0
    %4176 = vmatpush1.msra.mxu0 0.0
    %4177 = vmatprep.subr.mxu0 0.0
    %4178 = vmatpush1.msra.mxu0 0.0
    %4179 = vmatprep.mubr.f32.mxu0 0.0
    %4180 = vmatmul.mubr.f32.gmra.mrb[0].mxu0 %v4110
    %v4181 = vpop.f32.mrb[0].mxu0
    %v4182 = vadd.f32 0.0, %v4181
    %v4183 = vpop.f32.mrb[0].mxu0
    %4184 = vmatprep.mubr.f32.mxu0 0.0
    %4185 = vmatmul.mubr.f32.gmra.mrb[0].mxu0 %v4113
    %v4186 = vpop.f32.mrb[0].mxu0
    %v4187 = vadd.f32 0.0, %v4186
    %v4188 = vpop.f32.mrb[0].mxu0
    %4189 = vdwg.mxu0
    %4190 = vmatprep.subr.mxu0 0.0
    %4191 = vmatpush1.msra.mxu0 %v4182
    %4192 = vmatprep.subr.mxu0 0.0
    %4193 = vmatpush1.msra.mxu0 %v4187
    %4194 = vmatprep.subr.mxu0 0.0
    %4195 = vmatpush1.msra.mxu0 0.0
    %4196 = vmatprep.subr.mxu0 0.0
    %4197 = vmatpush1.msra.mxu0 0.0
    %4198 = vmatprep.subr.mxu0 0.0
    %4199 = vmatpush1.msra.mxu0 0.0
    %4200 = vmatprep.subr.mxu0 0.0
    %4201 = vmatpush1.msra.mxu0 0.0
    %4202 = vmatprep.subr.mxu0 0.0
    %4203 = vmatpush1.msra.mxu0 0.0
    %4204 = vmatprep.subr.mxu0 0.0
    %4205 = vmatpush1.msra.mxu0 0.0
    %4206 = vmatprep.subr.mxu0 0.0
    %4207 = vmatpush1.msra.mxu0 0.0
    %4208 = vmatprep.subr.mxu0 0.0
    %4209 = vmatpush1.msra.mxu0 0.0
    %4210 = vmatprep.subr.mxu0 0.0
    %4211 = vmatpush1.msra.mxu0 0.0
    %4212 = vmatprep.subr.mxu0 0.0
    %4213 = vmatpush1.msra.mxu0 0.0
    %4214 = vmatprep.subr.mxu0 0.0
    %4215 = vmatpush1.msra.mxu0 0.0
    %4216 = vmatprep.subr.mxu0 0.0
    %4217 = vmatpush1.msra.mxu0 0.0
    %4218 = vmatprep.subr.mxu0 0.0
    %4219 = vmatpush1.msra.mxu0 0.0
    %4220 = vmatprep.subr.mxu0 0.0
    %4221 = vmatpush1.msra.mxu0 0.0
    %4222 = vmatprep.subr.mxu0 0.0
    %4223 = vmatpush1.msra.mxu0 0.0
    %4224 = vmatprep.subr.mxu0 0.0
    %4225 = vmatpush1.msra.mxu0 0.0
    %4226 = vmatprep.subr.mxu0 0.0
    %4227 = vmatpush1.msra.mxu0 0.0
    %4228 = vmatprep.subr.mxu0 0.0
    %4229 = vmatpush1.msra.mxu0 0.0
    %4230 = vmatprep.subr.mxu0 0.0
    %4231 = vmatpush1.msra.mxu0 0.0
    %4232 = vmatprep.subr.mxu0 0.0
    %4233 = vmatpush1.msra.mxu0 0.0
    %4234 = vmatprep.subr.mxu0 0.0
    %4235 = vmatpush1.msra.mxu0 0.0
    %4236 = vmatprep.subr.mxu0 0.0
    %4237 = vmatpush1.msra.mxu0 0.0
    %4238 = vmatprep.subr.mxu0 0.0
    %4239 = vmatpush1.msra.mxu0 0.0
    %4240 = vmatprep.subr.mxu0 0.0
    %4241 = vmatpush1.msra.mxu0 0.0
    %4242 = vmatprep.subr.mxu0 0.0
    %4243 = vmatpush1.msra.mxu0 0.0
    %4244 = vmatprep.subr.mxu0 0.0
    %4245 = vmatpush1.msra.mxu0 0.0
    %4246 = vmatprep.subr.mxu0 0.0
    %4247 = vmatpush1.msra.mxu0 0.0
    %4248 = vmatprep.subr.mxu0 0.0
    %4249 = vmatpush1.msra.mxu0 0.0
    %4250 = vmatprep.subr.mxu0 0.0
    %4251 = vmatpush1.msra.mxu0 0.0
    %4252 = vmatprep.subr.mxu0 0.0
    %4253 = vmatpush1.msra.mxu0 0.0
    %4254 = vmatprep.mubr.f32.mxu0 0.0
    %4255 = vmatmul.mubr.f32.gmra.mrb[0].mxu0 %v226
    %v4256 = vpop.f32.mrb[0].mxu0
    %v4257 = vadd.f32 0.0, %v4256
    %v4258 = vpop.f32.mrb[0].mxu0
    %4259 = vmatprep.mubr.f32.mxu0 0.0
    %4260 = vmatmul.mubr.f32.gmra.mrb[0].mxu0 %v229
    %v4261 = vpop.f32.mrb[0].mxu0
    %v4262 = vadd.f32 0.0, %v4261
    %v4263 = vpop.f32.mrb[0].mxu0
    %4264 = vdwg.mxu0
    %4265 = vmatprep.subr.mxu0 0.0
    %4266 = vmatpush1.msra.mxu0 %v4182
    %4267 = vmatprep.subr.mxu0 0.0
    %4268 = vmatpush1.msra.mxu0 %v4187
    %4269 = vmatprep.subr.mxu0 0.0
    %4270 = vmatpush1.msra.mxu0 0.0
    %4271 = vmatprep.subr.mxu0 0.0
    %4272 = vmatpush1.msra.mxu0 0.0
    %4273 = vmatprep.subr.mxu0 0.0
    %4274 = vmatpush1.msra.mxu0 0.0
    %4275 = vmatprep.subr.mxu0 0.0
    %4276 = vmatpush1.msra.mxu0 0.0
    %4277 = vmatprep.subr.mxu0 0.0
    %4278 = vmatpush1.msra.mxu0 0.0
    %4279 = vmatprep.subr.mxu0 0.0
    %4280 = vmatpush1.msra.mxu0 0.0
    %4281 = vmatprep.subr.mxu0 0.0
    %4282 = vmatpush1.msra.mxu0 0.0
    %4283 = vmatprep.subr.mxu0 0.0
    %4284 = vmatpush1.msra.mxu0 0.0
    %4285 = vmatprep.subr.mxu0 0.0
    %4286 = vmatpush1.msra.mxu0 0.0
    %4287 = vmatprep.subr.mxu0 0.0
    %4288 = vmatpush1.msra.mxu0 0.0
    %4289 = vmatprep.subr.mxu0 0.0
    %4290 = vmatpush1.msra.mxu0 0.0
    %4291 = vmatprep.subr.mxu0 0.0
    %4292 = vmatpush1.msra.mxu0 0.0
    %4293 = vmatprep.subr.mxu0 0.0
    %4294 = vmatpush1.msra.mxu0 0.0
    %4295 = vmatprep.subr.mxu0 0.0
    %4296 = vmatpush1.msra.mxu0 0.0
    %4297 = vmatprep.subr.mxu0 0.0
    %4298 = vmatpush1.msra.mxu0 0.0
    %4299 = vmatprep.subr.mxu0 0.0
    %4300 = vmatpush1.msra.mxu0 0.0
    %4301 = vmatprep.subr.mxu0 0.0
    %4302 = vmatpush1.msra.mxu0 0.0
    %4303 = vmatprep.subr.mxu0 0.0
    %4304 = vmatpush1.msra.mxu0 0.0
    %4305 = vmatprep.subr.mxu0 0.0
    %4306 = vmatpush1.msra.mxu0 0.0
    %4307 = vmatprep.subr.mxu0 0.0
    %4308 = vmatpush1.msra.mxu0 0.0
    %4309 = vmatprep.subr.mxu0 0.0
    %4310 = vmatpush1.msra.mxu0 0.0
    %4311 = vmatprep.subr.mxu0 0.0
    %4312 = vmatpush1.msra.mxu0 0.0
    %4313 = vmatprep.subr.mxu0 0.0
    %4314 = vmatpush1.msra.mxu0 0.0
    %4315 = vmatprep.subr.mxu0 0.0
    %4316 = vmatpush1.msra.mxu0 0.0
    %4317 = vmatprep.subr.mxu0 0.0
    %4318 = vmatpush1.msra.mxu0 0.0
    %4319 = vmatprep.subr.mxu0 0.0
    %4320 = vmatpush1.msra.mxu0 0.0
    %4321 = vmatprep.subr.mxu0 0.0
    %4322 = vmatpush1.msra.mxu0 0.0
    %4323 = vmatprep.subr.mxu0 0.0
    %4324 = vmatpush1.msra.mxu0 0.0
    %4325 = vmatprep.subr.mxu0 0.0
    %4326 = vmatpush1.msra.mxu0 0.0
    %4327 = vmatprep.subr.mxu0 0.0
    %4328 = vmatpush1.msra.mxu0 0.0
    %4329 = vmatprep.mubr.f32.mxu0 0.0
    %4330 = vmatmul.mubr.f32.gmra.mrb[0].mxu0 %v307
    %v4331 = vpop.f32.mrb[0].mxu0
    %v4332 = vadd.f32 0.0, %v4331
    %v4333 = vpop.f32.mrb[0].mxu0
    %4334 = vmatprep.mubr.f32.mxu0 0.0
    %4335 = vmatmul.mubr.f32.gmra.mrb[0].mxu0 %v310
    %v4336 = vpop.f32.mrb[0].mxu0
    %v4337 = vadd.f32 0.0, %v4336
    %v4338 = vpop.f32.mrb[0].mxu0
    %4339 = vdwg.mxu0
    %v4340 = vmax.f32 %v4257, 0.0
    %v4341 = vmax.f32 %v4262, 0.0
    %s4342 = scalar_lea.vmem [#allocation14], 224
    %4343 = vst.msk [vmem:[%s4342] sm:$0xff] %vm389, %v4340
    %4344 = vst.msk [vmem:[%s4342 + $0x8] sm:$0xff] %vm389, %v4341
    %v4345 = vmax.f32 %v4332, 0.0
    %v4346 = vmax.f32 %v4337, 0.0
    %4349 = vrot.lane.b32.xlu0 %v4345, 32
    %v4350 = vpop.permute.xlu0 %4349
    %4351 = vrot.lane.b32.xlu0 %v4346, 32
    %v4352 = vpop.permute.xlu0 %4351
    %4355 = vst.msk [vmem:[%s4342] sm:$0xff] %vm402, %v4350
    %4356 = vst.msk [vmem:[%s4342 + $0x8] sm:$0xff] %vm402, %v4352
    %v4357 = vld [vmem:[%s2379] sm:$0xff]
    %v4358 = vld [vmem:[%s2379 + $0x8] sm:$0xff]
    %s4359 = sld [smem:[#allocation6 + $0x380]]
    %v4360 = vstv %s4359
    %v4361 = vmul.f32 %v4357, %v4360
    %v4362 = vmul.f32 %v4358, %v4360
    %v4363 = vld [vmem:[%s2386] sm:$0xff]
    %v4364 = vld [vmem:[%s2386 + $0x8] sm:$0xff]
    %s4365 = sld [smem:[#allocation6 + $0x381]]
    %v4366 = vstv %s4365
    %v4367 = vmul.f32 %v4363, %v4366
    %v4368 = vmul.f32 %v4364, %v4366
    %v4369 = vadd.f32 %v4361, %v4367
    %v4370 = vadd.f32 %v4362, %v4368
    %v4371 = vld [vmem:[%s2395] sm:$0xff]
    %v4372 = vld [vmem:[%s2395 + $0x8] sm:$0xff]
    %s4373 = sld [smem:[#allocation6 + $0x382]]
    %v4374 = vstv %s4373
    %v4375 = vmul.f32 %v4371, %v4374
    %v4376 = vmul.f32 %v4372, %v4374
    %v4377 = vadd.f32 %v4369, %v4375
    %v4378 = vadd.f32 %v4370, %v4376
    %v4379 = vld [vmem:[%s2404] sm:$0xff]
    %v4380 = vld [vmem:[%s2404 + $0x8] sm:$0xff]
    %s4381 = sld [smem:[#allocation6 + $0x383]]
    %v4382 = vstv %s4381
    %v4383 = vmul.f32 %v4379, %v4382
    %v4384 = vmul.f32 %v4380, %v4382
    %v4385 = vadd.f32 %v4377, %v4383
    %v4386 = vadd.f32 %v4378, %v4384
    %s4387 = sld [smem:[#allocation7 + $0x7]]
    %v4388 = vstv %s4387
    %v4389 = vadd.f32 %v4385, %v4388
    %v4390 = vadd.f32 %v4386, %v4388
    %v4392 = vsel %vm143, %v4389, 0
    %v4395 = vsel %vm143, %v4390, 0
    %4397 = vmatprep.subr.mxu0 0.0
    %4398 = vmatpush1.msra.mxu0 %v104
    %4399 = vmatprep.subr.mxu0 0.0
    %4400 = vmatpush1.msra.mxu0 %v105
    %4401 = vmatprep.subr.mxu0 0.0
    %4402 = vmatpush1.msra.mxu0 0.0
    %4403 = vmatprep.subr.mxu0 0.0
    %4404 = vmatpush1.msra.mxu0 0.0
    %4405 = vmatprep.subr.mxu0 0.0
    %4406 = vmatpush1.msra.mxu0 0.0
    %4407 = vmatprep.subr.mxu0 0.0
    %4408 = vmatpush1.msra.mxu0 0.0
    %4409 = vmatprep.subr.mxu0 0.0
    %4410 = vmatpush1.msra.mxu0 0.0
    %4411 = vmatprep.subr.mxu0 0.0
    %4412 = vmatpush1.msra.mxu0 0.0
    %4413 = vmatprep.subr.mxu0 0.0
    %4414 = vmatpush1.msra.mxu0 0.0
    %4415 = vmatprep.subr.mxu0 0.0
    %4416 = vmatpush1.msra.mxu0 0.0
    %4417 = vmatprep.subr.mxu0 0.0
    %4418 = vmatpush1.msra.mxu0 0.0
    %4419 = vmatprep.subr.mxu0 0.0
    %4420 = vmatpush1.msra.mxu0 0.0
    %4421 = vmatprep.subr.mxu0 0.0
    %4422 = vmatpush1.msra.mxu0 0.0
    %4423 = vmatprep.subr.mxu0 0.0
    %4424 = vmatpush1.msra.mxu0 0.0
    %4425 = vmatprep.subr.mxu0 0.0
    %4426 = vmatpush1.msra.mxu0 0.0
    %4427 = vmatprep.subr.mxu0 0.0
    %4428 = vmatpush1.msra.mxu0 0.0
    %4429 = vmatprep.subr.mxu0 0.0
    %4430 = vmatpush1.msra.mxu0 0.0
    %4431 = vmatprep.subr.mxu0 0.0
    %4432 = vmatpush1.msra.mxu0 0.0
    %4433 = vmatprep.subr.mxu0 0.0
    %4434 = vmatpush1.msra.mxu0 0.0
    %4435 = vmatprep.subr.mxu0 0.0
    %4436 = vmatpush1.msra.mxu0 0.0
    %4437 = vmatprep.subr.mxu0 0.0
    %4438 = vmatpush1.msra.mxu0 0.0
    %4439 = vmatprep.subr.mxu0 0.0
    %4440 = vmatpush1.msra.mxu0 0.0
    %4441 = vmatprep.subr.mxu0 0.0
    %4442 = vmatpush1.msra.mxu0 0.0
    %4443 = vmatprep.subr.mxu0 0.0
    %4444 = vmatpush1.msra.mxu0 0.0
    %4445 = vmatprep.subr.mxu0 0.0
    %4446 = vmatpush1.msra.mxu0 0.0
    %4447 = vmatprep.subr.mxu0 0.0
    %4448 = vmatpush1.msra.mxu0 0.0
    %4449 = vmatprep.subr.mxu0 0.0
    %4450 = vmatpush1.msra.mxu0 0.0
    %4451 = vmatprep.subr.mxu0 0.0
    %4452 = vmatpush1.msra.mxu0 0.0
    %4453 = vmatprep.subr.mxu0 0.0
    %4454 = vmatpush1.msra.mxu0 0.0
    %4455 = vmatprep.subr.mxu0 0.0
    %4456 = vmatpush1.msra.mxu0 0.0
    %4457 = vmatprep.subr.mxu0 0.0
    %4458 = vmatpush1.msra.mxu0 0.0
    %4459 = vmatprep.subr.mxu0 0.0
    %4460 = vmatpush1.msra.mxu0 0.0
    %4461 = vmatprep.mubr.f32.mxu0 0.0
    %4462 = vmatmul.mubr.f32.gmra.mrb[0].mxu0 %v4392
    %v4463 = vpop.f32.mrb[0].mxu0
    %v4464 = vadd.f32 0.0, %v4463
    %v4465 = vpop.f32.mrb[0].mxu0
    %4466 = vmatprep.mubr.f32.mxu0 0.0
    %4467 = vmatmul.mubr.f32.gmra.mrb[0].mxu0 %v4395
    %v4468 = vpop.f32.mrb[0].mxu0
    %v4469 = vadd.f32 0.0, %v4468
    %v4470 = vpop.f32.mrb[0].mxu0
    %4471 = vdwg.mxu0
    %4472 = vmatprep.subr.mxu0 0.0
    %4473 = vmatpush1.msra.mxu0 %v4464
    %4474 = vmatprep.subr.mxu0 0.0
    %4475 = vmatpush1.msra.mxu0 %v4469
    %4476 = vmatprep.subr.mxu0 0.0
    %4477 = vmatpush1.msra.mxu0 0.0
    %4478 = vmatprep.subr.mxu0 0.0
    %4479 = vmatpush1.msra.mxu0 0.0
    %4480 = vmatprep.subr.mxu0 0.0
    %4481 = vmatpush1.msra.mxu0 0.0
    %4482 = vmatprep.subr.mxu0 0.0
    %4483 = vmatpush1.msra.mxu0 0.0
    %4484 = vmatprep.subr.mxu0 0.0
    %4485 = vmatpush1.msra.mxu0 0.0
    %4486 = vmatprep.subr.mxu0 0.0
    %4487 = vmatpush1.msra.mxu0 0.0
    %4488 = vmatprep.subr.mxu0 0.0
    %4489 = vmatpush1.msra.mxu0 0.0
    %4490 = vmatprep.subr.mxu0 0.0
    %4491 = vmatpush1.msra.mxu0 0.0
    %4492 = vmatprep.subr.mxu0 0.0
    %4493 = vmatpush1.msra.mxu0 0.0
    %4494 = vmatprep.subr.mxu0 0.0
    %4495 = vmatpush1.msra.mxu0 0.0
    %4496 = vmatprep.subr.mxu0 0.0
    %4497 = vmatpush1.msra.mxu0 0.0
    %4498 = vmatprep.subr.mxu0 0.0
    %4499 = vmatpush1.msra.mxu0 0.0
    %4500 = vmatprep.subr.mxu0 0.0
    %4501 = vmatpush1.msra.mxu0 0.0
    %4502 = vmatprep.subr.mxu0 0.0
    %4503 = vmatpush1.msra.mxu0 0.0
    %4504 = vmatprep.subr.mxu0 0.0
    %4505 = vmatpush1.msra.mxu0 0.0
    %4506 = vmatprep.subr.mxu0 0.0
    %4507 = vmatpush1.msra.mxu0 0.0
    %4508 = vmatprep.subr.mxu0 0.0
    %4509 = vmatpush1.msra.mxu0 0.0
    %4510 = vmatprep.subr.mxu0 0.0
    %4511 = vmatpush1.msra.mxu0 0.0
    %4512 = vmatprep.subr.mxu0 0.0
    %4513 = vmatpush1.msra.mxu0 0.0
    %4514 = vmatprep.subr.mxu0 0.0
    %4515 = vmatpush1.msra.mxu0 0.0
    %4516 = vmatprep.subr.mxu0 0.0
    %4517 = vmatpush1.msra.mxu0 0.0
    %4518 = vmatprep.subr.mxu0 0.0
    %4519 = vmatpush1.msra.mxu0 0.0
    %4520 = vmatprep.subr.mxu0 0.0
    %4521 = vmatpush1.msra.mxu0 0.0
    %4522 = vmatprep.subr.mxu0 0.0
    %4523 = vmatpush1.msra.mxu0 0.0
    %4524 = vmatprep.subr.mxu0 0.0
    %4525 = vmatpush1.msra.mxu0 0.0
    %4526 = vmatprep.subr.mxu0 0.0
    %4527 = vmatpush1.msra.mxu0 0.0
    %4528 = vmatprep.subr.mxu0 0.0
    %4529 = vmatpush1.msra.mxu0 0.0
    %4530 = vmatprep.subr.mxu0 0.0
    %4531 = vmatpush1.msra.mxu0 0.0
    %4532 = vmatprep.subr.mxu0 0.0
    %4533 = vmatpush1.msra.mxu0 0.0
    %4534 = vmatprep.subr.mxu0 0.0
    %4535 = vmatpush1.msra.mxu0 0.0
    %4536 = vmatprep.mubr.f32.mxu0 0.0
    %4537 = vmatmul.mubr.f32.gmra.mrb[0].mxu0 %v226
    %v4538 = vpop.f32.mrb[0].mxu0
    %v4539 = vadd.f32 0.0, %v4538
    %v4540 = vpop.f32.mrb[0].mxu0
    %4541 = vmatprep.mubr.f32.mxu0 0.0
    %4542 = vmatmul.mubr.f32.gmra.mrb[0].mxu0 %v229
    %v4543 = vpop.f32.mrb[0].mxu0
    %v4544 = vadd.f32 0.0, %v4543
    %v4545 = vpop.f32.mrb[0].mxu0
    %4546 = vdwg.mxu0
    %4547 = vmatprep.subr.mxu0 0.0
    %4548 = vmatpush1.msra.mxu0 %v4464
    %4549 = vmatprep.subr.mxu0 0.0
    %4550 = vmatpush1.msra.mxu0 %v4469
    %4551 = vmatprep.subr.mxu0 0.0
    %4552 = vmatpush1.msra.mxu0 0.0
    %4553 = vmatprep.subr.mxu0 0.0
    %4554 = vmatpush1.msra.mxu0 0.0
    %4555 = vmatprep.subr.mxu0 0.0
    %4556 = vmatpush1.msra.mxu0 0.0
    %4557 = vmatprep.subr.mxu0 0.0
    %4558 = vmatpush1.msra.mxu0 0.0
    %4559 = vmatprep.subr.mxu0 0.0
    %4560 = vmatpush1.msra.mxu0 0.0
    %4561 = vmatprep.subr.mxu0 0.0
    %4562 = vmatpush1.msra.mxu0 0.0
    %4563 = vmatprep.subr.mxu0 0.0
    %4564 = vmatpush1.msra.mxu0 0.0
    %4565 = vmatprep.subr.mxu0 0.0
    %4566 = vmatpush1.msra.mxu0 0.0
    %4567 = vmatprep.subr.mxu0 0.0
    %4568 = vmatpush1.msra.mxu0 0.0
    %4569 = vmatprep.subr.mxu0 0.0
    %4570 = vmatpush1.msra.mxu0 0.0
    %4571 = vmatprep.subr.mxu0 0.0
    %4572 = vmatpush1.msra.mxu0 0.0
    %4573 = vmatprep.subr.mxu0 0.0
    %4574 = vmatpush1.msra.mxu0 0.0
    %4575 = vmatprep.subr.mxu0 0.0
    %4576 = vmatpush1.msra.mxu0 0.0
    %4577 = vmatprep.subr.mxu0 0.0
    %4578 = vmatpush1.msra.mxu0 0.0
    %4579 = vmatprep.subr.mxu0 0.0
    %4580 = vmatpush1.msra.mxu0 0.0
    %4581 = vmatprep.subr.mxu0 0.0
    %4582 = vmatpush1.msra.mxu0 0.0
    %4583 = vmatprep.subr.mxu0 0.0
    %4584 = vmatpush1.msra.mxu0 0.0
    %4585 = vmatprep.subr.mxu0 0.0
    %4586 = vmatpush1.msra.mxu0 0.0
    %4587 = vmatprep.subr.mxu0 0.0
    %4588 = vmatpush1.msra.mxu0 0.0
    %4589 = vmatprep.subr.mxu0 0.0
    %4590 = vmatpush1.msra.mxu0 0.0
    %4591 = vmatprep.subr.mxu0 0.0
    %4592 = vmatpush1.msra.mxu0 0.0
    %4593 = vmatprep.subr.mxu0 0.0
    %4594 = vmatpush1.msra.mxu0 0.0
    %4595 = vmatprep.subr.mxu0 0.0
    %4596 = vmatpush1.msra.mxu0 0.0
    %4597 = vmatprep.subr.mxu0 0.0
    %4598 = vmatpush1.msra.mxu0 0.0
    %4599 = vmatprep.subr.mxu0 0.0
    %4600 = vmatpush1.msra.mxu0 0.0
    %4601 = vmatprep.subr.mxu0 0.0
    %4602 = vmatpush1.msra.mxu0 0.0
    %4603 = vmatprep.subr.mxu0 0.0
    %4604 = vmatpush1.msra.mxu0 0.0
    %4605 = vmatprep.subr.mxu0 0.0
    %4606 = vmatpush1.msra.mxu0 0.0
    %4607 = vmatprep.subr.mxu0 0.0
    %4608 = vmatpush1.msra.mxu0 0.0
    %4609 = vmatprep.subr.mxu0 0.0
    %4610 = vmatpush1.msra.mxu0 0.0
    %4611 = vmatprep.mubr.f32.mxu0 0.0
    %4612 = vmatmul.mubr.f32.gmra.mrb[0].mxu0 %v307
    %v4613 = vpop.f32.mrb[0].mxu0
    %v4614 = vadd.f32 0.0, %v4613
    %v4615 = vpop.f32.mrb[0].mxu0
    %4616 = vmatprep.mubr.f32.mxu0 0.0
    %4617 = vmatmul.mubr.f32.gmra.mrb[0].mxu0 %v310
    %v4618 = vpop.f32.mrb[0].mxu0
    %v4619 = vadd.f32 0.0, %v4618
    %v4620 = vpop.f32.mrb[0].mxu0
    %4621 = vdwg.mxu0
    %v4622 = vmax.f32 %v4539, 0.0
    %v4623 = vmax.f32 %v4544, 0.0
    %s4624 = scalar_lea.vmem [#allocation14], 240
    %4625 = vst.msk [vmem:[%s4624] sm:$0xff] %vm389, %v4622
    %4626 = vst.msk [vmem:[%s4624 + $0x8] sm:$0xff] %vm389, %v4623
    %v4627 = vmax.f32 %v4614, 0.0
    %v4628 = vmax.f32 %v4619, 0.0
    %4631 = vrot.lane.b32.xlu0 %v4627, 32
    %v4632 = vpop.permute.xlu0 %4631
    %4633 = vrot.lane.b32.xlu0 %v4628, 32
    %v4634 = vpop.permute.xlu0 %4633
    %4637 = vst.msk [vmem:[%s4624] sm:$0xff] %vm402, %v4632
    %4638 = vst.msk [vmem:[%s4624 + $0x8] sm:$0xff] %vm402, %v4634
    // Predicated region
    $region50: #{tpu_custom_call.1} parent=1 // pred_check
      _
    $region51: #{tpu_custom_call.1} parent=1 // pred_check_branch
      %4640 = sbr.rel (0) target = $region53
    $region52: #{tpu_custom_call.1} parent=1 // pred_region
      %s4642 = ssub.s32 4096, 4096
      %4643 = vsyncadd [#allocation4], %s4642
      %s4644 = sshll.u32 [#allocation14], 4
      %s4645 = int_to_ptr.vmem [resolvable:$true] %s4644
      %4650 = dma.vmem_to_hbm [thread:$0]  %s4645, 4096, %s6, [#allocation4], 128, 128, 8
    $region53: #{tpu_custom_call.1} parent=1 // pred_fallthru
      _
    // Predicated region
    $region54: #{tpu_custom_call.1} parent=1 // pred_check
      _
    $region55: #{tpu_custom_call.1} parent=1 // pred_check_branch
      %4652 = sbr.rel (0) target = $region57
    $region56: #{tpu_custom_call.1} parent=1 // pred_region
      %4653 = dma.done [#allocation4], 4096
    $region57: #{tpu_custom_call.1} parent=1 // pred_fallthru
      _
    %4654 = vsyncpa [#allocation3], 1
    %4655 = vsyncpa [#allocation10], 1
    %4656 = vsyncpa [#allocation13], 1
    %4657 = vsyncpa [#allocation4], 1
    %4658 = vsyncpa [#allocation5], 1
    %4659 = vsyncpa [#allocation8], 1

</llo_original>
